<compile_context>
chip_gen: v6e
topology: v6e:2x2x1
jax: 0.10.0
libtpu: 0.0.40
codegen_flags: <defaults>
</compile_context>

<pallas_src>
import functools

import jax
import jax.numpy as jnp
from jax.experimental import pallas as pl
from jax.experimental.pallas import tpu as pltpu

# ---------------- small, module-consistent configuration -------------------
B = 2          # batch (module global `b`)
N = 3          # ways   (module global `n`)
K = 1          # shots  (module global `k`)
H = W = 16     # spatial (module global `h`, `w`)
D = 32         # feature dim (module global `d`)
HEADS = 4      # attention heads
LAYERS = 2     # number of Atten_fwd layers
SEQ = N * (K + 1)
NK = N * K
LN_EPS = 1e-5

# conv stem geometry (3x3, stride 2, pad 1)
KH = KW = 3
STRIDE = 2
PADW = 1
OH = (H + 2 * PADW - KH) // STRIDE + 1
OW = (W + 2 * PADW - KW) // STRIDE + 1
P = OH * OW                 # patches per image (64)
CIN = 3 * KH * KW           # 27
CPAD = 32                   # padded contraction dim


# ============================ fused Pallas kernel ===========================

def fused_forward_kernel(
    patches_ref, pool_ref, cnn_w_ref, cnn_b_ref,
    wqkv_ref, bqkv_ref, wo_ref, bo_ref,
    w1_ref, b1_ref, w2_ref, b2_ref,
    gamma_ref, beta_ref, lin_w_ref, lin_b_ref,
    sel_ref, hmask_ref, val_ref,
    yhat_ref,
    *, layers, heads, n_way, inv_kn, eps):
    f32 = jnp.float32

    # ---- backbone stand-in: patches @ W + b -> ReLU -> per-image mean ----
    p = patches_ref[0]                                                 # (SEQ*P, CPAD)
    y = jnp.dot(p, cnn_w_ref[...], preferred_element_type=f32) + cnn_b_ref[...]
    y = jnp.maximum(y, 0.0)                                            # (SEQ*P, D)
    # segmented mean (global average pool) as a pooling matmul -> stays on MXU;
    # the pool matrix is a host-side constant (no in-kernel iota/where).
    x = jnp.dot(pool_ref[...], y, preferred_element_type=f32)          # (SEQ, D)

    d_model = x.shape[-1]
    dh = d_model // heads
    scale = 1.0 / (dh ** 0.5)
    masks = hmask_ref[...]                                             # (heads, D)

    # ---- Atten_fwd layers, fully resident in VMEM ----
    for l in range(layers):
        # fused QKV projection: one GEMM instead of three
        qkv = jnp.dot(x, wqkv_ref[l], preferred_element_type=f32) + bqkv_ref[l]   # (SEQ, 3D)
        q = qkv[:, :d_model] * scale                                   # scale folded in once
        k = qkv[:, d_model:2 * d_model]
        v = qkv[:, 2 * d_model:]

        # Multi-head attention via lane masking (no per-head concat/gather).
        attn = jnp.zeros_like(x)
        for hh in range(heads):
            m = masks[hh:hh + 1, :]                                    # (1, D)
            s = jax.lax.dot_general(q * m, k, (((1,), (1,)), ((), ())),
                                    preferred_element_type=f32)        # (SEQ, SEQ)
            s = s - jnp.max(s, axis=-1, keepdims=True)
            e = jnp.exp(s)
            prob = e * pl.reciprocal(jnp.sum(e, axis=-1, keepdims=True), approx=True)
            attn = attn + jnp.dot(prob, v * m, preferred_element_type=f32)

        temp = jnp.dot(attn, wo_ref[l], preferred_element_type=f32) + bo_ref[l]

        # feedfwd: Linear -> ELU -> Linear -> (dropout=id) -> LayerNorm(. + layer_input)
        h1 = jnp.dot(temp, w1_ref[l], preferred_element_type=f32) + b1_ref[l]
        h1 = jnp.where(h1 > 0, h1, jnp.exp(jnp.minimum(h1, 0.0)) - 1.0)   # ELU (overflow-safe)
        h2 = jnp.dot(h1, w2_ref[l], preferred_element_type=f32) + b2_ref[l]

        r = h2 + x
        mu = jnp.mean(r, axis=-1, keepdims=True)
        var = jnp.mean((r - mu) ** 2, axis=-1, keepdims=True)
        x = (r - mu) * jax.lax.rsqrt(var + eps) * gamma_ref[l] + beta_ref[l]

    # ---- final linear ----
    x = jnp.dot(x, lin_w_ref[...], preferred_element_type=f32) + lin_b_ref[...]   # (SEQ, D)

    # ---- key/query split via one constant selection matmul + head einsum ----
    sel_out = jnp.dot(sel_ref[...], x, preferred_element_type=f32)     # (N+NK, D)
    qr = sel_out[:n_way, :]                                            # (N, D)
    kr = sel_out[n_way:, :]                                            # (NK, D)
    wgt = jax.lax.dot_general(qr, kr, (((1,), (1,)), ((), ())),
                              preferred_element_type=f32)              # (N, NK)
    yhat = jnp.dot(wgt, val_ref[...], preferred_element_type=f32) * inv_kn        # (N, N)
    yhat_ref[0, :, :] = yhat.astype(yhat_ref.dtype)


def fused_forward(patches, params):
    """One pallas_call for the whole post-im2col network. grid=(B,)."""
    kernel = functools.partial(fused_forward_kernel, layers=LAYERS, heads=HEADS,
                               n_way=N, inv_kn=1.0 / (K * N), eps=LN_EPS)
    full2 = lambda i: (0, 0)
    full3 = lambda i: (0, 0, 0)
    return pl.pallas_call(
        kernel,
        out_shape=jax.ShapeDtypeStruct((B, N, N), jnp.float32),
        grid=(B,),
        in_specs=[
            pl.BlockSpec((1, SEQ * P, CPAD), lambda i: (i, 0, 0)),    # patches (per batch)
            pl.BlockSpec((SEQ, SEQ * P), full2),                      # pool matrix
            pl.BlockSpec((CPAD, D), full2),                           # cnn_w
            pl.BlockSpec((1, D), full2),                              # cnn_b
            pl.BlockSpec((LAYERS, D, 3 * D), full3),                  # wqkv (fused)
            pl.BlockSpec((LAYERS, 1, 3 * D), full3),                  # bqkv (fused)
            pl.BlockSpec((LAYERS, D, D), full3),                      # wo
            pl.BlockSpec((LAYERS, 1, D), full3),                      # bo
            pl.BlockSpec((LAYERS, D, D), full3),                      # w1
            pl.BlockSpec((LAYERS, 1, D), full3),                      # b1
            pl.BlockSpec((LAYERS, D, D), full3),                      # w2
            pl.BlockSpec((LAYERS, 1, D), full3),                      # b2
            pl.BlockSpec((LAYERS, 1, D), full3),                      # gamma
            pl.BlockSpec((LAYERS, 1, D), full3),                      # beta
            pl.BlockSpec((D, D), full2),                              # lin_w
            pl.BlockSpec((1, D), full2),                              # lin_b
            pl.BlockSpec((N + NK, SEQ), full2),                       # sel (qsel;ksel)
            pl.BlockSpec((HEADS, D), full2),                          # head lane masks
            pl.BlockSpec((NK, N), full2),                             # value
        ],
        out_specs=pl.BlockSpec((1, N, N), lambda i: (i, 0, 0)),
        compiler_params=pltpu.CompilerParams(
            dimension_semantics=("parallel",)),   # batch across TCs on v7x
    )(patches, params["pool"],
      params["cnn_w"], params["cnn_b"],
      params["wqkv"], params["bqkv"], params["wo"], params["bo"],
      params["w1"], params["b1"], params["w2"], params["b2"],
      params["gamma"], params["beta"],
      params["lin_w"], params["lin_b"],
      params["sel"], params["hmask"], params["value"])


# ============================ forward (glue) ================================

def im2col(x_nchw, kh=KH, kw=KW, stride=STRIDE, pad=PADW):
    Bi, C, Hh, Ww = x_nchw.shape
    xp = jnp.pad(x_nchw, ((0, 0), (0, 0), (pad, pad), (pad, pad)))
    oh = (Hh + 2 * pad - kh) // stride + 1
    ow = (Ww + 2 * pad - kw) // stride + 1
    cols = []
    for i in range(kh):
        for j in range(kw):
            cols.append(xp[:, :, i:i + stride * oh:stride, j:j + stride * ow:stride])
    patches = jnp.stack(cols, axis=2)                                 # (Bi, C, kh*kw, oh, ow)
    patches = patches.transpose(0, 3, 4, 1, 2).reshape(Bi, oh * ow, C * kh * kw)
    return patches


def atten_meta_forward(x, params, is_train=False):
    # x: (B, N*(K+1), H, W) single-channel image stack.
    imgs = x.reshape(B * SEQ, 1, H, W)
    imgs = jnp.broadcast_to(imgs, (B * SEQ, 3, H, W))                 # gray -> 3 channels
    patches = im2col(imgs)                                            # (B*SEQ, P, 27)
    patches = jnp.pad(patches, ((0, 0), (0, 0), (0, CPAD - CIN)))     # pad K-dim 27 -> 32
    patches = patches.reshape(B, SEQ * P, CPAD)
    yhat = fused_forward(patches, params)                             # (B, N, N), ONE kernel launch
    if is_train:
        # nn.CrossEntropyLoss on (B*N, N) logits -- tiny tail op, plain jnp/XLA.
        logits = yhat.reshape(B * N, N)
        y = params["y"]
        logz = jax.nn.logsumexp(logits, axis=-1)
        picked = jnp.take_along_axis(logits, y[:, None], axis=-1)[:, 0]
        return jnp.mean(logz - picked)
    return yhat


# ============================ parameters ====================================

def init_params(key):
    nkeys = 2 + 6 * LAYERS
    ks = list(jax.random.split(key, nkeys))

    def wgt(kk, shape):
        return jax.random.normal(kk, shape, jnp.float32) * 0.02

    def stack_w():
        return jnp.stack([wgt(ks.pop(), (D, D)) for _ in range(LAYERS)])

    def stack_qkv():
        ws = []
        for _ in range(LAYERS):
            wq = wgt(ks.pop(), (D, D))
            wk = wgt(ks.pop(), (D, D))
            wv = wgt(ks.pop(), (D, D))
            ws.append(jnp.concatenate([wq, wk, wv], axis=1))          # (D, 3D)
        return jnp.stack(ws)                                          # (LAYERS, D, 3D)

    # static selection matrices for the key/query split (rows of final out)
    qsel = jnp.zeros((N, SEQ), jnp.float32).at[
        jnp.arange(N), jnp.arange(N) * (K + 1) + K].set(1.0)
    kr = jnp.arange(NK)
    ksel = jnp.zeros((NK, SEQ), jnp.float32).at[
        kr, (kr // K) * (K + 1) + (kr % K)].set(1.0)
    sel = jnp.concatenate([qsel, ksel], axis=0)                       # (N+NK, SEQ)

    # global-average-pool matrix and per-head lane masks (host-side constants)
    pool = jnp.repeat(jnp.eye(SEQ, dtype=jnp.float32), P, axis=1) / P  # (SEQ, SEQ*P)
    lane = jnp.arange(D)
    hmask = (lane[None, :] // (D // HEADS) ==
             jnp.arange(HEADS)[:, None]).astype(jnp.float32)           # (HEADS, D)

    params = {
        "cnn_w": wgt(ks.pop(), (CPAD, D)),          # rows >= 27 multiply zero-padded lanes
        "cnn_b": jnp.zeros((1, D), jnp.float32),
        "lin_w": wgt(ks.pop(), (D, D)),
        "lin_b": jnp.zeros((1, D), jnp.float32),
        "wqkv": stack_qkv(), "bqkv": jnp.zeros((LAYERS, 1, 3 * D), jnp.float32),
        "wo": stack_w(), "bo": jnp.zeros((LAYERS, 1, D), jnp.float32),
        "w1": stack_w(), "b1": jnp.zeros((LAYERS, 1, D), jnp.float32),
        "w2": stack_w(), "b2": jnp.zeros((LAYERS, 1, D), jnp.float32),
        "gamma": jnp.ones((LAYERS, 1, D), jnp.float32),
        "beta": jnp.zeros((LAYERS, 1, D), jnp.float32),
        # value buffer: eye(n) -> (n,1,n) -> (n,k,n) -> (n*k, n)
        "value": jnp.repeat(jnp.eye(N, dtype=jnp.float32), K, axis=0),
        # y buffer: arange(n) tiled over batch
        "y": jnp.tile(jnp.arange(N, dtype=jnp.int32), B),
        "sel": sel,
        "pool": pool,
        "hmask": hmask,
    }
    return params


# ================================ main ======================================

if __name__ == "__main__":
    root = jax.random.PRNGKey(0)
    k_params, k_x = jax.random.split(root)
    params = init_params(k_params)
    x = jax.random.normal(k_x, (B, N * (K + 1), H, W), jnp.float32)

    yhat = atten_meta_forward(x, params, is_train=False)
    yhat = jax.block_until_ready(yhat)
    assert yhat.shape == (B, N, N), yhat.shape
    assert bool(jnp.all(jnp.isfinite(yhat)))

    loss = atten_meta_forward(x, params, is_train=True)
    loss = jax.block_until_ready(loss)
    assert loss.shape == (), loss.shape
    assert bool(jnp.isfinite(loss))

    print("KERNEL_OK")
</pallas_src>

<mosaic_0001>
module attributes {stable_mosaic.version = 11 : i64} {
  func.func @fused_forward_kernel(%arg0: i32, %arg1: memref<1x384x32xf32, #tpu.memory_space<vmem>>, %arg2: memref<6x384xf32, #tpu.memory_space<vmem>>, %arg3: memref<32x32xf32, #tpu.memory_space<vmem>>, %arg4: memref<1x32xf32, #tpu.memory_space<vmem>>, %arg5: memref<2x32x96xf32, #tpu.memory_space<vmem>>, %arg6: memref<2x1x96xf32, #tpu.memory_space<vmem>>, %arg7: memref<2x32x32xf32, #tpu.memory_space<vmem>>, %arg8: memref<2x1x32xf32, #tpu.memory_space<vmem>>, %arg9: memref<2x32x32xf32, #tpu.memory_space<vmem>>, %arg10: memref<2x1x32xf32, #tpu.memory_space<vmem>>, %arg11: memref<2x32x32xf32, #tpu.memory_space<vmem>>, %arg12: memref<2x1x32xf32, #tpu.memory_space<vmem>>, %arg13: memref<2x1x32xf32, #tpu.memory_space<vmem>>, %arg14: memref<2x1x32xf32, #tpu.memory_space<vmem>>, %arg15: memref<32x32xf32, #tpu.memory_space<vmem>>, %arg16: memref<1x32xf32, #tpu.memory_space<vmem>>, %arg17: memref<6x6xf32, #tpu.memory_space<vmem>>, %arg18: memref<4x32xf32, #tpu.memory_space<vmem>>, %arg19: memref<3x3xf32, #tpu.memory_space<vmem>>, %arg20: memref<1x3x3xf32, #tpu.memory_space<vmem>>) attributes {dimension_semantics = [#tpu.dimension_semantics<parallel>], iteration_bounds = array<i64: 2>, scalar_prefetch = 0 : i64, scratch_operands = 0 : i64, tpu.core_type = #tpu.core_type<tc>, window_params = [{transform_indices = @transform_0, window_bounds = array<i64: 1, 384, 32>}, {pipeline_mode = #tpu.pipeline_mode<synchronous>, transform_indices = @transform_1, window_bounds = array<i64: 6, 384>}, {pipeline_mode = #tpu.pipeline_mode<synchronous>, transform_indices = @transform_2, window_bounds = array<i64: 32, 32>}, {pipeline_mode = #tpu.pipeline_mode<synchronous>, transform_indices = @transform_3, window_bounds = array<i64: 1, 32>}, {pipeline_mode = #tpu.pipeline_mode<synchronous>, transform_indices = @transform_4, window_bounds = array<i64: 2, 32, 96>}, {pipeline_mode = #tpu.pipeline_mode<synchronous>, transform_indices = @transform_5, window_bounds = array<i64: 2, 1, 96>}, {pipeline_mode = #tpu.pipeline_mode<synchronous>, transform_indices = @transform_6, window_bounds = array<i64: 2, 32, 32>}, {pipeline_mode = #tpu.pipeline_mode<synchronous>, transform_indices = @transform_7, window_bounds = array<i64: 2, 1, 32>}, {pipeline_mode = #tpu.pipeline_mode<synchronous>, transform_indices = @transform_8, window_bounds = array<i64: 2, 32, 32>}, {pipeline_mode = #tpu.pipeline_mode<synchronous>, transform_indices = @transform_9, window_bounds = array<i64: 2, 1, 32>}, {pipeline_mode = #tpu.pipeline_mode<synchronous>, transform_indices = @transform_10, window_bounds = array<i64: 2, 32, 32>}, {pipeline_mode = #tpu.pipeline_mode<synchronous>, transform_indices = @transform_11, window_bounds = array<i64: 2, 1, 32>}, {pipeline_mode = #tpu.pipeline_mode<synchronous>, transform_indices = @transform_12, window_bounds = array<i64: 2, 1, 32>}, {pipeline_mode = #tpu.pipeline_mode<synchronous>, transform_indices = @transform_13, window_bounds = array<i64: 2, 1, 32>}, {pipeline_mode = #tpu.pipeline_mode<synchronous>, transform_indices = @transform_14, window_bounds = array<i64: 32, 32>}, {pipeline_mode = #tpu.pipeline_mode<synchronous>, transform_indices = @transform_15, window_bounds = array<i64: 1, 32>}, {pipeline_mode = #tpu.pipeline_mode<synchronous>, transform_indices = @transform_16, window_bounds = array<i64: 6, 6>}, {pipeline_mode = #tpu.pipeline_mode<synchronous>, transform_indices = @transform_17, window_bounds = array<i64: 4, 32>}, {pipeline_mode = #tpu.pipeline_mode<synchronous>, transform_indices = @transform_18, window_bounds = array<i64: 3, 3>}, {transform_indices = @transform_19, window_bounds = array<i64: 1, 3, 3>}]} {
    %c0 = arith.constant 0 : index
    %c0_0 = arith.constant 0 : index
    %c0_1 = arith.constant 0 : index
    %0 = vector.load %arg1[%c0, %c0_0, %c0_1] : memref<1x384x32xf32, #tpu.memory_space<vmem>>, vector<1x384x32xf32>
    %1 = vector.shape_cast %0 : vector<1x384x32xf32> to vector<384x32xf32>
    %c0_2 = arith.constant 0 : index
    %c0_3 = arith.constant 0 : index
    %2 = vector.load %arg3[%c0_2, %c0_3] : memref<32x32xf32, #tpu.memory_space<vmem>>, vector<32x32xf32>
    %cst = arith.constant dense<0.000000e+00> : vector<384x32xf32>
    %3 = tpu.matmul %1, %2, %cst {dimension_numbers = #tpu.dot_dimension_numbers<[1], [0], [0], [1], [0, 0, 1, 1], [], []>} : vector<384x32xf32>, vector<32x32xf32>, vector<384x32xf32> -> vector<384x32xf32>
    %c0_4 = arith.constant 0 : index
    %c0_5 = arith.constant 0 : index
    %4 = vector.load %arg4[%c0_4, %c0_5] : memref<1x32xf32, #tpu.memory_space<vmem>>, vector<1x32xf32>
    %5 = vector.broadcast %4 : vector<1x32xf32> to vector<384x32xf32>
    %6 = arith.addf %3, %5 : vector<384x32xf32>
    %cst_6 = arith.constant 0.000000e+00 : f32
    %7 = vector.broadcast %cst_6 : f32 to vector<384x32xf32>
    %8 = arith.maximumf %6, %7 : vector<384x32xf32>
    %c0_7 = arith.constant 0 : index
    %c0_8 = arith.constant 0 : index
    %9 = vector.load %arg2[%c0_7, %c0_8] : memref<6x384xf32, #tpu.memory_space<vmem>>, vector<6x384xf32>
    %cst_9 = arith.constant dense<0.000000e+00> : vector<6x32xf32>
    %10 = tpu.matmul %9, %8, %cst_9 {dimension_numbers = #tpu.dot_dimension_numbers<[1], [0], [0], [1], [0, 0, 1, 1], [], []>} : vector<6x384xf32>, vector<384x32xf32>, vector<6x32xf32> -> vector<6x32xf32>
    %c0_10 = arith.constant 0 : index
    %c0_11 = arith.constant 0 : index
    %11 = vector.load %arg18[%c0_10, %c0_11] : memref<4x32xf32, #tpu.memory_space<vmem>>, vector<4x32xf32>
    %c0_12 = arith.constant 0 : index
    %c0_13 = arith.constant 0 : index
    %c0_14 = arith.constant 0 : index
    %12 = vector.load %arg5[%c0_12, %c0_13, %c0_14] : memref<2x32x96xf32, #tpu.memory_space<vmem>>, vector<1x32x96xf32>
    %13 = vector.shape_cast %12 : vector<1x32x96xf32> to vector<32x96xf32>
    %cst_15 = arith.constant dense<0.000000e+00> : vector<6x96xf32>
    %14 = tpu.matmul %10, %13, %cst_15 {dimension_numbers = #tpu.dot_dimension_numbers<[1], [0], [0], [1], [0, 0, 1, 1], [], []>} : vector<6x32xf32>, vector<32x96xf32>, vector<6x96xf32> -> vector<6x96xf32>
    %c0_16 = arith.constant 0 : index
    %c0_17 = arith.constant 0 : index
    %c0_18 = arith.constant 0 : index
    %15 = vector.load %arg6[%c0_16, %c0_17, %c0_18] : memref<2x1x96xf32, #tpu.memory_space<vmem>>, vector<1x1x96xf32>
    %16 = vector.shape_cast %15 : vector<1x1x96xf32> to vector<1x96xf32>
    %17 = vector.broadcast %16 : vector<1x96xf32> to vector<6x96xf32>
    %18 = arith.addf %14, %17 : vector<6x96xf32>
    %19 = vector.extract_strided_slice %18 {offsets = [0, 0], sizes = [6, 32], strides = [1, 1]} : vector<6x96xf32> to vector<6x32xf32>
    %cst_19 = arith.constant 0.353553385 : f32
    %20 = vector.broadcast %cst_19 : f32 to vector<6x32xf32>
    %21 = arith.mulf %19, %20 : vector<6x32xf32>
    %22 = vector.extract_strided_slice %18 {offsets = [0, 32], sizes = [6, 32], strides = [1, 1]} : vector<6x96xf32> to vector<6x32xf32>
    %23 = vector.extract_strided_slice %18 {offsets = [0, 64], sizes = [6, 32], strides = [1, 1]} : vector<6x96xf32> to vector<6x32xf32>
    %cst_20 = arith.constant 0.000000e+00 : f32
    %24 = vector.broadcast %cst_20 : f32 to vector<6x32xf32>
    %25 = vector.extract_strided_slice %11 {offsets = [0, 0], sizes = [1, 32], strides = [1, 1]} : vector<4x32xf32> to vector<1x32xf32>
    %26 = vector.broadcast %25 : vector<1x32xf32> to vector<6x32xf32>
    %27 = arith.mulf %21, %26 : vector<6x32xf32>
    %cst_21 = arith.constant dense<0.000000e+00> : vector<6x6xf32>
    %28 = tpu.matmul %27, %22, %cst_21 {dimension_numbers = #tpu.dot_dimension_numbers<[1], [1], [0], [0], [0, 0, 1, 0], [], []>} : vector<6x32xf32>, vector<6x32xf32>, vector<6x6xf32> -> vector<6x6xf32>
    %cst_22 = arith.constant dense<0xFF800000> : vector<6xf32>
    %29 = vector.multi_reduction <maximumf>, %28, %cst_22 [1] : vector<6x6xf32> to vector<6xf32>
    %30 = vector.shape_cast %29 : vector<6xf32> to vector<6x1xf32>
    %31 = vector.broadcast %30 : vector<6x1xf32> to vector<6x6xf32>
    %32 = arith.subf %28, %31 : vector<6x6xf32>
    %33 = math.exp %32 : vector<6x6xf32>
    %cst_23 = arith.constant dense<0.000000e+00> : vector<6xf32>
    %34 = vector.multi_reduction <add>, %33, %cst_23 [1] : vector<6x6xf32> to vector<6xf32>
    %35 = vector.shape_cast %34 : vector<6xf32> to vector<6x1xf32>
    %36 = tpu.reciprocal %35 {approx = true} : vector<6x1xf32> -> vector<6x1xf32>
    %37 = vector.broadcast %36 : vector<6x1xf32> to vector<6x6xf32>
    %38 = arith.mulf %33, %37 : vector<6x6xf32>
    %39 = vector.broadcast %25 : vector<1x32xf32> to vector<6x32xf32>
    %40 = arith.mulf %23, %39 : vector<6x32xf32>
    %cst_24 = arith.constant dense<0.000000e+00> : vector<6x32xf32>
    %41 = tpu.matmul %38, %40, %cst_24 {dimension_numbers = #tpu.dot_dimension_numbers<[1], [0], [0], [1], [0, 0, 1, 1], [], []>} : vector<6x6xf32>, vector<6x32xf32>, vector<6x32xf32> -> vector<6x32xf32>
    %42 = arith.addf %24, %41 : vector<6x32xf32>
    %43 = vector.extract_strided_slice %11 {offsets = [1, 0], sizes = [1, 32], strides = [1, 1]} : vector<4x32xf32> to vector<1x32xf32>
    %44 = vector.broadcast %43 : vector<1x32xf32> to vector<6x32xf32>
    %45 = arith.mulf %21, %44 : vector<6x32xf32>
    %cst_25 = arith.constant dense<0.000000e+00> : vector<6x6xf32>
    %46 = tpu.matmul %45, %22, %cst_25 {dimension_numbers = #tpu.dot_dimension_numbers<[1], [1], [0], [0], [0, 0, 1, 0], [], []>} : vector<6x32xf32>, vector<6x32xf32>, vector<6x6xf32> -> vector<6x6xf32>
    %cst_26 = arith.constant dense<0xFF800000> : vector<6xf32>
    %47 = vector.multi_reduction <maximumf>, %46, %cst_26 [1] : vector<6x6xf32> to vector<6xf32>
    %48 = vector.shape_cast %47 : vector<6xf32> to vector<6x1xf32>
    %49 = vector.broadcast %48 : vector<6x1xf32> to vector<6x6xf32>
    %50 = arith.subf %46, %49 : vector<6x6xf32>
    %51 = math.exp %50 : vector<6x6xf32>
    %cst_27 = arith.constant dense<0.000000e+00> : vector<6xf32>
    %52 = vector.multi_reduction <add>, %51, %cst_27 [1] : vector<6x6xf32> to vector<6xf32>
    %53 = vector.shape_cast %52 : vector<6xf32> to vector<6x1xf32>
    %54 = tpu.reciprocal %53 {approx = true} : vector<6x1xf32> -> vector<6x1xf32>
    %55 = vector.broadcast %54 : vector<6x1xf32> to vector<6x6xf32>
    %56 = arith.mulf %51, %55 : vector<6x6xf32>
    %57 = vector.broadcast %43 : vector<1x32xf32> to vector<6x32xf32>
    %58 = arith.mulf %23, %57 : vector<6x32xf32>
    %cst_28 = arith.constant dense<0.000000e+00> : vector<6x32xf32>
    %59 = tpu.matmul %56, %58, %cst_28 {dimension_numbers = #tpu.dot_dimension_numbers<[1], [0], [0], [1], [0, 0, 1, 1], [], []>} : vector<6x6xf32>, vector<6x32xf32>, vector<6x32xf32> -> vector<6x32xf32>
    %60 = arith.addf %42, %59 : vector<6x32xf32>
    %61 = vector.extract_strided_slice %11 {offsets = [2, 0], sizes = [1, 32], strides = [1, 1]} : vector<4x32xf32> to vector<1x32xf32>
    %62 = vector.broadcast %61 : vector<1x32xf32> to vector<6x32xf32>
    %63 = arith.mulf %21, %62 : vector<6x32xf32>
    %cst_29 = arith.constant dense<0.000000e+00> : vector<6x6xf32>
    %64 = tpu.matmul %63, %22, %cst_29 {dimension_numbers = #tpu.dot_dimension_numbers<[1], [1], [0], [0], [0, 0, 1, 0], [], []>} : vector<6x32xf32>, vector<6x32xf32>, vector<6x6xf32> -> vector<6x6xf32>
    %cst_30 = arith.constant dense<0xFF800000> : vector<6xf32>
    %65 = vector.multi_reduction <maximumf>, %64, %cst_30 [1] : vector<6x6xf32> to vector<6xf32>
    %66 = vector.shape_cast %65 : vector<6xf32> to vector<6x1xf32>
    %67 = vector.broadcast %66 : vector<6x1xf32> to vector<6x6xf32>
    %68 = arith.subf %64, %67 : vector<6x6xf32>
    %69 = math.exp %68 : vector<6x6xf32>
    %cst_31 = arith.constant dense<0.000000e+00> : vector<6xf32>
    %70 = vector.multi_reduction <add>, %69, %cst_31 [1] : vector<6x6xf32> to vector<6xf32>
    %71 = vector.shape_cast %70 : vector<6xf32> to vector<6x1xf32>
    %72 = tpu.reciprocal %71 {approx = true} : vector<6x1xf32> -> vector<6x1xf32>
    %73 = vector.broadcast %72 : vector<6x1xf32> to vector<6x6xf32>
    %74 = arith.mulf %69, %73 : vector<6x6xf32>
    %75 = vector.broadcast %61 : vector<1x32xf32> to vector<6x32xf32>
    %76 = arith.mulf %23, %75 : vector<6x32xf32>
    %cst_32 = arith.constant dense<0.000000e+00> : vector<6x32xf32>
    %77 = tpu.matmul %74, %76, %cst_32 {dimension_numbers = #tpu.dot_dimension_numbers<[1], [0], [0], [1], [0, 0, 1, 1], [], []>} : vector<6x6xf32>, vector<6x32xf32>, vector<6x32xf32> -> vector<6x32xf32>
    %78 = arith.addf %60, %77 : vector<6x32xf32>
    %79 = vector.extract_strided_slice %11 {offsets = [3, 0], sizes = [1, 32], strides = [1, 1]} : vector<4x32xf32> to vector<1x32xf32>
    %80 = vector.broadcast %79 : vector<1x32xf32> to vector<6x32xf32>
    %81 = arith.mulf %21, %80 : vector<6x32xf32>
    %cst_33 = arith.constant dense<0.000000e+00> : vector<6x6xf32>
    %82 = tpu.matmul %81, %22, %cst_33 {dimension_numbers = #tpu.dot_dimension_numbers<[1], [1], [0], [0], [0, 0, 1, 0], [], []>} : vector<6x32xf32>, vector<6x32xf32>, vector<6x6xf32> -> vector<6x6xf32>
    %cst_34 = arith.constant dense<0xFF800000> : vector<6xf32>
    %83 = vector.multi_reduction <maximumf>, %82, %cst_34 [1] : vector<6x6xf32> to vector<6xf32>
    %84 = vector.shape_cast %83 : vector<6xf32> to vector<6x1xf32>
    %85 = vector.broadcast %84 : vector<6x1xf32> to vector<6x6xf32>
    %86 = arith.subf %82, %85 : vector<6x6xf32>
    %87 = math.exp %86 : vector<6x6xf32>
    %cst_35 = arith.constant dense<0.000000e+00> : vector<6xf32>
    %88 = vector.multi_reduction <add>, %87, %cst_35 [1] : vector<6x6xf32> to vector<6xf32>
    %89 = vector.shape_cast %88 : vector<6xf32> to vector<6x1xf32>
    %90 = tpu.reciprocal %89 {approx = true} : vector<6x1xf32> -> vector<6x1xf32>
    %91 = vector.broadcast %90 : vector<6x1xf32> to vector<6x6xf32>
    %92 = arith.mulf %87, %91 : vector<6x6xf32>
    %93 = vector.broadcast %79 : vector<1x32xf32> to vector<6x32xf32>
    %94 = arith.mulf %23, %93 : vector<6x32xf32>
    %cst_36 = arith.constant dense<0.000000e+00> : vector<6x32xf32>
    %95 = tpu.matmul %92, %94, %cst_36 {dimension_numbers = #tpu.dot_dimension_numbers<[1], [0], [0], [1], [0, 0, 1, 1], [], []>} : vector<6x6xf32>, vector<6x32xf32>, vector<6x32xf32> -> vector<6x32xf32>
    %96 = arith.addf %78, %95 : vector<6x32xf32>
    %c0_37 = arith.constant 0 : index
    %c0_38 = arith.constant 0 : index
    %c0_39 = arith.constant 0 : index
    %97 = vector.load %arg7[%c0_37, %c0_38, %c0_39] : memref<2x32x32xf32, #tpu.memory_space<vmem>>, vector<1x32x32xf32>
    %98 = vector.shape_cast %97 : vector<1x32x32xf32> to vector<32x32xf32>
    %cst_40 = arith.constant dense<0.000000e+00> : vector<6x32xf32>
    %99 = tpu.matmul %96, %98, %cst_40 {dimension_numbers = #tpu.dot_dimension_numbers<[1], [0], [0], [1], [0, 0, 1, 1], [], []>} : vector<6x32xf32>, vector<32x32xf32>, vector<6x32xf32> -> vector<6x32xf32>
    %c0_41 = arith.constant 0 : index
    %c0_42 = arith.constant 0 : index
    %c0_43 = arith.constant 0 : index
    %100 = vector.load %arg8[%c0_41, %c0_42, %c0_43] : memref<2x1x32xf32, #tpu.memory_space<vmem>>, vector<1x1x32xf32>
    %101 = vector.shape_cast %100 : vector<1x1x32xf32> to vector<1x32xf32>
    %102 = vector.broadcast %101 : vector<1x32xf32> to vector<6x32xf32>
    %103 = arith.addf %99, %102 : vector<6x32xf32>
    %c0_44 = arith.constant 0 : index
    %c0_45 = arith.constant 0 : index
    %c0_46 = arith.constant 0 : index
    %104 = vector.load %arg9[%c0_44, %c0_45, %c0_46] : memref<2x32x32xf32, #tpu.memory_space<vmem>>, vector<1x32x32xf32>
    %105 = vector.shape_cast %104 : vector<1x32x32xf32> to vector<32x32xf32>
    %cst_47 = arith.constant dense<0.000000e+00> : vector<6x32xf32>
    %106 = tpu.matmul %103, %105, %cst_47 {dimension_numbers = #tpu.dot_dimension_numbers<[1], [0], [0], [1], [0, 0, 1, 1], [], []>} : vector<6x32xf32>, vector<32x32xf32>, vector<6x32xf32> -> vector<6x32xf32>
    %c0_48 = arith.constant 0 : index
    %c0_49 = arith.constant 0 : index
    %c0_50 = arith.constant 0 : index
    %107 = vector.load %arg10[%c0_48, %c0_49, %c0_50] : memref<2x1x32xf32, #tpu.memory_space<vmem>>, vector<1x1x32xf32>
    %108 = vector.shape_cast %107 : vector<1x1x32xf32> to vector<1x32xf32>
    %109 = vector.broadcast %108 : vector<1x32xf32> to vector<6x32xf32>
    %110 = arith.addf %106, %109 : vector<6x32xf32>
    %cst_51 = arith.constant 0.000000e+00 : f32
    %111 = vector.broadcast %cst_51 : f32 to vector<6x32xf32>
    %112 = arith.cmpf ogt, %110, %111 : vector<6x32xf32>
    %cst_52 = arith.constant 0.000000e+00 : f32
    %113 = vector.broadcast %cst_52 : f32 to vector<6x32xf32>
    %114 = arith.minimumf %110, %113 : vector<6x32xf32>
    %115 = math.exp %114 : vector<6x32xf32>
    %cst_53 = arith.constant 1.000000e+00 : f32
    %116 = vector.broadcast %cst_53 : f32 to vector<6x32xf32>
    %117 = arith.subf %115, %116 : vector<6x32xf32>
    %118 = arith.select %112, %110, %117 : vector<6x32xi1>, vector<6x32xf32>
    %c0_54 = arith.constant 0 : index
    %c0_55 = arith.constant 0 : index
    %c0_56 = arith.constant 0 : index
    %119 = vector.load %arg11[%c0_54, %c0_55, %c0_56] : memref<2x32x32xf32, #tpu.memory_space<vmem>>, vector<1x32x32xf32>
    %120 = vector.shape_cast %119 : vector<1x32x32xf32> to vector<32x32xf32>
    %cst_57 = arith.constant dense<0.000000e+00> : vector<6x32xf32>
    %121 = tpu.matmul %118, %120, %cst_57 {dimension_numbers = #tpu.dot_dimension_numbers<[1], [0], [0], [1], [0, 0, 1, 1], [], []>} : vector<6x32xf32>, vector<32x32xf32>, vector<6x32xf32> -> vector<6x32xf32>
    %c0_58 = arith.constant 0 : index
    %c0_59 = arith.constant 0 : index
    %c0_60 = arith.constant 0 : index
    %122 = vector.load %arg12[%c0_58, %c0_59, %c0_60] : memref<2x1x32xf32, #tpu.memory_space<vmem>>, vector<1x1x32xf32>
    %123 = vector.shape_cast %122 : vector<1x1x32xf32> to vector<1x32xf32>
    %124 = vector.broadcast %123 : vector<1x32xf32> to vector<6x32xf32>
    %125 = arith.addf %121, %124 : vector<6x32xf32>
    %126 = arith.addf %125, %10 : vector<6x32xf32>
    %cst_61 = arith.constant dense<0.000000e+00> : vector<6xf32>
    %127 = vector.multi_reduction <add>, %126, %cst_61 [1] : vector<6x32xf32> to vector<6xf32>
    %128 = vector.shape_cast %127 : vector<6xf32> to vector<6x1xf32>
    %cst_62 = arith.constant 3.200000e+01 : f32
    %129 = vector.broadcast %cst_62 : f32 to vector<6x1xf32>
    %130 = arith.divf %128, %129 : vector<6x1xf32>
    %131 = vector.broadcast %130 : vector<6x1xf32> to vector<6x32xf32>
    %132 = arith.subf %126, %131 : vector<6x32xf32>
    %133 = arith.mulf %132, %132 : vector<6x32xf32>
    %cst_63 = arith.constant dense<0.000000e+00> : vector<6xf32>
    %134 = vector.multi_reduction <add>, %133, %cst_63 [1] : vector<6x32xf32> to vector<6xf32>
    %135 = vector.shape_cast %134 : vector<6xf32> to vector<6x1xf32>
    %cst_64 = arith.constant 3.200000e+01 : f32
    %136 = vector.broadcast %cst_64 : f32 to vector<6x1xf32>
    %137 = arith.divf %135, %136 : vector<6x1xf32>
    %138 = vector.broadcast %130 : vector<6x1xf32> to vector<6x32xf32>
    %139 = arith.subf %126, %138 : vector<6x32xf32>
    %cst_65 = arith.constant 9.99999974E-6 : f32
    %140 = vector.broadcast %cst_65 : f32 to vector<6x1xf32>
    %141 = arith.addf %137, %140 : vector<6x1xf32>
    %142 = math.rsqrt %141 : vector<6x1xf32>
    %143 = vector.broadcast %142 : vector<6x1xf32> to vector<6x32xf32>
    %144 = arith.mulf %139, %143 : vector<6x32xf32>
    %c0_66 = arith.constant 0 : index
    %c0_67 = arith.constant 0 : index
    %c0_68 = arith.constant 0 : index
    %145 = vector.load %arg13[%c0_66, %c0_67, %c0_68] : memref<2x1x32xf32, #tpu.memory_space<vmem>>, vector<1x1x32xf32>
    %146 = vector.shape_cast %145 : vector<1x1x32xf32> to vector<1x32xf32>
    %147 = vector.broadcast %146 : vector<1x32xf32> to vector<6x32xf32>
    %148 = arith.mulf %144, %147 : vector<6x32xf32>
    %c0_69 = arith.constant 0 : index
    %c0_70 = arith.constant 0 : index
    %c0_71 = arith.constant 0 : index
    %149 = vector.load %arg14[%c0_69, %c0_70, %c0_71] : memref<2x1x32xf32, #tpu.memory_space<vmem>>, vector<1x1x32xf32>
    %150 = vector.shape_cast %149 : vector<1x1x32xf32> to vector<1x32xf32>
    %151 = vector.broadcast %150 : vector<1x32xf32> to vector<6x32xf32>
    %152 = arith.addf %148, %151 : vector<6x32xf32>
    %c1 = arith.constant 1 : index
    %c0_72 = arith.constant 0 : index
    %c0_73 = arith.constant 0 : index
    %153 = vector.load %arg5[%c1, %c0_72, %c0_73] : memref<2x32x96xf32, #tpu.memory_space<vmem>>, vector<1x32x96xf32>
    %154 = vector.shape_cast %153 : vector<1x32x96xf32> to vector<32x96xf32>
    %cst_74 = arith.constant dense<0.000000e+00> : vector<6x96xf32>
    %155 = tpu.matmul %152, %154, %cst_74 {dimension_numbers = #tpu.dot_dimension_numbers<[1], [0], [0], [1], [0, 0, 1, 1], [], []>} : vector<6x32xf32>, vector<32x96xf32>, vector<6x96xf32> -> vector<6x96xf32>
    %c1_75 = arith.constant 1 : index
    %c0_76 = arith.constant 0 : index
    %c0_77 = arith.constant 0 : index
    %156 = vector.load %arg6[%c1_75, %c0_76, %c0_77] : memref<2x1x96xf32, #tpu.memory_space<vmem>>, vector<1x1x96xf32>
    %157 = vector.shape_cast %156 : vector<1x1x96xf32> to vector<1x96xf32>
    %158 = vector.broadcast %157 : vector<1x96xf32> to vector<6x96xf32>
    %159 = arith.addf %155, %158 : vector<6x96xf32>
    %160 = vector.extract_strided_slice %159 {offsets = [0, 0], sizes = [6, 32], strides = [1, 1]} : vector<6x96xf32> to vector<6x32xf32>
    %cst_78 = arith.constant 0.353553385 : f32
    %161 = vector.broadcast %cst_78 : f32 to vector<6x32xf32>
    %162 = arith.mulf %160, %161 : vector<6x32xf32>
    %163 = vector.extract_strided_slice %159 {offsets = [0, 32], sizes = [6, 32], strides = [1, 1]} : vector<6x96xf32> to vector<6x32xf32>
    %164 = vector.extract_strided_slice %159 {offsets = [0, 64], sizes = [6, 32], strides = [1, 1]} : vector<6x96xf32> to vector<6x32xf32>
    %cst_79 = arith.constant 0.000000e+00 : f32
    %165 = vector.broadcast %cst_79 : f32 to vector<6x32xf32>
    %166 = vector.extract_strided_slice %11 {offsets = [0, 0], sizes = [1, 32], strides = [1, 1]} : vector<4x32xf32> to vector<1x32xf32>
    %167 = vector.broadcast %166 : vector<1x32xf32> to vector<6x32xf32>
    %168 = arith.mulf %162, %167 : vector<6x32xf32>
    %cst_80 = arith.constant dense<0.000000e+00> : vector<6x6xf32>
    %169 = tpu.matmul %168, %163, %cst_80 {dimension_numbers = #tpu.dot_dimension_numbers<[1], [1], [0], [0], [0, 0, 1, 0], [], []>} : vector<6x32xf32>, vector<6x32xf32>, vector<6x6xf32> -> vector<6x6xf32>
    %cst_81 = arith.constant dense<0xFF800000> : vector<6xf32>
    %170 = vector.multi_reduction <maximumf>, %169, %cst_81 [1] : vector<6x6xf32> to vector<6xf32>
    %171 = vector.shape_cast %170 : vector<6xf32> to vector<6x1xf32>
    %172 = vector.broadcast %171 : vector<6x1xf32> to vector<6x6xf32>
    %173 = arith.subf %169, %172 : vector<6x6xf32>
    %174 = math.exp %173 : vector<6x6xf32>
    %cst_82 = arith.constant dense<0.000000e+00> : vector<6xf32>
    %175 = vector.multi_reduction <add>, %174, %cst_82 [1] : vector<6x6xf32> to vector<6xf32>
    %176 = vector.shape_cast %175 : vector<6xf32> to vector<6x1xf32>
    %177 = tpu.reciprocal %176 {approx = true} : vector<6x1xf32> -> vector<6x1xf32>
    %178 = vector.broadcast %177 : vector<6x1xf32> to vector<6x6xf32>
    %179 = arith.mulf %174, %178 : vector<6x6xf32>
    %180 = vector.broadcast %166 : vector<1x32xf32> to vector<6x32xf32>
    %181 = arith.mulf %164, %180 : vector<6x32xf32>
    %cst_83 = arith.constant dense<0.000000e+00> : vector<6x32xf32>
    %182 = tpu.matmul %179, %181, %cst_83 {dimension_numbers = #tpu.dot_dimension_numbers<[1], [0], [0], [1], [0, 0, 1, 1], [], []>} : vector<6x6xf32>, vector<6x32xf32>, vector<6x32xf32> -> vector<6x32xf32>
    %183 = arith.addf %165, %182 : vector<6x32xf32>
    %184 = vector.extract_strided_slice %11 {offsets = [1, 0], sizes = [1, 32], strides = [1, 1]} : vector<4x32xf32> to vector<1x32xf32>
    %185 = vector.broadcast %184 : vector<1x32xf32> to vector<6x32xf32>
    %186 = arith.mulf %162, %185 : vector<6x32xf32>
    %cst_84 = arith.constant dense<0.000000e+00> : vector<6x6xf32>
    %187 = tpu.matmul %186, %163, %cst_84 {dimension_numbers = #tpu.dot_dimension_numbers<[1], [1], [0], [0], [0, 0, 1, 0], [], []>} : vector<6x32xf32>, vector<6x32xf32>, vector<6x6xf32> -> vector<6x6xf32>
    %cst_85 = arith.constant dense<0xFF800000> : vector<6xf32>
    %188 = vector.multi_reduction <maximumf>, %187, %cst_85 [1] : vector<6x6xf32> to vector<6xf32>
    %189 = vector.shape_cast %188 : vector<6xf32> to vector<6x1xf32>
    %190 = vector.broadcast %189 : vector<6x1xf32> to vector<6x6xf32>
    %191 = arith.subf %187, %190 : vector<6x6xf32>
    %192 = math.exp %191 : vector<6x6xf32>
    %cst_86 = arith.constant dense<0.000000e+00> : vector<6xf32>
    %193 = vector.multi_reduction <add>, %192, %cst_86 [1] : vector<6x6xf32> to vector<6xf32>
    %194 = vector.shape_cast %193 : vector<6xf32> to vector<6x1xf32>
    %195 = tpu.reciprocal %194 {approx = true} : vector<6x1xf32> -> vector<6x1xf32>
    %196 = vector.broadcast %195 : vector<6x1xf32> to vector<6x6xf32>
    %197 = arith.mulf %192, %196 : vector<6x6xf32>
    %198 = vector.broadcast %184 : vector<1x32xf32> to vector<6x32xf32>
    %199 = arith.mulf %164, %198 : vector<6x32xf32>
    %cst_87 = arith.constant dense<0.000000e+00> : vector<6x32xf32>
    %200 = tpu.matmul %197, %199, %cst_87 {dimension_numbers = #tpu.dot_dimension_numbers<[1], [0], [0], [1], [0, 0, 1, 1], [], []>} : vector<6x6xf32>, vector<6x32xf32>, vector<6x32xf32> -> vector<6x32xf32>
    %201 = arith.addf %183, %200 : vector<6x32xf32>
    %202 = vector.extract_strided_slice %11 {offsets = [2, 0], sizes = [1, 32], strides = [1, 1]} : vector<4x32xf32> to vector<1x32xf32>
    %203 = vector.broadcast %202 : vector<1x32xf32> to vector<6x32xf32>
    %204 = arith.mulf %162, %203 : vector<6x32xf32>
    %cst_88 = arith.constant dense<0.000000e+00> : vector<6x6xf32>
    %205 = tpu.matmul %204, %163, %cst_88 {dimension_numbers = #tpu.dot_dimension_numbers<[1], [1], [0], [0], [0, 0, 1, 0], [], []>} : vector<6x32xf32>, vector<6x32xf32>, vector<6x6xf32> -> vector<6x6xf32>
    %cst_89 = arith.constant dense<0xFF800000> : vector<6xf32>
    %206 = vector.multi_reduction <maximumf>, %205, %cst_89 [1] : vector<6x6xf32> to vector<6xf32>
    %207 = vector.shape_cast %206 : vector<6xf32> to vector<6x1xf32>
    %208 = vector.broadcast %207 : vector<6x1xf32> to vector<6x6xf32>
    %209 = arith.subf %205, %208 : vector<6x6xf32>
    %210 = math.exp %209 : vector<6x6xf32>
    %cst_90 = arith.constant dense<0.000000e+00> : vector<6xf32>
    %211 = vector.multi_reduction <add>, %210, %cst_90 [1] : vector<6x6xf32> to vector<6xf32>
    %212 = vector.shape_cast %211 : vector<6xf32> to vector<6x1xf32>
    %213 = tpu.reciprocal %212 {approx = true} : vector<6x1xf32> -> vector<6x1xf32>
    %214 = vector.broadcast %213 : vector<6x1xf32> to vector<6x6xf32>
    %215 = arith.mulf %210, %214 : vector<6x6xf32>
    %216 = vector.broadcast %202 : vector<1x32xf32> to vector<6x32xf32>
    %217 = arith.mulf %164, %216 : vector<6x32xf32>
    %cst_91 = arith.constant dense<0.000000e+00> : vector<6x32xf32>
    %218 = tpu.matmul %215, %217, %cst_91 {dimension_numbers = #tpu.dot_dimension_numbers<[1], [0], [0], [1], [0, 0, 1, 1], [], []>} : vector<6x6xf32>, vector<6x32xf32>, vector<6x32xf32> -> vector<6x32xf32>
    %219 = arith.addf %201, %218 : vector<6x32xf32>
    %220 = vector.extract_strided_slice %11 {offsets = [3, 0], sizes = [1, 32], strides = [1, 1]} : vector<4x32xf32> to vector<1x32xf32>
    %221 = vector.broadcast %220 : vector<1x32xf32> to vector<6x32xf32>
    %222 = arith.mulf %162, %221 : vector<6x32xf32>
    %cst_92 = arith.constant dense<0.000000e+00> : vector<6x6xf32>
    %223 = tpu.matmul %222, %163, %cst_92 {dimension_numbers = #tpu.dot_dimension_numbers<[1], [1], [0], [0], [0, 0, 1, 0], [], []>} : vector<6x32xf32>, vector<6x32xf32>, vector<6x6xf32> -> vector<6x6xf32>
    %cst_93 = arith.constant dense<0xFF800000> : vector<6xf32>
    %224 = vector.multi_reduction <maximumf>, %223, %cst_93 [1] : vector<6x6xf32> to vector<6xf32>
    %225 = vector.shape_cast %224 : vector<6xf32> to vector<6x1xf32>
    %226 = vector.broadcast %225 : vector<6x1xf32> to vector<6x6xf32>
    %227 = arith.subf %223, %226 : vector<6x6xf32>
    %228 = math.exp %227 : vector<6x6xf32>
    %cst_94 = arith.constant dense<0.000000e+00> : vector<6xf32>
    %229 = vector.multi_reduction <add>, %228, %cst_94 [1] : vector<6x6xf32> to vector<6xf32>
    %230 = vector.shape_cast %229 : vector<6xf32> to vector<6x1xf32>
    %231 = tpu.reciprocal %230 {approx = true} : vector<6x1xf32> -> vector<6x1xf32>
    %232 = vector.broadcast %231 : vector<6x1xf32> to vector<6x6xf32>
    %233 = arith.mulf %228, %232 : vector<6x6xf32>
    %234 = vector.broadcast %220 : vector<1x32xf32> to vector<6x32xf32>
    %235 = arith.mulf %164, %234 : vector<6x32xf32>
    %cst_95 = arith.constant dense<0.000000e+00> : vector<6x32xf32>
    %236 = tpu.matmul %233, %235, %cst_95 {dimension_numbers = #tpu.dot_dimension_numbers<[1], [0], [0], [1], [0, 0, 1, 1], [], []>} : vector<6x6xf32>, vector<6x32xf32>, vector<6x32xf32> -> vector<6x32xf32>
    %237 = arith.addf %219, %236 : vector<6x32xf32>
    %c1_96 = arith.constant 1 : index
    %c0_97 = arith.constant 0 : index
    %c0_98 = arith.constant 0 : index
    %238 = vector.load %arg7[%c1_96, %c0_97, %c0_98] : memref<2x32x32xf32, #tpu.memory_space<vmem>>, vector<1x32x32xf32>
    %239 = vector.shape_cast %238 : vector<1x32x32xf32> to vector<32x32xf32>
    %cst_99 = arith.constant dense<0.000000e+00> : vector<6x32xf32>
    %240 = tpu.matmul %237, %239, %cst_99 {dimension_numbers = #tpu.dot_dimension_numbers<[1], [0], [0], [1], [0, 0, 1, 1], [], []>} : vector<6x32xf32>, vector<32x32xf32>, vector<6x32xf32> -> vector<6x32xf32>
    %c1_100 = arith.constant 1 : index
    %c0_101 = arith.constant 0 : index
    %c0_102 = arith.constant 0 : index
    %241 = vector.load %arg8[%c1_100, %c0_101, %c0_102] : memref<2x1x32xf32, #tpu.memory_space<vmem>>, vector<1x1x32xf32>
    %242 = vector.shape_cast %241 : vector<1x1x32xf32> to vector<1x32xf32>
    %243 = vector.broadcast %242 : vector<1x32xf32> to vector<6x32xf32>
    %244 = arith.addf %240, %243 : vector<6x32xf32>
    %c1_103 = arith.constant 1 : index
    %c0_104 = arith.constant 0 : index
    %c0_105 = arith.constant 0 : index
    %245 = vector.load %arg9[%c1_103, %c0_104, %c0_105] : memref<2x32x32xf32, #tpu.memory_space<vmem>>, vector<1x32x32xf32>
    %246 = vector.shape_cast %245 : vector<1x32x32xf32> to vector<32x32xf32>
    %cst_106 = arith.constant dense<0.000000e+00> : vector<6x32xf32>
    %247 = tpu.matmul %244, %246, %cst_106 {dimension_numbers = #tpu.dot_dimension_numbers<[1], [0], [0], [1], [0, 0, 1, 1], [], []>} : vector<6x32xf32>, vector<32x32xf32>, vector<6x32xf32> -> vector<6x32xf32>
    %c1_107 = arith.constant 1 : index
    %c0_108 = arith.constant 0 : index
    %c0_109 = arith.constant 0 : index
    %248 = vector.load %arg10[%c1_107, %c0_108, %c0_109] : memref<2x1x32xf32, #tpu.memory_space<vmem>>, vector<1x1x32xf32>
    %249 = vector.shape_cast %248 : vector<1x1x32xf32> to vector<1x32xf32>
    %250 = vector.broadcast %249 : vector<1x32xf32> to vector<6x32xf32>
    %251 = arith.addf %247, %250 : vector<6x32xf32>
    %cst_110 = arith.constant 0.000000e+00 : f32
    %252 = vector.broadcast %cst_110 : f32 to vector<6x32xf32>
    %253 = arith.cmpf ogt, %251, %252 : vector<6x32xf32>
    %cst_111 = arith.constant 0.000000e+00 : f32
    %254 = vector.broadcast %cst_111 : f32 to vector<6x32xf32>
    %255 = arith.minimumf %251, %254 : vector<6x32xf32>
    %256 = math.exp %255 : vector<6x32xf32>
    %cst_112 = arith.constant 1.000000e+00 : f32
    %257 = vector.broadcast %cst_112 : f32 to vector<6x32xf32>
    %258 = arith.subf %256, %257 : vector<6x32xf32>
    %259 = arith.select %253, %251, %258 : vector<6x32xi1>, vector<6x32xf32>
    %c1_113 = arith.constant 1 : index
    %c0_114 = arith.constant 0 : index
    %c0_115 = arith.constant 0 : index
    %260 = vector.load %arg11[%c1_113, %c0_114, %c0_115] : memref<2x32x32xf32, #tpu.memory_space<vmem>>, vector<1x32x32xf32>
    %261 = vector.shape_cast %260 : vector<1x32x32xf32> to vector<32x32xf32>
    %cst_116 = arith.constant dense<0.000000e+00> : vector<6x32xf32>
    %262 = tpu.matmul %259, %261, %cst_116 {dimension_numbers = #tpu.dot_dimension_numbers<[1], [0], [0], [1], [0, 0, 1, 1], [], []>} : vector<6x32xf32>, vector<32x32xf32>, vector<6x32xf32> -> vector<6x32xf32>
    %c1_117 = arith.constant 1 : index
    %c0_118 = arith.constant 0 : index
    %c0_119 = arith.constant 0 : index
    %263 = vector.load %arg12[%c1_117, %c0_118, %c0_119] : memref<2x1x32xf32, #tpu.memory_space<vmem>>, vector<1x1x32xf32>
    %264 = vector.shape_cast %263 : vector<1x1x32xf32> to vector<1x32xf32>
    %265 = vector.broadcast %264 : vector<1x32xf32> to vector<6x32xf32>
    %266 = arith.addf %262, %265 : vector<6x32xf32>
    %267 = arith.addf %266, %152 : vector<6x32xf32>
    %cst_120 = arith.constant dense<0.000000e+00> : vector<6xf32>
    %268 = vector.multi_reduction <add>, %267, %cst_120 [1] : vector<6x32xf32> to vector<6xf32>
    %269 = vector.shape_cast %268 : vector<6xf32> to vector<6x1xf32>
    %cst_121 = arith.constant 3.200000e+01 : f32
    %270 = vector.broadcast %cst_121 : f32 to vector<6x1xf32>
    %271 = arith.divf %269, %270 : vector<6x1xf32>
    %272 = vector.broadcast %271 : vector<6x1xf32> to vector<6x32xf32>
    %273 = arith.subf %267, %272 : vector<6x32xf32>
    %274 = arith.mulf %273, %273 : vector<6x32xf32>
    %cst_122 = arith.constant dense<0.000000e+00> : vector<6xf32>
    %275 = vector.multi_reduction <add>, %274, %cst_122 [1] : vector<6x32xf32> to vector<6xf32>
    %276 = vector.shape_cast %275 : vector<6xf32> to vector<6x1xf32>
    %cst_123 = arith.constant 3.200000e+01 : f32
    %277 = vector.broadcast %cst_123 : f32 to vector<6x1xf32>
    %278 = arith.divf %276, %277 : vector<6x1xf32>
    %279 = vector.broadcast %271 : vector<6x1xf32> to vector<6x32xf32>
    %280 = arith.subf %267, %279 : vector<6x32xf32>
    %cst_124 = arith.constant 9.99999974E-6 : f32
    %281 = vector.broadcast %cst_124 : f32 to vector<6x1xf32>
    %282 = arith.addf %278, %281 : vector<6x1xf32>
    %283 = math.rsqrt %282 : vector<6x1xf32>
    %284 = vector.broadcast %283 : vector<6x1xf32> to vector<6x32xf32>
    %285 = arith.mulf %280, %284 : vector<6x32xf32>
    %c1_125 = arith.constant 1 : index
    %c0_126 = arith.constant 0 : index
    %c0_127 = arith.constant 0 : index
    %286 = vector.load %arg13[%c1_125, %c0_126, %c0_127] : memref<2x1x32xf32, #tpu.memory_space<vmem>>, vector<1x1x32xf32>
    %287 = vector.shape_cast %286 : vector<1x1x32xf32> to vector<1x32xf32>
    %288 = vector.broadcast %287 : vector<1x32xf32> to vector<6x32xf32>
    %289 = arith.mulf %285, %288 : vector<6x32xf32>
    %c1_128 = arith.constant 1 : index
    %c0_129 = arith.constant 0 : index
    %c0_130 = arith.constant 0 : index
    %290 = vector.load %arg14[%c1_128, %c0_129, %c0_130] : memref<2x1x32xf32, #tpu.memory_space<vmem>>, vector<1x1x32xf32>
    %291 = vector.shape_cast %290 : vector<1x1x32xf32> to vector<1x32xf32>
    %292 = vector.broadcast %291 : vector<1x32xf32> to vector<6x32xf32>
    %293 = arith.addf %289, %292 : vector<6x32xf32>
    %c0_131 = arith.constant 0 : index
    %c0_132 = arith.constant 0 : index
    %294 = vector.load %arg15[%c0_131, %c0_132] : memref<32x32xf32, #tpu.memory_space<vmem>>, vector<32x32xf32>
    %cst_133 = arith.constant dense<0.000000e+00> : vector<6x32xf32>
    %295 = tpu.matmul %293, %294, %cst_133 {dimension_numbers = #tpu.dot_dimension_numbers<[1], [0], [0], [1], [0, 0, 1, 1], [], []>} : vector<6x32xf32>, vector<32x32xf32>, vector<6x32xf32> -> vector<6x32xf32>
    %c0_134 = arith.constant 0 : index
    %c0_135 = arith.constant 0 : index
    %296 = vector.load %arg16[%c0_134, %c0_135] : memref<1x32xf32, #tpu.memory_space<vmem>>, vector<1x32xf32>
    %297 = vector.broadcast %296 : vector<1x32xf32> to vector<6x32xf32>
    %298 = arith.addf %295, %297 : vector<6x32xf32>
    %c0_136 = arith.constant 0 : index
    %c0_137 = arith.constant 0 : index
    %299 = vector.load %arg17[%c0_136, %c0_137] : memref<6x6xf32, #tpu.memory_space<vmem>>, vector<6x6xf32>
    %cst_138 = arith.constant dense<0.000000e+00> : vector<6x32xf32>
    %300 = tpu.matmul %299, %298, %cst_138 {dimension_numbers = #tpu.dot_dimension_numbers<[1], [0], [0], [1], [0, 0, 1, 1], [], []>} : vector<6x6xf32>, vector<6x32xf32>, vector<6x32xf32> -> vector<6x32xf32>
    %301 = vector.extract_strided_slice %300 {offsets = [0, 0], sizes = [3, 32], strides = [1, 1]} : vector<6x32xf32> to vector<3x32xf32>
    %302 = vector.extract_strided_slice %300 {offsets = [3, 0], sizes = [3, 32], strides = [1, 1]} : vector<6x32xf32> to vector<3x32xf32>
    %cst_139 = arith.constant dense<0.000000e+00> : vector<3x3xf32>
    %303 = tpu.matmul %301, %302, %cst_139 {dimension_numbers = #tpu.dot_dimension_numbers<[1], [1], [0], [0], [0, 0, 1, 0], [], []>} : vector<3x32xf32>, vector<3x32xf32>, vector<3x3xf32> -> vector<3x3xf32>
    %c0_140 = arith.constant 0 : index
    %c0_141 = arith.constant 0 : index
    %304 = vector.load %arg19[%c0_140, %c0_141] : memref<3x3xf32, #tpu.memory_space<vmem>>, vector<3x3xf32>
    %cst_142 = arith.constant dense<0.000000e+00> : vector<3x3xf32>
    %305 = tpu.matmul %303, %304, %cst_142 {dimension_numbers = #tpu.dot_dimension_numbers<[1], [0], [0], [1], [0, 0, 1, 1], [], []>} : vector<3x3xf32>, vector<3x3xf32>, vector<3x3xf32> -> vector<3x3xf32>
    %cst_143 = arith.constant 0.333333343 : f32
    %306 = vector.broadcast %cst_143 : f32 to vector<3x3xf32>
    %307 = arith.mulf %305, %306 : vector<3x3xf32>
    %c0_144 = arith.constant 0 : index
    %c0_145 = arith.constant 0 : index
    %c0_146 = arith.constant 0 : index
    %308 = vector.load %arg20[%c0_144, %c0_145, %c0_146] : memref<1x3x3xf32, #tpu.memory_space<vmem>>, vector<1x3x3xf32>
    %309 = vector.shape_cast %308 : vector<1x3x3xf32> to vector<3x3xf32>
    %310 = vector.shape_cast %307 : vector<3x3xf32> to vector<1x3x3xf32>
    tpu.vector_store %arg20[%c0_144, %c0_145, %c0_146], %310 {strides = array<i32>} : memref<1x3x3xf32, #tpu.memory_space<vmem>>, vector<1x3x3xf32>,
    return
  }
  func.func @transform_0(%arg0: i32) -> (i32, i32, i32) {
    %c0_i32 = arith.constant 0 : i32
    %c0_i32_0 = arith.constant 0 : i32
    %c0_i32_1 = arith.constant 0 : i32
    return %arg0, %c0_i32, %c0_i32_0 : i32, i32, i32
  }
  func.func @transform_1(%arg0: i32) -> (i32, i32) {
    %c0_i32 = arith.constant 0 : i32
    %c0_i32_0 = arith.constant 0 : i32
    %c0_i32_1 = arith.constant 0 : i32
    return %c0_i32, %c0_i32_0 : i32, i32
  }
  func.func @transform_2(%arg0: i32) -> (i32, i32) {
    %c0_i32 = arith.constant 0 : i32
    %c0_i32_0 = arith.constant 0 : i32
    %c0_i32_1 = arith.constant 0 : i32
    return %c0_i32, %c0_i32_0 : i32, i32
  }
  func.func @transform_3(%arg0: i32) -> (i32, i32) {
    %c0_i32 = arith.constant 0 : i32
    %c0_i32_0 = arith.constant 0 : i32
    %c0_i32_1 = arith.constant 0 : i32
    return %c0_i32, %c0_i32_0 : i32, i32
  }
  func.func @transform_4(%arg0: i32) -> (i32, i32, i32) {
    %c0_i32 = arith.constant 0 : i32
    %c0_i32_0 = arith.constant 0 : i32
    %c0_i32_1 = arith.constant 0 : i32
    %c0_i32_2 = arith.constant 0 : i32
    return %c0_i32, %c0_i32_0, %c0_i32_1 : i32, i32, i32
  }
  func.func @transform_5(%arg0: i32) -> (i32, i32, i32) {
    %c0_i32 = arith.constant 0 : i32
    %c0_i32_0 = arith.constant 0 : i32
    %c0_i32_1 = arith.constant 0 : i32
    %c0_i32_2 = arith.constant 0 : i32
    return %c0_i32, %c0_i32_0, %c0_i32_1 : i32, i32, i32
  }
  func.func @transform_6(%arg0: i32) -> (i32, i32, i32) {
    %c0_i32 = arith.constant 0 : i32
    %c0_i32_0 = arith.constant 0 : i32
    %c0_i32_1 = arith.constant 0 : i32
    %c0_i32_2 = arith.constant 0 : i32
    return %c0_i32, %c0_i32_0, %c0_i32_1 : i32, i32, i32
  }
  func.func @transform_7(%arg0: i32) -> (i32, i32, i32) {
    %c0_i32 = arith.constant 0 : i32
    %c0_i32_0 = arith.constant 0 : i32
    %c0_i32_1 = arith.constant 0 : i32
    %c0_i32_2 = arith.constant 0 : i32
    return %c0_i32, %c0_i32_0, %c0_i32_1 : i32, i32, i32
  }
  func.func @transform_8(%arg0: i32) -> (i32, i32, i32) {
    %c0_i32 = arith.constant 0 : i32
    %c0_i32_0 = arith.constant 0 : i32
    %c0_i32_1 = arith.constant 0 : i32
    %c0_i32_2 = arith.constant 0 : i32
    return %c0_i32, %c0_i32_0, %c0_i32_1 : i32, i32, i32
  }
  func.func @transform_9(%arg0: i32) -> (i32, i32, i32) {
    %c0_i32 = arith.constant 0 : i32
    %c0_i32_0 = arith.constant 0 : i32
    %c0_i32_1 = arith.constant 0 : i32
    %c0_i32_2 = arith.constant 0 : i32
    return %c0_i32, %c0_i32_0, %c0_i32_1 : i32, i32, i32
  }
  func.func @transform_10(%arg0: i32) -> (i32, i32, i32) {
    %c0_i32 = arith.constant 0 : i32
    %c0_i32_0 = arith.constant 0 : i32
    %c0_i32_1 = arith.constant 0 : i32
    %c0_i32_2 = arith.constant 0 : i32
    return %c0_i32, %c0_i32_0, %c0_i32_1 : i32, i32, i32
  }
  func.func @transform_11(%arg0: i32) -> (i32, i32, i32) {
    %c0_i32 = arith.constant 0 : i32
    %c0_i32_0 = arith.constant 0 : i32
    %c0_i32_1 = arith.constant 0 : i32
    %c0_i32_2 = arith.constant 0 : i32
    return %c0_i32, %c0_i32_0, %c0_i32_1 : i32, i32, i32
  }
  func.func @transform_12(%arg0: i32) -> (i32, i32, i32) {
    %c0_i32 = arith.constant 0 : i32
    %c0_i32_0 = arith.constant 0 : i32
    %c0_i32_1 = arith.constant 0 : i32
    %c0_i32_2 = arith.constant 0 : i32
    return %c0_i32, %c0_i32_0, %c0_i32_1 : i32, i32, i32
  }
  func.func @transform_13(%arg0: i32) -> (i32, i32, i32) {
    %c0_i32 = arith.constant 0 : i32
    %c0_i32_0 = arith.constant 0 : i32
    %c0_i32_1 = arith.constant 0 : i32
    %c0_i32_2 = arith.constant 0 : i32
    return %c0_i32, %c0_i32_0, %c0_i32_1 : i32, i32, i32
  }
  func.func @transform_14(%arg0: i32) -> (i32, i32) {
    %c0_i32 = arith.constant 0 : i32
    %c0_i32_0 = arith.constant 0 : i32
    %c0_i32_1 = arith.constant 0 : i32
    return %c0_i32, %c0_i32_0 : i32, i32
  }
  func.func @transform_15(%arg0: i32) -> (i32, i32) {
    %c0_i32 = arith.constant 0 : i32
    %c0_i32_0 = arith.constant 0 : i32
    %c0_i32_1 = arith.constant 0 : i32
    return %c0_i32, %c0_i32_0 : i32, i32
  }
  func.func @transform_16(%arg0: i32) -> (i32, i32) {
    %c0_i32 = arith.constant 0 : i32
    %c0_i32_0 = arith.constant 0 : i32
    %c0_i32_1 = arith.constant 0 : i32
    return %c0_i32, %c0_i32_0 : i32, i32
  }
  func.func @transform_17(%arg0: i32) -> (i32, i32) {
    %c0_i32 = arith.constant 0 : i32
    %c0_i32_0 = arith.constant 0 : i32
    %c0_i32_1 = arith.constant 0 : i32
    return %c0_i32, %c0_i32_0 : i32, i32
  }
  func.func @transform_18(%arg0: i32) -> (i32, i32) {
    %c0_i32 = arith.constant 0 : i32
    %c0_i32_0 = arith.constant 0 : i32
    %c0_i32_1 = arith.constant 0 : i32
    return %c0_i32, %c0_i32_0 : i32, i32
  }
  func.func @transform_19(%arg0: i32) -> (i32, i32, i32) {
    %c0_i32 = arith.constant 0 : i32
    %c0_i32_0 = arith.constant 0 : i32
    %c0_i32_1 = arith.constant 0 : i32
    return %arg0, %c0_i32, %c0_i32_0 : i32, i32, i32
  }
}

</mosaic_0001>

<llo_original>
// kernel: tpu_custom_call.1
$region0: #{tpu_custom_call.1}
  #allocation0 [shape = 'u32[]', space=smem, size = 0x4, offset = 0x4, fixed_abs, tag = 'smem constant byte address 0x4 - core index']
  #allocation1 [shape = 'u32[144,128]{1,0:T(1,128)}', space=vmem, size = 0x12000, scoped, tag = 'internal scratch']
  %s0 = inlined_call_operand.vmem [shape: f32[2,384,32], index: 0, kind: input, shape index: {}]
  %s1 = inlined_call_operand.vmem [shape: f32[6,384], index: 1, kind: input, shape index: {}]
  %s2 = inlined_call_operand.vmem [shape: f32[32,32], index: 2, kind: input, shape index: {}]
  %s3 = inlined_call_operand.vmem [shape: f32[1,32], index: 3, kind: input, shape index: {}]
  %s4 = inlined_call_operand.vmem [shape: f32[2,32,96], index: 4, kind: input, shape index: {}]
  %s5 = inlined_call_operand.vmem [shape: f32[2,1,96], index: 5, kind: input, shape index: {}]
  %s6 = inlined_call_operand.vmem [shape: f32[2,32,32], index: 6, kind: input, shape index: {}]
  %s7 = inlined_call_operand.vmem [shape: f32[2,1,32], index: 7, kind: input, shape index: {}]
  %s8 = inlined_call_operand.vmem [shape: f32[2,32,32], index: 8, kind: input, shape index: {}]
  %s9 = inlined_call_operand.vmem [shape: f32[2,1,32], index: 9, kind: input, shape index: {}]
  %s10 = inlined_call_operand.vmem [shape: f32[2,32,32], index: 10, kind: input, shape index: {}]
  %s11 = inlined_call_operand.vmem [shape: f32[2,1,32], index: 11, kind: input, shape index: {}]
  %s12 = inlined_call_operand.vmem [shape: f32[2,1,32], index: 12, kind: input, shape index: {}]
  %s13 = inlined_call_operand.vmem [shape: f32[2,1,32], index: 13, kind: input, shape index: {}]
  %s14 = inlined_call_operand.vmem [shape: f32[32,32], index: 14, kind: input, shape index: {}]
  %s15 = inlined_call_operand.vmem [shape: f32[1,32], index: 15, kind: input, shape index: {}]
  %s16 = inlined_call_operand.vmem [shape: f32[6,6], index: 16, kind: input, shape index: {}]
  %s17 = inlined_call_operand.vmem [shape: f32[4,32], index: 17, kind: input, shape index: {}]
  %s18 = inlined_call_operand.vmem [shape: f32[3,3], index: 18, kind: input, shape index: {}]
  %s19 = inlined_call_operand.vmem [shape: f32[2,3,3], index: 19, kind: output, shape index: {}]
  %s20 = sld [smem:[#allocation0]]
  $region109: #{tpu_custom_call.1} parent=0
    _
  %s22 = ssub.s32 1, %s20
  %s23 = scalar_select 0, %s22, %s20
  loop: start=0, step=1, limit=4
  $region2: #{tpu_custom_call.1} parent=0 // loop_pre_header
    _
  $region3: #{tpu_custom_call.1} parent=0 // loop_header
    %s25 = sphi 0, %s29
    %p26 = scmp.ge.s32.totalorder %s25, 4
    %s35 = sphi 0, %s37
    %s38 = sphi 0, %s35
    %s39 = sphi 0, %s38
    %s55 = sphi 0, %s39
    %s59 = sphi 0, %s59
    %s61 = sphi 0, %s59
    %s62 = sphi 0, %s61
    %s76 = sphi 0, %s62
    %s80 = sphi 0, %s80
    %s82 = sphi 0, %s80
    %s83 = sphi 0, %s82
    %s97 = sphi 0, %s83
    %s101 = sphi 0, %s101
    %s103 = sphi 0, %s101
    %s104 = sphi 0, %s103
    %s118 = sphi 0, %s104
    %s122 = sphi 0, %s122
    %s124 = sphi 0, %s122
    %s125 = sphi 0, %s124
    %s139 = sphi 0, %s125
    %s143 = sphi 0, %s143
    %s145 = sphi 0, %s143
    %s146 = sphi 0, %s145
    %s160 = sphi 0, %s146
    %s164 = sphi 0, %s164
    %s166 = sphi 0, %s164
    %s167 = sphi 0, %s166
    %s181 = sphi 0, %s167
    %s185 = sphi 0, %s185
    %s187 = sphi 0, %s185
    %s188 = sphi 0, %s187
    %s202 = sphi 0, %s188
    %s206 = sphi 0, %s206
    %s208 = sphi 0, %s206
    %s209 = sphi 0, %s208
    %s223 = sphi 0, %s209
    %s227 = sphi 0, %s227
    %s229 = sphi 0, %s227
    %s230 = sphi 0, %s229
    %s244 = sphi 0, %s230
    %s248 = sphi 0, %s248
    %s250 = sphi 0, %s248
    %s251 = sphi 0, %s250
    %s265 = sphi 0, %s251
    %s269 = sphi 0, %s269
    %s271 = sphi 0, %s269
    %s272 = sphi 0, %s271
    %s286 = sphi 0, %s272
    %s290 = sphi 0, %s290
    %s292 = sphi 0, %s290
    %s293 = sphi 0, %s292
    %s307 = sphi 0, %s293
    %s311 = sphi 0, %s311
    %s313 = sphi 0, %s311
    %s314 = sphi 0, %s313
    %s328 = sphi 0, %s314
    %s332 = sphi 0, %s332
    %s334 = sphi 0, %s332
    %s335 = sphi 0, %s334
    %s349 = sphi 0, %s335
    %s353 = sphi 0, %s353
    %s355 = sphi 0, %s353
    %s356 = sphi 0, %s355
    %s370 = sphi 0, %s356
    %s374 = sphi 0, %s374
    %s376 = sphi 0, %s374
    %s377 = sphi 0, %s376
    %s391 = sphi 0, %s377
    %s395 = sphi 0, %s395
    %s397 = sphi 0, %s395
    %s398 = sphi 0, %s397
    %s412 = sphi 0, %s398
    %s416 = sphi 0, %s416
    %s418 = sphi 0, %s416
    %s419 = sphi 0, %s418
    %s433 = sphi 0, %s419
    %s439 = sphi 0, %s441
    %s442 = sphi 0, %s439
    %s443 = sphi 0, %s442
    %s459 = sphi 0, %s443
  $region4: #{tpu_custom_call.1} parent=0 // loop_header_branch
    %28 = sbr.rel (%p26) target = $region8
  $region5: #{tpu_custom_call.1} parent=0 // loop_body
    %s30 = ssub.s32 %s25, 1
    %s31 = ssub.s32 %s25, 2
    %s32 = sadd.s32 %s25, 1
    %s33 = ssub.s32 %s25, %s32
    %p34 = scmp.eq.s32.totalorder %s33, 0
    %s36 = sadd.s32 %s35, 1
    %s37 = scalar_select %p34, %s35, %s36
    %p40 = pneg %p34
    %p41 = scmp.eq.s32.totalorder %s25, 1
    %p42 = por %p40, %p41
    %p43 = scmp.ne.s32.totalorder %s35, %s38
    %p44 = scmp.eq.s32.totalorder %s25, 0
    %p45 = por %p43, %p44
    %p46 = scmp.ne.s32.totalorder %s35, %s38
    %p47 = scmp.eq.s32.totalorder %s30, 1
    %p48 = por %p46, %p47
    %p49 = scmp.ne.s32.totalorder %s38, %s39
    %p50 = scmp.eq.s32.totalorder %s30, 0
    %p51 = por %p49, %p50
    %p52 = scmp.ne.s32.totalorder %s38, %s39
    %p53 = scmp.eq.s32.totalorder %s31, 1
    %p54 = por %p52, %p53
    %p56 = scmp.ne.s32.totalorder %s39, %s55
    %p57 = scmp.eq.s32.totalorder %s31, 0
    %p58 = por %p56, %p57
    %s60 = sadd.s32 %s59, 1
    %p63 = scmp.eq.s32.totalorder %s25, 1
    %p64 = scmp.ne.s32.totalorder %s59, %s61
    %p65 = scmp.eq.s32.totalorder %s25, 0
    %p66 = por %p64, %p65
    %p67 = scmp.ne.s32.totalorder %s59, %s61
    %p68 = scmp.eq.s32.totalorder %s30, 1
    %p69 = por %p67, %p68
    %p70 = scmp.ne.s32.totalorder %s61, %s62
    %p71 = scmp.eq.s32.totalorder %s30, 0
    %p72 = por %p70, %p71
    %p73 = scmp.ne.s32.totalorder %s61, %s62
    %p74 = scmp.eq.s32.totalorder %s31, 1
    %p75 = por %p73, %p74
    %p77 = scmp.ne.s32.totalorder %s62, %s76
    %p78 = scmp.eq.s32.totalorder %s31, 0
    %p79 = por %p77, %p78
    %s81 = sadd.s32 %s80, 1
    %p84 = scmp.eq.s32.totalorder %s25, 1
    %p85 = scmp.ne.s32.totalorder %s80, %s82
    %p86 = scmp.eq.s32.totalorder %s25, 0
    %p87 = por %p85, %p86
    %p88 = scmp.ne.s32.totalorder %s80, %s82
    %p89 = scmp.eq.s32.totalorder %s30, 1
    %p90 = por %p88, %p89
    %p91 = scmp.ne.s32.totalorder %s82, %s83
    %p92 = scmp.eq.s32.totalorder %s30, 0
    %p93 = por %p91, %p92
    %p94 = scmp.ne.s32.totalorder %s82, %s83
    %p95 = scmp.eq.s32.totalorder %s31, 1
    %p96 = por %p94, %p95
    %p98 = scmp.ne.s32.totalorder %s83, %s97
    %p99 = scmp.eq.s32.totalorder %s31, 0
    %p100 = por %p98, %p99
    %s102 = sadd.s32 %s101, 1
    %p105 = scmp.eq.s32.totalorder %s25, 1
    %p106 = scmp.ne.s32.totalorder %s101, %s103
    %p107 = scmp.eq.s32.totalorder %s25, 0
    %p108 = por %p106, %p107
    %p109 = scmp.ne.s32.totalorder %s101, %s103
    %p110 = scmp.eq.s32.totalorder %s30, 1
    %p111 = por %p109, %p110
    %p112 = scmp.ne.s32.totalorder %s103, %s104
    %p113 = scmp.eq.s32.totalorder %s30, 0
    %p114 = por %p112, %p113
    %p115 = scmp.ne.s32.totalorder %s103, %s104
    %p116 = scmp.eq.s32.totalorder %s31, 1
    %p117 = por %p115, %p116
    %p119 = scmp.ne.s32.totalorder %s104, %s118
    %p120 = scmp.eq.s32.totalorder %s31, 0
    %p121 = por %p119, %p120
    %s123 = sadd.s32 %s122, 1
    %p126 = scmp.eq.s32.totalorder %s25, 1
    %p127 = scmp.ne.s32.totalorder %s122, %s124
    %p128 = scmp.eq.s32.totalorder %s25, 0
    %p129 = por %p127, %p128
    %p130 = scmp.ne.s32.totalorder %s122, %s124
    %p131 = scmp.eq.s32.totalorder %s30, 1
    %p132 = por %p130, %p131
    %p133 = scmp.ne.s32.totalorder %s124, %s125
    %p134 = scmp.eq.s32.totalorder %s30, 0
    %p135 = por %p133, %p134
    %p136 = scmp.ne.s32.totalorder %s124, %s125
    %p137 = scmp.eq.s32.totalorder %s31, 1
    %p138 = por %p136, %p137
    %p140 = scmp.ne.s32.totalorder %s125, %s139
    %p141 = scmp.eq.s32.totalorder %s31, 0
    %p142 = por %p140, %p141
    %s144 = sadd.s32 %s143, 1
    %p147 = scmp.eq.s32.totalorder %s25, 1
    %p148 = scmp.ne.s32.totalorder %s143, %s145
    %p149 = scmp.eq.s32.totalorder %s25, 0
    %p150 = por %p148, %p149
    %p151 = scmp.ne.s32.totalorder %s143, %s145
    %p152 = scmp.eq.s32.totalorder %s30, 1
    %p153 = por %p151, %p152
    %p154 = scmp.ne.s32.totalorder %s145, %s146
    %p155 = scmp.eq.s32.totalorder %s30, 0
    %p156 = por %p154, %p155
    %p157 = scmp.ne.s32.totalorder %s145, %s146
    %p158 = scmp.eq.s32.totalorder %s31, 1
    %p159 = por %p157, %p158
    %p161 = scmp.ne.s32.totalorder %s146, %s160
    %p162 = scmp.eq.s32.totalorder %s31, 0
    %p163 = por %p161, %p162
    %s165 = sadd.s32 %s164, 1
    %p168 = scmp.eq.s32.totalorder %s25, 1
    %p169 = scmp.ne.s32.totalorder %s164, %s166
    %p170 = scmp.eq.s32.totalorder %s25, 0
    %p171 = por %p169, %p170
    %p172 = scmp.ne.s32.totalorder %s164, %s166
    %p173 = scmp.eq.s32.totalorder %s30, 1
    %p174 = por %p172, %p173
    %p175 = scmp.ne.s32.totalorder %s166, %s167
    %p176 = scmp.eq.s32.totalorder %s30, 0
    %p177 = por %p175, %p176
    %p178 = scmp.ne.s32.totalorder %s166, %s167
    %p179 = scmp.eq.s32.totalorder %s31, 1
    %p180 = por %p178, %p179
    %p182 = scmp.ne.s32.totalorder %s167, %s181
    %p183 = scmp.eq.s32.totalorder %s31, 0
    %p184 = por %p182, %p183
    %s186 = sadd.s32 %s185, 1
    %p189 = scmp.eq.s32.totalorder %s25, 1
    %p190 = scmp.ne.s32.totalorder %s185, %s187
    %p191 = scmp.eq.s32.totalorder %s25, 0
    %p192 = por %p190, %p191
    %p193 = scmp.ne.s32.totalorder %s185, %s187
    %p194 = scmp.eq.s32.totalorder %s30, 1
    %p195 = por %p193, %p194
    %p196 = scmp.ne.s32.totalorder %s187, %s188
    %p197 = scmp.eq.s32.totalorder %s30, 0
    %p198 = por %p196, %p197
    %p199 = scmp.ne.s32.totalorder %s187, %s188
    %p200 = scmp.eq.s32.totalorder %s31, 1
    %p201 = por %p199, %p200
    %p203 = scmp.ne.s32.totalorder %s188, %s202
    %p204 = scmp.eq.s32.totalorder %s31, 0
    %p205 = por %p203, %p204
    %s207 = sadd.s32 %s206, 1
    %p210 = scmp.eq.s32.totalorder %s25, 1
    %p211 = scmp.ne.s32.totalorder %s206, %s208
    %p212 = scmp.eq.s32.totalorder %s25, 0
    %p213 = por %p211, %p212
    %p214 = scmp.ne.s32.totalorder %s206, %s208
    %p215 = scmp.eq.s32.totalorder %s30, 1
    %p216 = por %p214, %p215
    %p217 = scmp.ne.s32.totalorder %s208, %s209
    %p218 = scmp.eq.s32.totalorder %s30, 0
    %p219 = por %p217, %p218
    %p220 = scmp.ne.s32.totalorder %s208, %s209
    %p221 = scmp.eq.s32.totalorder %s31, 1
    %p222 = por %p220, %p221
    %p224 = scmp.ne.s32.totalorder %s209, %s223
    %p225 = scmp.eq.s32.totalorder %s31, 0
    %p226 = por %p224, %p225
    %s228 = sadd.s32 %s227, 1
    %p231 = scmp.eq.s32.totalorder %s25, 1
    %p232 = scmp.ne.s32.totalorder %s227, %s229
    %p233 = scmp.eq.s32.totalorder %s25, 0
    %p234 = por %p232, %p233
    %p235 = scmp.ne.s32.totalorder %s227, %s229
    %p236 = scmp.eq.s32.totalorder %s30, 1
    %p237 = por %p235, %p236
    %p238 = scmp.ne.s32.totalorder %s229, %s230
    %p239 = scmp.eq.s32.totalorder %s30, 0
    %p240 = por %p238, %p239
    %p241 = scmp.ne.s32.totalorder %s229, %s230
    %p242 = scmp.eq.s32.totalorder %s31, 1
    %p243 = por %p241, %p242
    %p245 = scmp.ne.s32.totalorder %s230, %s244
    %p246 = scmp.eq.s32.totalorder %s31, 0
    %p247 = por %p245, %p246
    %s249 = sadd.s32 %s248, 1
    %p252 = scmp.eq.s32.totalorder %s25, 1
    %p253 = scmp.ne.s32.totalorder %s248, %s250
    %p254 = scmp.eq.s32.totalorder %s25, 0
    %p255 = por %p253, %p254
    %p256 = scmp.ne.s32.totalorder %s248, %s250
    %p257 = scmp.eq.s32.totalorder %s30, 1
    %p258 = por %p256, %p257
    %p259 = scmp.ne.s32.totalorder %s250, %s251
    %p260 = scmp.eq.s32.totalorder %s30, 0
    %p261 = por %p259, %p260
    %p262 = scmp.ne.s32.totalorder %s250, %s251
    %p263 = scmp.eq.s32.totalorder %s31, 1
    %p264 = por %p262, %p263
    %p266 = scmp.ne.s32.totalorder %s251, %s265
    %p267 = scmp.eq.s32.totalorder %s31, 0
    %p268 = por %p266, %p267
    %s270 = sadd.s32 %s269, 1
    %p273 = scmp.eq.s32.totalorder %s25, 1
    %p274 = scmp.ne.s32.totalorder %s269, %s271
    %p275 = scmp.eq.s32.totalorder %s25, 0
    %p276 = por %p274, %p275
    %p277 = scmp.ne.s32.totalorder %s269, %s271
    %p278 = scmp.eq.s32.totalorder %s30, 1
    %p279 = por %p277, %p278
    %p280 = scmp.ne.s32.totalorder %s271, %s272
    %p281 = scmp.eq.s32.totalorder %s30, 0
    %p282 = por %p280, %p281
    %p283 = scmp.ne.s32.totalorder %s271, %s272
    %p284 = scmp.eq.s32.totalorder %s31, 1
    %p285 = por %p283, %p284
    %p287 = scmp.ne.s32.totalorder %s272, %s286
    %p288 = scmp.eq.s32.totalorder %s31, 0
    %p289 = por %p287, %p288
    %s291 = sadd.s32 %s290, 1
    %p294 = scmp.eq.s32.totalorder %s25, 1
    %p295 = scmp.ne.s32.totalorder %s290, %s292
    %p296 = scmp.eq.s32.totalorder %s25, 0
    %p297 = por %p295, %p296
    %p298 = scmp.ne.s32.totalorder %s290, %s292
    %p299 = scmp.eq.s32.totalorder %s30, 1
    %p300 = por %p298, %p299
    %p301 = scmp.ne.s32.totalorder %s292, %s293
    %p302 = scmp.eq.s32.totalorder %s30, 0
    %p303 = por %p301, %p302
    %p304 = scmp.ne.s32.totalorder %s292, %s293
    %p305 = scmp.eq.s32.totalorder %s31, 1
    %p306 = por %p304, %p305
    %p308 = scmp.ne.s32.totalorder %s293, %s307
    %p309 = scmp.eq.s32.totalorder %s31, 0
    %p310 = por %p308, %p309
    %s312 = sadd.s32 %s311, 1
    %p315 = scmp.eq.s32.totalorder %s25, 1
    %p316 = scmp.ne.s32.totalorder %s311, %s313
    %p317 = scmp.eq.s32.totalorder %s25, 0
    %p318 = por %p316, %p317
    %p319 = scmp.ne.s32.totalorder %s311, %s313
    %p320 = scmp.eq.s32.totalorder %s30, 1
    %p321 = por %p319, %p320
    %p322 = scmp.ne.s32.totalorder %s313, %s314
    %p323 = scmp.eq.s32.totalorder %s30, 0
    %p324 = por %p322, %p323
    %p325 = scmp.ne.s32.totalorder %s313, %s314
    %p326 = scmp.eq.s32.totalorder %s31, 1
    %p327 = por %p325, %p326
    %p329 = scmp.ne.s32.totalorder %s314, %s328
    %p330 = scmp.eq.s32.totalorder %s31, 0
    %p331 = por %p329, %p330
    %s333 = sadd.s32 %s332, 1
    %p336 = scmp.eq.s32.totalorder %s25, 1
    %p337 = scmp.ne.s32.totalorder %s332, %s334
    %p338 = scmp.eq.s32.totalorder %s25, 0
    %p339 = por %p337, %p338
    %p340 = scmp.ne.s32.totalorder %s332, %s334
    %p341 = scmp.eq.s32.totalorder %s30, 1
    %p342 = por %p340, %p341
    %p343 = scmp.ne.s32.totalorder %s334, %s335
    %p344 = scmp.eq.s32.totalorder %s30, 0
    %p345 = por %p343, %p344
    %p346 = scmp.ne.s32.totalorder %s334, %s335
    %p347 = scmp.eq.s32.totalorder %s31, 1
    %p348 = por %p346, %p347
    %p350 = scmp.ne.s32.totalorder %s335, %s349
    %p351 = scmp.eq.s32.totalorder %s31, 0
    %p352 = por %p350, %p351
    %s354 = sadd.s32 %s353, 1
    %p357 = scmp.eq.s32.totalorder %s25, 1
    %p358 = scmp.ne.s32.totalorder %s353, %s355
    %p359 = scmp.eq.s32.totalorder %s25, 0
    %p360 = por %p358, %p359
    %p361 = scmp.ne.s32.totalorder %s353, %s355
    %p362 = scmp.eq.s32.totalorder %s30, 1
    %p363 = por %p361, %p362
    %p364 = scmp.ne.s32.totalorder %s355, %s356
    %p365 = scmp.eq.s32.totalorder %s30, 0
    %p366 = por %p364, %p365
    %p367 = scmp.ne.s32.totalorder %s355, %s356
    %p368 = scmp.eq.s32.totalorder %s31, 1
    %p369 = por %p367, %p368
    %p371 = scmp.ne.s32.totalorder %s356, %s370
    %p372 = scmp.eq.s32.totalorder %s31, 0
    %p373 = por %p371, %p372
    %s375 = sadd.s32 %s374, 1
    %p378 = scmp.eq.s32.totalorder %s25, 1
    %p379 = scmp.ne.s32.totalorder %s374, %s376
    %p380 = scmp.eq.s32.totalorder %s25, 0
    %p381 = por %p379, %p380
    %p382 = scmp.ne.s32.totalorder %s374, %s376
    %p383 = scmp.eq.s32.totalorder %s30, 1
    %p384 = por %p382, %p383
    %p385 = scmp.ne.s32.totalorder %s376, %s377
    %p386 = scmp.eq.s32.totalorder %s30, 0
    %p387 = por %p385, %p386
    %p388 = scmp.ne.s32.totalorder %s376, %s377
    %p389 = scmp.eq.s32.totalorder %s31, 1
    %p390 = por %p388, %p389
    %p392 = scmp.ne.s32.totalorder %s377, %s391
    %p393 = scmp.eq.s32.totalorder %s31, 0
    %p394 = por %p392, %p393
    %s396 = sadd.s32 %s395, 1
    %p399 = scmp.eq.s32.totalorder %s25, 1
    %p400 = scmp.ne.s32.totalorder %s395, %s397
    %p401 = scmp.eq.s32.totalorder %s25, 0
    %p402 = por %p400, %p401
    %p403 = scmp.ne.s32.totalorder %s395, %s397
    %p404 = scmp.eq.s32.totalorder %s30, 1
    %p405 = por %p403, %p404
    %p406 = scmp.ne.s32.totalorder %s397, %s398
    %p407 = scmp.eq.s32.totalorder %s30, 0
    %p408 = por %p406, %p407
    %p409 = scmp.ne.s32.totalorder %s397, %s398
    %p410 = scmp.eq.s32.totalorder %s31, 1
    %p411 = por %p409, %p410
    %p413 = scmp.ne.s32.totalorder %s398, %s412
    %p414 = scmp.eq.s32.totalorder %s31, 0
    %p415 = por %p413, %p414
    %s417 = sadd.s32 %s416, 1
    %p420 = scmp.eq.s32.totalorder %s25, 1
    %p421 = scmp.ne.s32.totalorder %s416, %s418
    %p422 = scmp.eq.s32.totalorder %s25, 0
    %p423 = por %p421, %p422
    %p424 = scmp.ne.s32.totalorder %s416, %s418
    %p425 = scmp.eq.s32.totalorder %s30, 1
    %p426 = por %p424, %p425
    %p427 = scmp.ne.s32.totalorder %s418, %s419
    %p428 = scmp.eq.s32.totalorder %s30, 0
    %p429 = por %p427, %p428
    %p430 = scmp.ne.s32.totalorder %s418, %s419
    %p431 = scmp.eq.s32.totalorder %s31, 1
    %p432 = por %p430, %p431
    %p434 = scmp.ne.s32.totalorder %s419, %s433
    %p435 = scmp.eq.s32.totalorder %s31, 0
    %p436 = por %p434, %p435
    %s437 = ssub.s32 %s25, %s32
    %p438 = scmp.eq.s32.totalorder %s437, 0
    %s440 = sadd.s32 %s439, 1
    %s441 = scalar_select %p438, %s439, %s440
    %p444 = pneg %p438
    %p445 = scmp.eq.s32.totalorder %s25, 1
    %p446 = por %p444, %p445
    %p447 = scmp.ne.s32.totalorder %s439, %s442
    %p448 = scmp.eq.s32.totalorder %s25, 0
    %p449 = por %p447, %p448
    %p450 = scmp.ne.s32.totalorder %s439, %s442
    %p451 = scmp.eq.s32.totalorder %s30, 1
    %p452 = por %p450, %p451
    %p453 = scmp.ne.s32.totalorder %s442, %s443
    %p454 = scmp.eq.s32.totalorder %s30, 0
    %p455 = por %p453, %p454
    %p456 = scmp.ne.s32.totalorder %s442, %s443
    %p457 = scmp.eq.s32.totalorder %s31, 1
    %p458 = por %p456, %p457
    %p460 = scmp.ne.s32.totalorder %s443, %s459
    %p461 = scmp.eq.s32.totalorder %s31, 0
    %p462 = por %p460, %p461
    %p463 = scmp.le.s32.totalorder 1, %s25
    %p464 = scmp.lt.s32.totalorder %s25, 3
    %p465 = pnand %p463, %p464
    %p466 = pneg %p465
    // Predicated region
    $region9: #{tpu_custom_call.1} parent=5 // pred_check
      _
    $region10: #{tpu_custom_call.1} parent=5 // pred_check_branch
      %468 = sbr.rel (%p465) target = $region12
    $region11: #{tpu_custom_call.1} parent=5 // pred_region
      %s469 = ssub.s32 %s25, 1
      // Predicated region
      $region13: #{tpu_custom_call.1} parent=11 // pred_check
        %p470 = pneg %p72
      $region14: #{tpu_custom_call.1} parent=11 // pred_check_branch
        %472 = sbr.rel (%p470) target = $region16
      $region15: #{tpu_custom_call.1} parent=11 // pred_region
        _
      $region16: #{tpu_custom_call.1} parent=11 // pred_fallthru
        _
      // Predicated region
      $region17: #{tpu_custom_call.1} parent=11 // pred_check
        %p473 = pneg %p93
      $region18: #{tpu_custom_call.1} parent=11 // pred_check_branch
        %475 = sbr.rel (%p473) target = $region20
      $region19: #{tpu_custom_call.1} parent=11 // pred_region
        _
      $region20: #{tpu_custom_call.1} parent=11 // pred_fallthru
        _
      // Predicated region
      $region21: #{tpu_custom_call.1} parent=11 // pred_check
        %p476 = pneg %p114
      $region22: #{tpu_custom_call.1} parent=11 // pred_check_branch
        %478 = sbr.rel (%p476) target = $region24
      $region23: #{tpu_custom_call.1} parent=11 // pred_region
        _
      $region24: #{tpu_custom_call.1} parent=11 // pred_fallthru
        _
      // Predicated region
      $region25: #{tpu_custom_call.1} parent=11 // pred_check
        %p479 = pneg %p135
      $region26: #{tpu_custom_call.1} parent=11 // pred_check_branch
        %481 = sbr.rel (%p479) target = $region28
      $region27: #{tpu_custom_call.1} parent=11 // pred_region
        _
      $region28: #{tpu_custom_call.1} parent=11 // pred_fallthru
        _
      // Predicated region
      $region29: #{tpu_custom_call.1} parent=11 // pred_check
        %p482 = pneg %p156
      $region30: #{tpu_custom_call.1} parent=11 // pred_check_branch
        %484 = sbr.rel (%p482) target = $region32
      $region31: #{tpu_custom_call.1} parent=11 // pred_region
        _
      $region32: #{tpu_custom_call.1} parent=11 // pred_fallthru
        _
      // Predicated region
      $region33: #{tpu_custom_call.1} parent=11 // pred_check
        %p485 = pneg %p177
      $region34: #{tpu_custom_call.1} parent=11 // pred_check_branch
        %487 = sbr.rel (%p485) target = $region36
      $region35: #{tpu_custom_call.1} parent=11 // pred_region
        _
      $region36: #{tpu_custom_call.1} parent=11 // pred_fallthru
        _
      // Predicated region
      $region37: #{tpu_custom_call.1} parent=11 // pred_check
        %p488 = pneg %p198
      $region38: #{tpu_custom_call.1} parent=11 // pred_check_branch
        %490 = sbr.rel (%p488) target = $region40
      $region39: #{tpu_custom_call.1} parent=11 // pred_region
        _
      $region40: #{tpu_custom_call.1} parent=11 // pred_fallthru
        _
      // Predicated region
      $region41: #{tpu_custom_call.1} parent=11 // pred_check
        %p491 = pneg %p219
      $region42: #{tpu_custom_call.1} parent=11 // pred_check_branch
        %493 = sbr.rel (%p491) target = $region44
      $region43: #{tpu_custom_call.1} parent=11 // pred_region
        _
      $region44: #{tpu_custom_call.1} parent=11 // pred_fallthru
        _
      // Predicated region
      $region45: #{tpu_custom_call.1} parent=11 // pred_check
        %p494 = pneg %p240
      $region46: #{tpu_custom_call.1} parent=11 // pred_check_branch
        %496 = sbr.rel (%p494) target = $region48
      $region47: #{tpu_custom_call.1} parent=11 // pred_region
        _
      $region48: #{tpu_custom_call.1} parent=11 // pred_fallthru
        _
      // Predicated region
      $region49: #{tpu_custom_call.1} parent=11 // pred_check
        %p497 = pneg %p261
      $region50: #{tpu_custom_call.1} parent=11 // pred_check_branch
        %499 = sbr.rel (%p497) target = $region52
      $region51: #{tpu_custom_call.1} parent=11 // pred_region
        _
      $region52: #{tpu_custom_call.1} parent=11 // pred_fallthru
        _
      // Predicated region
      $region53: #{tpu_custom_call.1} parent=11 // pred_check
        %p500 = pneg %p282
      $region54: #{tpu_custom_call.1} parent=11 // pred_check_branch
        %502 = sbr.rel (%p500) target = $region56
      $region55: #{tpu_custom_call.1} parent=11 // pred_region
        _
      $region56: #{tpu_custom_call.1} parent=11 // pred_fallthru
        _
      // Predicated region
      $region57: #{tpu_custom_call.1} parent=11 // pred_check
        %p503 = pneg %p303
      $region58: #{tpu_custom_call.1} parent=11 // pred_check_branch
        %505 = sbr.rel (%p503) target = $region60
      $region59: #{tpu_custom_call.1} parent=11 // pred_region
        _
      $region60: #{tpu_custom_call.1} parent=11 // pred_fallthru
        _
      // Predicated region
      $region61: #{tpu_custom_call.1} parent=11 // pred_check
        %p506 = pneg %p324
      $region62: #{tpu_custom_call.1} parent=11 // pred_check_branch
        %508 = sbr.rel (%p506) target = $region64
      $region63: #{tpu_custom_call.1} parent=11 // pred_region
        _
      $region64: #{tpu_custom_call.1} parent=11 // pred_fallthru
        _
      // Predicated region
      $region65: #{tpu_custom_call.1} parent=11 // pred_check
        %p509 = pneg %p345
      $region66: #{tpu_custom_call.1} parent=11 // pred_check_branch
        %511 = sbr.rel (%p509) target = $region68
      $region67: #{tpu_custom_call.1} parent=11 // pred_region
        _
      $region68: #{tpu_custom_call.1} parent=11 // pred_fallthru
        _
      // Predicated region
      $region69: #{tpu_custom_call.1} parent=11 // pred_check
        %p512 = pneg %p366
      $region70: #{tpu_custom_call.1} parent=11 // pred_check_branch
        %514 = sbr.rel (%p512) target = $region72
      $region71: #{tpu_custom_call.1} parent=11 // pred_region
        _
      $region72: #{tpu_custom_call.1} parent=11 // pred_fallthru
        _
      // Predicated region
      $region73: #{tpu_custom_call.1} parent=11 // pred_check
        %p515 = pneg %p387
      $region74: #{tpu_custom_call.1} parent=11 // pred_check_branch
        %517 = sbr.rel (%p515) target = $region76
      $region75: #{tpu_custom_call.1} parent=11 // pred_region
        _
      $region76: #{tpu_custom_call.1} parent=11 // pred_fallthru
        _
      // Predicated region
      $region77: #{tpu_custom_call.1} parent=11 // pred_check
        %p518 = pneg %p408
      $region78: #{tpu_custom_call.1} parent=11 // pred_check_branch
        %520 = sbr.rel (%p518) target = $region80
      $region79: #{tpu_custom_call.1} parent=11 // pred_region
        _
      $region80: #{tpu_custom_call.1} parent=11 // pred_fallthru
        _
      // Predicated region
      $region81: #{tpu_custom_call.1} parent=11 // pred_check
        %p521 = pneg %p429
      $region82: #{tpu_custom_call.1} parent=11 // pred_check_branch
        %523 = sbr.rel (%p521) target = $region84
      $region83: #{tpu_custom_call.1} parent=11 // pred_region
        _
      $region84: #{tpu_custom_call.1} parent=11 // pred_fallthru
        _
    $region12: #{tpu_custom_call.1} parent=5 // pred_fallthru
      _
    %p524 = scmp.lt.s32.totalorder %s25, 2
    // Predicated region
    $region85: #{tpu_custom_call.1} parent=5 // pred_check
      %p525 = pneg %p524
    $region86: #{tpu_custom_call.1} parent=5 // pred_check_branch
      %527 = sbr.rel (%p525) target = $region88
    $region87: #{tpu_custom_call.1} parent=5 // pred_region
      // Predicated region
      $region89: #{tpu_custom_call.1} parent=87 // pred_check
        %p528 = pneg %p45
      $region90: #{tpu_custom_call.1} parent=87 // pred_check_branch
        %530 = sbr.rel (%p528) target = $region92
      $region91: #{tpu_custom_call.1} parent=87 // pred_region
        %p531 = scmp.lt.s32.totalorder %s25, 1
        %s532 = scalar_select %p531, %s25, 1
        %s533 = smul.addr %s532, 48
        %s534 = smul.addr %s533, 8
        %s535 = scalar_lea.vmem %s0, %s534
      $region92: #{tpu_custom_call.1} parent=87 // pred_fallthru
        _
    $region88: #{tpu_custom_call.1} parent=5 // pred_fallthru
      _
    %p536 = scmp.le.s32.totalorder 1, %s25
    %p537 = scmp.lt.s32.totalorder %s25, 3
    %p538 = pnand %p536, %p537
    %p539 = pneg %p538
    // Predicated region
    $region93: #{tpu_custom_call.1} parent=5 // pred_check
      _
    $region94: #{tpu_custom_call.1} parent=5 // pred_check_branch
      %541 = sbr.rel (%p538) target = $region96
    $region95: #{tpu_custom_call.1} parent=5 // pred_region
      %s542 = ssub.s32 %s25, 1
      %p543 = scmp.lt.s32.totalorder %s30, 1
      %s544 = scalar_select %p543, %s30, 1
      %s545 = smul.addr %s544, 48
      %s546 = smul.addr %s545, 8
      %s547 = scalar_lea.vmem %s0, %s546
      %p548 = pneg %p51
      %p549 = pneg %p48
      %p550 = pneg %p72
      %p551 = pneg %p69
      %p552 = pneg %p93
      %p553 = pneg %p90
      %p554 = pneg %p114
      %p555 = pneg %p111
      %p556 = pneg %p135
      %p557 = pneg %p132
      %p558 = pneg %p156
      %p559 = pneg %p153
      %p560 = pneg %p177
      %p561 = pneg %p174
      %p562 = pneg %p198
      %p563 = pneg %p195
      %p564 = pneg %p219
      %p565 = pneg %p216
      %p566 = pneg %p240
      %p567 = pneg %p237
      %p568 = pneg %p261
      %p569 = pneg %p258
      %p570 = pneg %p282
      %p571 = pneg %p279
      %p572 = pneg %p303
      %p573 = pneg %p300
      %p574 = pneg %p324
      %p575 = pneg %p321
      %p576 = pneg %p345
      %p577 = pneg %p342
      %p578 = pneg %p366
      %p579 = pneg %p363
      %p580 = pneg %p387
      %p581 = pneg %p384
      %p582 = pneg %p408
      %p583 = pneg %p405
      %p584 = pneg %p429
      %p585 = pneg %p426
      %p586 = pneg %p455
      %p587 = pneg %p452
      %p588 = scmp.lt.s32.totalorder %s30, 1
      %s589 = scalar_select %p588, %s30, 1
      %s590 = smul.addr %s589, 4
      %s591 = scalar_lea.vmem %s19, %s590
      %p592 = scmp.lt.s32.totalorder %s30, 1
      %s593 = scalar_select %p592, %s30, 1
      %s594 = smul.addr %s593, 48
      %s595 = smul.addr %s594, 8
      %s596 = scalar_lea.vmem %s0, %s595
      %p597 = scmp.lt.s32.totalorder %s30, 1
      %s598 = scalar_select %p597, %s30, 1
      %s599 = smul.addr %s598, 4
      %s600 = scalar_lea.vmem %s19, %s599
      %v601 = vld [vmem:[%s596] sm:$0xff]
      %v602 = vld [vmem:[%s596 + $0x8] sm:$0xff]
      %v603 = vld [vmem:[%s596 + $0x10] sm:$0xff]
      %v604 = vld [vmem:[%s596 + $0x18] sm:$0xff]
      %v605 = vld [vmem:[%s596 + $0x20] sm:$0xff]
      %v606 = vld [vmem:[%s596 + $0x28] sm:$0xff]
      %v607 = vld [vmem:[%s596 + $0x30] sm:$0xff]
      %v608 = vld [vmem:[%s596 + $0x38] sm:$0xff]
      %v609 = vld [vmem:[%s596 + $0x40] sm:$0xff]
      %v610 = vld [vmem:[%s596 + $0x48] sm:$0xff]
      %v611 = vld [vmem:[%s596 + $0x50] sm:$0xff]
      %v612 = vld [vmem:[%s596 + $0x58] sm:$0xff]
      %v613 = vld [vmem:[%s596 + $0x60] sm:$0xff]
      %v614 = vld [vmem:[%s596 + $0x68] sm:$0xff]
      %v615 = vld [vmem:[%s596 + $0x70] sm:$0xff]
      %v616 = vld [vmem:[%s596 + $0x78] sm:$0xff]
      %v617 = vld [vmem:[%s596 + $0x80] sm:$0xff]
      %v618 = vld [vmem:[%s596 + $0x88] sm:$0xff]
      %v619 = vld [vmem:[%s596 + $0x90] sm:$0xff]
      %v620 = vld [vmem:[%s596 + $0x98] sm:$0xff]
      %v621 = vld [vmem:[%s596 + $0xa0] sm:$0xff]
      %v622 = vld [vmem:[%s596 + $0xa8] sm:$0xff]
      %v623 = vld [vmem:[%s596 + $0xb0] sm:$0xff]
      %v624 = vld [vmem:[%s596 + $0xb8] sm:$0xff]
      %v625 = vld [vmem:[%s596 + $0xc0] sm:$0xff]
      %v626 = vld [vmem:[%s596 + $0xc8] sm:$0xff]
      %v627 = vld [vmem:[%s596 + $0xd0] sm:$0xff]
      %v628 = vld [vmem:[%s596 + $0xd8] sm:$0xff]
      %v629 = vld [vmem:[%s596 + $0xe0] sm:$0xff]
      %v630 = vld [vmem:[%s596 + $0xe8] sm:$0xff]
      %v631 = vld [vmem:[%s596 + $0xf0] sm:$0xff]
      %v632 = vld [vmem:[%s596 + $0xf8] sm:$0xff]
      %v633 = vld [vmem:[%s596 + $0x100] sm:$0xff]
      %v634 = vld [vmem:[%s596 + $0x108] sm:$0xff]
      %v635 = vld [vmem:[%s596 + $0x110] sm:$0xff]
      %v636 = vld [vmem:[%s596 + $0x118] sm:$0xff]
      %v637 = vld [vmem:[%s596 + $0x120] sm:$0xff]
      %v638 = vld [vmem:[%s596 + $0x128] sm:$0xff]
      %v639 = vld [vmem:[%s596 + $0x130] sm:$0xff]
      %v640 = vld [vmem:[%s596 + $0x138] sm:$0xff]
      %v641 = vld [vmem:[%s596 + $0x140] sm:$0xff]
      %v642 = vld [vmem:[%s596 + $0x148] sm:$0xff]
      %v643 = vld [vmem:[%s596 + $0x150] sm:$0xff]
      %v644 = vld [vmem:[%s596 + $0x158] sm:$0xff]
      %v645 = vld [vmem:[%s596 + $0x160] sm:$0xff]
      %v646 = vld [vmem:[%s596 + $0x168] sm:$0xff]
      %v647 = vld [vmem:[%s596 + $0x170] sm:$0xff]
      %v648 = vld [vmem:[%s596 + $0x178] sm:$0xff]
      %v649 = vld [vmem:[%s2] sm:$0xff]
      %v650 = vld [vmem:[%s2 + $0x8] sm:$0xff]
      %v651 = vld [vmem:[%s2 + $0x10] sm:$0xff]
      %v652 = vld [vmem:[%s2 + $0x18] sm:$0xff]
      %v653 = vld [vmem:[%s3] sm:$0x1]
      %v655 = vlaneseq
      %v656 = vshrl.u32 %v655, 7
      %v657 = vsub.s32 0, %v656
      %v658 = vrot.slane %v653, %v657
      %vm660 = vcmask 261120
      %v662 = vsel %vm660, %v601, 0
      %v665 = vsel %vm660, %v602, 0
      %v668 = vsel %vm660, %v603, 0
      %v671 = vsel %vm660, %v604, 0
      %v674 = vsel %vm660, %v605, 0
      %v677 = vsel %vm660, %v606, 0
      %v680 = vsel %vm660, %v607, 0
      %v683 = vsel %vm660, %v608, 0
      %v686 = vsel %vm660, %v609, 0
      %v689 = vsel %vm660, %v610, 0
      %v692 = vsel %vm660, %v611, 0
      %v695 = vsel %vm660, %v612, 0
      %v698 = vsel %vm660, %v613, 0
      %v701 = vsel %vm660, %v614, 0
      %v704 = vsel %vm660, %v615, 0
      %v707 = vsel %vm660, %v616, 0
      %v710 = vsel %vm660, %v617, 0
      %v713 = vsel %vm660, %v618, 0
      %v716 = vsel %vm660, %v619, 0
      %v719 = vsel %vm660, %v620, 0
      %v722 = vsel %vm660, %v621, 0
      %v725 = vsel %vm660, %v622, 0
      %v728 = vsel %vm660, %v623, 0
      %v731 = vsel %vm660, %v624, 0
      %v734 = vsel %vm660, %v625, 0
      %v737 = vsel %vm660, %v626, 0
      %v740 = vsel %vm660, %v627, 0
      %v743 = vsel %vm660, %v628, 0
      %v746 = vsel %vm660, %v629, 0
      %v749 = vsel %vm660, %v630, 0
      %v752 = vsel %vm660, %v631, 0
      %v755 = vsel %vm660, %v632, 0
      %v758 = vsel %vm660, %v633, 0
      %v761 = vsel %vm660, %v634, 0
      %v764 = vsel %vm660, %v635, 0
      %v767 = vsel %vm660, %v636, 0
      %v770 = vsel %vm660, %v637, 0
      %v773 = vsel %vm660, %v638, 0
      %v776 = vsel %vm660, %v639, 0
      %v779 = vsel %vm660, %v640, 0
      %v782 = vsel %vm660, %v641, 0
      %v785 = vsel %vm660, %v642, 0
      %v788 = vsel %vm660, %v643, 0
      %v791 = vsel %vm660, %v644, 0
      %v794 = vsel %vm660, %v645, 0
      %v797 = vsel %vm660, %v646, 0
      %v800 = vsel %vm660, %v647, 0
      %v803 = vsel %vm660, %v648, 0
      %805 = vmatprep.subr.mxu0 0.0
      %806 = vmatpush1.msra.mxu0 0.0
      %807 = vmatprep.subr.mxu0 0.0
      %808 = vmatpush1.msra.mxu0 0.0
      %809 = vmatprep.subr.mxu0 0.0
      %810 = vmatpush1.msra.mxu0 0.0
      %811 = vmatprep.subr.mxu0 0.0
      %812 = vmatpush1.msra.mxu0 0.0
      %813 = vmatprep.subr.mxu0 0.0
      %814 = vmatpush1.msra.mxu0 0.0
      %815 = vmatprep.subr.mxu0 0.0
      %816 = vmatpush1.msra.mxu0 0.0
      %817 = vmatprep.subr.mxu0 0.0
      %818 = vmatpush1.msra.mxu0 0.0
      %819 = vmatprep.subr.mxu0 0.0
      %820 = vmatpush1.msra.mxu0 0.0
      %821 = vmatprep.subr.mxu0 0.0
      %822 = vmatpush1.msra.mxu0 0.0
      %823 = vmatprep.subr.mxu0 0.0
      %824 = vmatpush1.msra.mxu0 0.0
      %825 = vmatprep.subr.mxu0 0.0
      %826 = vmatpush1.msra.mxu0 0.0
      %827 = vmatprep.subr.mxu0 0.0
      %828 = vmatpush1.msra.mxu0 0.0
      %829 = vmatprep.subr.mxu0 0.0
      %830 = vmatpush1.msra.mxu0 %v652
      %831 = vmatprep.subr.mxu0 0.0
      %832 = vmatpush1.msra.mxu0 %v651
      %833 = vmatprep.subr.mxu0 0.0
      %834 = vmatpush1.msra.mxu0 %v650
      %835 = vmatprep.subr.mxu0 0.0
      %836 = vmatpush1.msra.mxu0 %v649
      %837 = vmatprep.subr.mxu0 0.0
      %838 = vmatpush2.msra.mxu0 0.0
      %839 = vmatprep.subr.mxu0 0.0
      %840 = vmatpush2.msra.mxu0 0.0
      %841 = vmatprep.subr.mxu0 0.0
      %842 = vmatpush2.msra.mxu0 0.0
      %843 = vmatprep.subr.mxu0 0.0
      %844 = vmatpush2.msra.mxu0 0.0
      %845 = vmatprep.subr.mxu0 0.0
      %846 = vmatpush2.msra.mxu0 0.0
      %847 = vmatprep.subr.mxu0 0.0
      %848 = vmatpush2.msra.mxu0 0.0
      %849 = vmatprep.subr.mxu0 0.0
      %850 = vmatpush2.msra.mxu0 0.0
      %851 = vmatprep.subr.mxu0 0.0
      %852 = vmatpush2.msra.mxu0 0.0
      %853 = vmatprep.subr.mxu0 0.0
      %854 = vmatpush2.msra.mxu0 0.0
      %855 = vmatprep.subr.mxu0 0.0
      %856 = vmatpush2.msra.mxu0 0.0
      %857 = vmatprep.subr.mxu0 0.0
      %858 = vmatpush2.msra.mxu0 0.0
      %859 = vmatprep.subr.mxu0 0.0
      %860 = vmatpush2.msra.mxu0 0.0
      %861 = vmatprep.subr.mxu0 0.0
      %862 = vmatpush2.msra.mxu0 0.0
      %863 = vmatprep.subr.mxu0 0.0
      %864 = vmatpush2.msra.mxu0 0.0
      %865 = vmatprep.subr.mxu0 0.0
      %866 = vmatpush2.msra.mxu0 0.0
      %867 = vmatprep.subr.mxu0 0.0
      %868 = vmatpush2.msra.mxu0 0.0
      %869 = vmatprep.mubr.f32.mxu0 0.0
      %870 = vmatmul.mubr.f32.gmra.mxu0 %v662
      %v871 = vpop.f32.mrf.mxu0
      %v872 = vadd.f32 %v658, %v871
      %v873 = vpop.f32.mrf.mxu0
      %874 = vmatprep.mubr.f32.mxu0 0.0
      %875 = vmatmul.mubr.f32.gmra.mxu0 %v665
      %v876 = vpop.f32.mrf.mxu0
      %v877 = vadd.f32 %v658, %v876
      %v878 = vpop.f32.mrf.mxu0
      %879 = vmatprep.mubr.f32.mxu0 0.0
      %880 = vmatmul.mubr.f32.gmra.mxu0 %v668
      %v881 = vpop.f32.mrf.mxu0
      %v882 = vadd.f32 %v658, %v881
      %v883 = vpop.f32.mrf.mxu0
      %884 = vmatprep.mubr.f32.mxu0 0.0
      %885 = vmatmul.mubr.f32.gmra.mxu0 %v671
      %v886 = vpop.f32.mrf.mxu0
      %v887 = vadd.f32 %v658, %v886
      %v888 = vpop.f32.mrf.mxu0
      %889 = vmatprep.mubr.f32.mxu0 0.0
      %890 = vmatmul.mubr.f32.gmra.mxu0 %v674
      %v891 = vpop.f32.mrf.mxu0
      %v892 = vadd.f32 %v658, %v891
      %v893 = vpop.f32.mrf.mxu0
      %894 = vmatprep.mubr.f32.mxu0 0.0
      %895 = vmatmul.mubr.f32.gmra.mxu0 %v677
      %v896 = vpop.f32.mrf.mxu0
      %v897 = vadd.f32 %v658, %v896
      %v898 = vpop.f32.mrf.mxu0
      %899 = vmatprep.mubr.f32.mxu0 0.0
      %900 = vmatmul.mubr.f32.gmra.mxu0 %v680
      %v901 = vpop.f32.mrf.mxu0
      %v902 = vadd.f32 %v658, %v901
      %v903 = vpop.f32.mrf.mxu0
      %904 = vmatprep.mubr.f32.mxu0 0.0
      %905 = vmatmul.mubr.f32.gmra.mxu0 %v683
      %v906 = vpop.f32.mrf.mxu0
      %v907 = vadd.f32 %v658, %v906
      %v908 = vpop.f32.mrf.mxu0
      %909 = vmatprep.mubr.f32.mxu0 0.0
      %910 = vmatmul.mubr.f32.gmra.mxu0 %v686
      %v911 = vpop.f32.mrf.mxu0
      %v912 = vadd.f32 %v658, %v911
      %v913 = vpop.f32.mrf.mxu0
      %914 = vmatprep.mubr.f32.mxu0 0.0
      %915 = vmatmul.mubr.f32.gmra.mxu0 %v689
      %v916 = vpop.f32.mrf.mxu0
      %v917 = vadd.f32 %v658, %v916
      %v918 = vpop.f32.mrf.mxu0
      %919 = vmatprep.mubr.f32.mxu0 0.0
      %920 = vmatmul.mubr.f32.gmra.mxu0 %v692
      %v921 = vpop.f32.mrf.mxu0
      %v922 = vadd.f32 %v658, %v921
      %v923 = vpop.f32.mrf.mxu0
      %924 = vmatprep.mubr.f32.mxu0 0.0
      %925 = vmatmul.mubr.f32.gmra.mxu0 %v695
      %v926 = vpop.f32.mrf.mxu0
      %v927 = vadd.f32 %v658, %v926
      %v928 = vpop.f32.mrf.mxu0
      %929 = vmatprep.mubr.f32.mxu0 0.0
      %930 = vmatmul.mubr.f32.gmra.mxu0 %v698
      %v931 = vpop.f32.mrf.mxu0
      %v932 = vadd.f32 %v658, %v931
      %v933 = vpop.f32.mrf.mxu0
      %934 = vmatprep.mubr.f32.mxu0 0.0
      %935 = vmatmul.mubr.f32.gmra.mxu0 %v701
      %v936 = vpop.f32.mrf.mxu0
      %v937 = vadd.f32 %v658, %v936
      %v938 = vpop.f32.mrf.mxu0
      %939 = vmatprep.mubr.f32.mxu0 0.0
      %940 = vmatmul.mubr.f32.gmra.mxu0 %v704
      %v941 = vpop.f32.mrf.mxu0
      %v942 = vadd.f32 %v658, %v941
      %v943 = vpop.f32.mrf.mxu0
      %944 = vmatprep.mubr.f32.mxu0 0.0
      %945 = vmatmul.mubr.f32.gmra.mxu0 %v707
      %v946 = vpop.f32.mrf.mxu0
      %v947 = vadd.f32 %v658, %v946
      %v948 = vpop.f32.mrf.mxu0
      %949 = vmatprep.mubr.f32.mxu0 0.0
      %950 = vmatmul.mubr.f32.gmra.mxu0 %v710
      %v951 = vpop.f32.mrf.mxu0
      %v952 = vadd.f32 %v658, %v951
      %v953 = vpop.f32.mrf.mxu0
      %954 = vmatprep.mubr.f32.mxu0 0.0
      %955 = vmatmul.mubr.f32.gmra.mxu0 %v713
      %v956 = vpop.f32.mrf.mxu0
      %v957 = vadd.f32 %v658, %v956
      %v958 = vpop.f32.mrf.mxu0
      %959 = vmatprep.mubr.f32.mxu0 0.0
      %960 = vmatmul.mubr.f32.gmra.mxu0 %v716
      %v961 = vpop.f32.mrf.mxu0
      %v962 = vadd.f32 %v658, %v961
      %v963 = vpop.f32.mrf.mxu0
      %964 = vmatprep.mubr.f32.mxu0 0.0
      %965 = vmatmul.mubr.f32.gmra.mxu0 %v719
      %v966 = vpop.f32.mrf.mxu0
      %v967 = vadd.f32 %v658, %v966
      %v968 = vpop.f32.mrf.mxu0
      %969 = vmatprep.mubr.f32.mxu0 0.0
      %970 = vmatmul.mubr.f32.gmra.mxu0 %v722
      %v971 = vpop.f32.mrf.mxu0
      %v972 = vadd.f32 %v658, %v971
      %v973 = vpop.f32.mrf.mxu0
      %974 = vmatprep.mubr.f32.mxu0 0.0
      %975 = vmatmul.mubr.f32.gmra.mxu0 %v725
      %v976 = vpop.f32.mrf.mxu0
      %v977 = vadd.f32 %v658, %v976
      %v978 = vpop.f32.mrf.mxu0
      %979 = vmatprep.mubr.f32.mxu0 0.0
      %980 = vmatmul.mubr.f32.gmra.mxu0 %v728
      %v981 = vpop.f32.mrf.mxu0
      %v982 = vadd.f32 %v658, %v981
      %v983 = vpop.f32.mrf.mxu0
      %984 = vmatprep.mubr.f32.mxu0 0.0
      %985 = vmatmul.mubr.f32.gmra.mxu0 %v731
      %v986 = vpop.f32.mrf.mxu0
      %v987 = vadd.f32 %v658, %v986
      %v988 = vpop.f32.mrf.mxu0
      %989 = vmatprep.mubr.f32.mxu0 0.0
      %990 = vmatmul.mubr.f32.gmra.mxu0 %v734
      %v991 = vpop.f32.mrf.mxu0
      %v992 = vadd.f32 %v658, %v991
      %v993 = vpop.f32.mrf.mxu0
      %994 = vmatprep.mubr.f32.mxu0 0.0
      %995 = vmatmul.mubr.f32.gmra.mxu0 %v737
      %v996 = vpop.f32.mrf.mxu0
      %v997 = vadd.f32 %v658, %v996
      %v998 = vpop.f32.mrf.mxu0
      %999 = vmatprep.mubr.f32.mxu0 0.0
      %1000 = vmatmul.mubr.f32.gmra.mxu0 %v740
      %v1001 = vpop.f32.mrf.mxu0
      %v1002 = vadd.f32 %v658, %v1001
      %v1003 = vpop.f32.mrf.mxu0
      %1004 = vmatprep.mubr.f32.mxu0 0.0
      %1005 = vmatmul.mubr.f32.gmra.mxu0 %v743
      %v1006 = vpop.f32.mrf.mxu0
      %v1007 = vadd.f32 %v658, %v1006
      %v1008 = vpop.f32.mrf.mxu0
      %1009 = vmatprep.mubr.f32.mxu0 0.0
      %1010 = vmatmul.mubr.f32.gmra.mxu0 %v746
      %v1011 = vpop.f32.mrf.mxu0
      %v1012 = vadd.f32 %v658, %v1011
      %v1013 = vpop.f32.mrf.mxu0
      %1014 = vmatprep.mubr.f32.mxu0 0.0
      %1015 = vmatmul.mubr.f32.gmra.mxu0 %v749
      %v1016 = vpop.f32.mrf.mxu0
      %v1017 = vadd.f32 %v658, %v1016
      %v1018 = vpop.f32.mrf.mxu0
      %1019 = vmatprep.mubr.f32.mxu0 0.0
      %1020 = vmatmul.mubr.f32.gmra.mxu0 %v752
      %v1021 = vpop.f32.mrf.mxu0
      %v1022 = vadd.f32 %v658, %v1021
      %v1023 = vpop.f32.mrf.mxu0
      %1024 = vmatprep.mubr.f32.mxu0 0.0
      %1025 = vmatmul.mubr.f32.gmra.mxu0 %v755
      %v1026 = vpop.f32.mrf.mxu0
      %v1027 = vadd.f32 %v658, %v1026
      %v1028 = vpop.f32.mrf.mxu0
      %1029 = vmatprep.mubr.f32.mxu0 0.0
      %1030 = vmatmul.mubr.f32.gmra.mxu0 %v758
      %v1031 = vpop.f32.mrf.mxu0
      %v1032 = vadd.f32 %v658, %v1031
      %v1033 = vpop.f32.mrf.mxu0
      %1034 = vmatprep.mubr.f32.mxu0 0.0
      %1035 = vmatmul.mubr.f32.gmra.mxu0 %v761
      %v1036 = vpop.f32.mrf.mxu0
      %v1037 = vadd.f32 %v658, %v1036
      %v1038 = vpop.f32.mrf.mxu0
      %1039 = vmatprep.mubr.f32.mxu0 0.0
      %1040 = vmatmul.mubr.f32.gmra.mxu0 %v764
      %v1041 = vpop.f32.mrf.mxu0
      %v1042 = vadd.f32 %v658, %v1041
      %v1043 = vpop.f32.mrf.mxu0
      %1044 = vmatprep.mubr.f32.mxu0 0.0
      %1045 = vmatmul.mubr.f32.gmra.mxu0 %v767
      %v1046 = vpop.f32.mrf.mxu0
      %v1047 = vadd.f32 %v658, %v1046
      %v1048 = vpop.f32.mrf.mxu0
      %1049 = vmatprep.mubr.f32.mxu0 0.0
      %1050 = vmatmul.mubr.f32.gmra.mxu0 %v770
      %v1051 = vpop.f32.mrf.mxu0
      %v1052 = vadd.f32 %v658, %v1051
      %v1053 = vpop.f32.mrf.mxu0
      %1054 = vmatprep.mubr.f32.mxu0 0.0
      %1055 = vmatmul.mubr.f32.gmra.mxu0 %v773
      %v1056 = vpop.f32.mrf.mxu0
      %v1057 = vadd.f32 %v658, %v1056
      %v1058 = vpop.f32.mrf.mxu0
      %1059 = vmatprep.mubr.f32.mxu0 0.0
      %1060 = vmatmul.mubr.f32.gmra.mxu0 %v776
      %v1061 = vpop.f32.mrf.mxu0
      %v1062 = vadd.f32 %v658, %v1061
      %v1063 = vpop.f32.mrf.mxu0
      %1064 = vmatprep.mubr.f32.mxu0 0.0
      %1065 = vmatmul.mubr.f32.gmra.mxu0 %v779
      %v1066 = vpop.f32.mrf.mxu0
      %v1067 = vadd.f32 %v658, %v1066
      %v1068 = vpop.f32.mrf.mxu0
      %1069 = vmatprep.mubr.f32.mxu0 0.0
      %1070 = vmatmul.mubr.f32.gmra.mxu0 %v782
      %v1071 = vpop.f32.mrf.mxu0
      %v1072 = vadd.f32 %v658, %v1071
      %v1073 = vpop.f32.mrf.mxu0
      %1074 = vmatprep.mubr.f32.mxu0 0.0
      %1075 = vmatmul.mubr.f32.gmra.mxu0 %v785
      %v1076 = vpop.f32.mrf.mxu0
      %v1077 = vadd.f32 %v658, %v1076
      %v1078 = vpop.f32.mrf.mxu0
      %1079 = vmatprep.mubr.f32.mxu0 0.0
      %1080 = vmatmul.mubr.f32.gmra.mxu0 %v788
      %v1081 = vpop.f32.mrf.mxu0
      %v1082 = vadd.f32 %v658, %v1081
      %v1083 = vpop.f32.mrf.mxu0
      %1084 = vmatprep.mubr.f32.mxu0 0.0
      %1085 = vmatmul.mubr.f32.gmra.mxu0 %v791
      %v1086 = vpop.f32.mrf.mxu0
      %v1087 = vadd.f32 %v658, %v1086
      %v1088 = vpop.f32.mrf.mxu0
      %1089 = vmatprep.mubr.f32.mxu0 0.0
      %1090 = vmatmul.mubr.f32.gmra.mxu0 %v794
      %v1091 = vpop.f32.mrf.mxu0
      %v1092 = vadd.f32 %v658, %v1091
      %v1093 = vpop.f32.mrf.mxu0
      %1094 = vmatprep.mubr.f32.mxu0 0.0
      %1095 = vmatmul.mubr.f32.gmra.mxu0 %v797
      %v1096 = vpop.f32.mrf.mxu0
      %v1097 = vadd.f32 %v658, %v1096
      %v1098 = vpop.f32.mrf.mxu0
      %1099 = vmatprep.mubr.f32.mxu0 0.0
      %1100 = vmatmul.mubr.f32.gmra.mxu0 %v800
      %v1101 = vpop.f32.mrf.mxu0
      %v1102 = vadd.f32 %v658, %v1101
      %v1103 = vpop.f32.mrf.mxu0
      %1104 = vmatprep.mubr.f32.mxu0 0.0
      %1105 = vmatmul.mubr.f32.gmra.mxu0 %v803
      %v1106 = vpop.f32.mrf.mxu0
      %v1107 = vadd.f32 %v658, %v1106
      %v1108 = vpop.f32.mrf.mxu0
      %1109 = vdwg.mxu0
      %v1110 = vmax.f32 %v872, 0.0
      %v1111 = vmax.f32 %v877, 0.0
      %v1112 = vmax.f32 %v882, 0.0
      %v1113 = vmax.f32 %v887, 0.0
      %v1114 = vmax.f32 %v892, 0.0
      %v1115 = vmax.f32 %v897, 0.0
      %v1116 = vmax.f32 %v902, 0.0
      %v1117 = vmax.f32 %v907, 0.0
      %v1118 = vmax.f32 %v912, 0.0
      %v1119 = vmax.f32 %v917, 0.0
      %v1120 = vmax.f32 %v922, 0.0
      %v1121 = vmax.f32 %v927, 0.0
      %v1122 = vmax.f32 %v932, 0.0
      %v1123 = vmax.f32 %v937, 0.0
      %v1124 = vmax.f32 %v942, 0.0
      %v1125 = vmax.f32 %v947, 0.0
      %v1126 = vmax.f32 %v952, 0.0
      %v1127 = vmax.f32 %v957, 0.0
      %v1128 = vmax.f32 %v962, 0.0
      %v1129 = vmax.f32 %v967, 0.0
      %v1130 = vmax.f32 %v972, 0.0
      %v1131 = vmax.f32 %v977, 0.0
      %v1132 = vmax.f32 %v982, 0.0
      %v1133 = vmax.f32 %v987, 0.0
      %v1134 = vmax.f32 %v992, 0.0
      %v1135 = vmax.f32 %v997, 0.0
      %v1136 = vmax.f32 %v1002, 0.0
      %v1137 = vmax.f32 %v1007, 0.0
      %v1138 = vmax.f32 %v1012, 0.0
      %v1139 = vmax.f32 %v1017, 0.0
      %v1140 = vmax.f32 %v1022, 0.0
      %v1141 = vmax.f32 %v1027, 0.0
      %v1142 = vmax.f32 %v1032, 0.0
      %v1143 = vmax.f32 %v1037, 0.0
      %v1144 = vmax.f32 %v1042, 0.0
      %v1145 = vmax.f32 %v1047, 0.0
      %v1146 = vmax.f32 %v1052, 0.0
      %v1147 = vmax.f32 %v1057, 0.0
      %v1148 = vmax.f32 %v1062, 0.0
      %v1149 = vmax.f32 %v1067, 0.0
      %v1150 = vmax.f32 %v1072, 0.0
      %v1151 = vmax.f32 %v1077, 0.0
      %v1152 = vmax.f32 %v1082, 0.0
      %v1153 = vmax.f32 %v1087, 0.0
      %v1154 = vmax.f32 %v1092, 0.0
      %v1155 = vmax.f32 %v1097, 0.0
      %v1156 = vmax.f32 %v1102, 0.0
      %v1157 = vmax.f32 %v1107, 0.0
      %v1158 = vld [vmem:[%s1] sm:$0x3f]
      %v1159 = vld [vmem:[%s1 + $0x8] sm:$0x3f]
      %v1160 = vld [vmem:[%s1 + $0x10] sm:$0x3f]
      %1161 = vmatprep.subr.mxu0 0.0
      %1162 = vmatpush1.msra.mxu0 %v1125
      %1163 = vmatprep.subr.mxu0 0.0
      %1164 = vmatpush1.msra.mxu0 %v1124
      %1165 = vmatprep.subr.mxu0 0.0
      %1166 = vmatpush1.msra.mxu0 %v1123
      %1167 = vmatprep.subr.mxu0 0.0
      %1168 = vmatpush1.msra.mxu0 %v1122
      %1169 = vmatprep.subr.mxu0 0.0
      %1170 = vmatpush1.msra.mxu0 %v1121
      %1171 = vmatprep.subr.mxu0 0.0
      %1172 = vmatpush1.msra.mxu0 %v1120
      %1173 = vmatprep.subr.mxu0 0.0
      %1174 = vmatpush1.msra.mxu0 %v1119
      %1175 = vmatprep.subr.mxu0 0.0
      %1176 = vmatpush1.msra.mxu0 %v1118
      %1177 = vmatprep.subr.mxu0 0.0
      %1178 = vmatpush1.msra.mxu0 %v1117
      %1179 = vmatprep.subr.mxu0 0.0
      %1180 = vmatpush1.msra.mxu0 %v1116
      %1181 = vmatprep.subr.mxu0 0.0
      %1182 = vmatpush1.msra.mxu0 %v1115
      %1183 = vmatprep.subr.mxu0 0.0
      %1184 = vmatpush1.msra.mxu0 %v1114
      %1185 = vmatprep.subr.mxu0 0.0
      %1186 = vmatpush1.msra.mxu0 %v1113
      %1187 = vmatprep.subr.mxu0 0.0
      %1188 = vmatpush1.msra.mxu0 %v1112
      %1189 = vmatprep.subr.mxu0 0.0
      %1190 = vmatpush1.msra.mxu0 %v1111
      %1191 = vmatprep.subr.mxu0 0.0
      %1192 = vmatpush1.msra.mxu0 %v1110
      %1193 = vmatprep.subr.mxu0 0.0
      %1194 = vmatpush2.msra.mxu0 %v1141
      %1195 = vmatprep.subr.mxu0 0.0
      %1196 = vmatpush2.msra.mxu0 %v1140
      %1197 = vmatprep.subr.mxu0 0.0
      %1198 = vmatpush2.msra.mxu0 %v1139
      %1199 = vmatprep.subr.mxu0 0.0
      %1200 = vmatpush2.msra.mxu0 %v1138
      %1201 = vmatprep.subr.mxu0 0.0
      %1202 = vmatpush2.msra.mxu0 %v1137
      %1203 = vmatprep.subr.mxu0 0.0
      %1204 = vmatpush2.msra.mxu0 %v1136
      %1205 = vmatprep.subr.mxu0 0.0
      %1206 = vmatpush2.msra.mxu0 %v1135
      %1207 = vmatprep.subr.mxu0 0.0
      %1208 = vmatpush2.msra.mxu0 %v1134
      %1209 = vmatprep.subr.mxu0 0.0
      %1210 = vmatpush2.msra.mxu0 %v1133
      %1211 = vmatprep.subr.mxu0 0.0
      %1212 = vmatpush2.msra.mxu0 %v1132
      %1213 = vmatprep.subr.mxu0 0.0
      %1214 = vmatpush2.msra.mxu0 %v1131
      %1215 = vmatprep.subr.mxu0 0.0
      %1216 = vmatpush2.msra.mxu0 %v1130
      %1217 = vmatprep.subr.mxu0 0.0
      %1218 = vmatpush2.msra.mxu0 %v1129
      %1219 = vmatprep.subr.mxu0 0.0
      %1220 = vmatpush2.msra.mxu0 %v1128
      %1221 = vmatprep.subr.mxu0 0.0
      %1222 = vmatpush2.msra.mxu0 %v1127
      %1223 = vmatprep.subr.mxu0 0.0
      %1224 = vmatpush2.msra.mxu0 %v1126
      %1225 = vmatprep.mubr.f32.mxu0 %v1159
      %1226 = vmatmul.mubr.f32.gmra.mxu0 %v1158
      %v1227 = vpop.f32.mrf.mxu0
      %v1228 = vadd.f32 0.0, %v1227
      %v1229 = vpop.f32.mrf.mxu0
      %1230 = vdwg.mxu0
      %1231 = vmatprep.subr.mxu0 0.0
      %1232 = vmatpush1.msra.mxu0 %v1157
      %1233 = vmatprep.subr.mxu0 0.0
      %1234 = vmatpush1.msra.mxu0 %v1156
      %1235 = vmatprep.subr.mxu0 0.0
      %1236 = vmatpush1.msra.mxu0 %v1155
      %1237 = vmatprep.subr.mxu0 0.0
      %1238 = vmatpush1.msra.mxu0 %v1154
      %1239 = vmatprep.subr.mxu0 0.0
      %1240 = vmatpush1.msra.mxu0 %v1153
      %1241 = vmatprep.subr.mxu0 0.0
      %1242 = vmatpush1.msra.mxu0 %v1152
      %1243 = vmatprep.subr.mxu0 0.0
      %1244 = vmatpush1.msra.mxu0 %v1151
      %1245 = vmatprep.subr.mxu0 0.0
      %1246 = vmatpush1.msra.mxu0 %v1150
      %1247 = vmatprep.subr.mxu0 0.0
      %1248 = vmatpush1.msra.mxu0 %v1149
      %1249 = vmatprep.subr.mxu0 0.0
      %1250 = vmatpush1.msra.mxu0 %v1148
      %1251 = vmatprep.subr.mxu0 0.0
      %1252 = vmatpush1.msra.mxu0 %v1147
      %1253 = vmatprep.subr.mxu0 0.0
      %1254 = vmatpush1.msra.mxu0 %v1146
      %1255 = vmatprep.subr.mxu0 0.0
      %1256 = vmatpush1.msra.mxu0 %v1145
      %1257 = vmatprep.subr.mxu0 0.0
      %1258 = vmatpush1.msra.mxu0 %v1144
      %1259 = vmatprep.subr.mxu0 0.0
      %1260 = vmatpush1.msra.mxu0 %v1143
      %1261 = vmatprep.subr.mxu0 0.0
      %1262 = vmatpush1.msra.mxu0 %v1142
      %1263 = vmatprep.subr.mxu0 0.0
      %1264 = vmatpush2.msra.mxu0 0.0
      %1265 = vmatprep.subr.mxu0 0.0
      %1266 = vmatpush2.msra.mxu0 0.0
      %1267 = vmatprep.subr.mxu0 0.0
      %1268 = vmatpush2.msra.mxu0 0.0
      %1269 = vmatprep.subr.mxu0 0.0
      %1270 = vmatpush2.msra.mxu0 0.0
      %1271 = vmatprep.subr.mxu0 0.0
      %1272 = vmatpush2.msra.mxu0 0.0
      %1273 = vmatprep.subr.mxu0 0.0
      %1274 = vmatpush2.msra.mxu0 0.0
      %1275 = vmatprep.subr.mxu0 0.0
      %1276 = vmatpush2.msra.mxu0 0.0
      %1277 = vmatprep.subr.mxu0 0.0
      %1278 = vmatpush2.msra.mxu0 0.0
      %1279 = vmatprep.subr.mxu0 0.0
      %1280 = vmatpush2.msra.mxu0 0.0
      %1281 = vmatprep.subr.mxu0 0.0
      %1282 = vmatpush2.msra.mxu0 0.0
      %1283 = vmatprep.subr.mxu0 0.0
      %1284 = vmatpush2.msra.mxu0 0.0
      %1285 = vmatprep.subr.mxu0 0.0
      %1286 = vmatpush2.msra.mxu0 0.0
      %1287 = vmatprep.subr.mxu0 0.0
      %1288 = vmatpush2.msra.mxu0 0.0
      %1289 = vmatprep.subr.mxu0 0.0
      %1290 = vmatpush2.msra.mxu0 0.0
      %1291 = vmatprep.subr.mxu0 0.0
      %1292 = vmatpush2.msra.mxu0 0.0
      %1293 = vmatprep.subr.mxu0 0.0
      %1294 = vmatpush2.msra.mxu0 0.0
      %1295 = vmatprep.mubr.f32.mxu0 0.0
      %1296 = vmatmul.mubr.f32.gmra.mxu0 %v1160
      %v1297 = vpop.f32.mrf.mxu0
      %v1298 = vadd.f32 %v1228, %v1297
      %v1299 = vpop.f32.mrf.mxu0
      %1300 = vdwg.mxu0
      %v1301 = vld [vmem:[%s17] sm:$0xf]
      %v1302 = vld [vmem:[%s4] sm:$0xff]
      %v1303 = vld [vmem:[%s4 + $0x8] sm:$0xff]
      %v1304 = vld [vmem:[%s4 + $0x10] sm:$0xff]
      %v1305 = vld [vmem:[%s4 + $0x18] sm:$0xff]
      %v1306 = vld [vmem:[%s5] sm:$0x1]
      %v1308 = vlaneseq
      %v1309 = vshrl.u32 %v1308, 7
      %v1310 = vsub.s32 0, %v1309
      %v1311 = vrot.slane %v1306, %v1310
      %v1314 = vsel %vm660, %v1298, 0
      %1316 = vmatprep.subr.mxu0 0.0
      %1317 = vmatpush1.msra.mxu0 0.0
      %1318 = vmatprep.subr.mxu0 0.0
      %1319 = vmatpush1.msra.mxu0 0.0
      %1320 = vmatprep.subr.mxu0 0.0
      %1321 = vmatpush1.msra.mxu0 0.0
      %1322 = vmatprep.subr.mxu0 0.0
      %1323 = vmatpush1.msra.mxu0 0.0
      %1324 = vmatprep.subr.mxu0 0.0
      %1325 = vmatpush1.msra.mxu0 0.0
      %1326 = vmatprep.subr.mxu0 0.0
      %1327 = vmatpush1.msra.mxu0 0.0
      %1328 = vmatprep.subr.mxu0 0.0
      %1329 = vmatpush1.msra.mxu0 0.0
      %1330 = vmatprep.subr.mxu0 0.0
      %1331 = vmatpush1.msra.mxu0 0.0
      %1332 = vmatprep.subr.mxu0 0.0
      %1333 = vmatpush1.msra.mxu0 0.0
      %1334 = vmatprep.subr.mxu0 0.0
      %1335 = vmatpush1.msra.mxu0 0.0
      %1336 = vmatprep.subr.mxu0 0.0
      %1337 = vmatpush1.msra.mxu0 0.0
      %1338 = vmatprep.subr.mxu0 0.0
      %1339 = vmatpush1.msra.mxu0 0.0
      %1340 = vmatprep.subr.mxu0 0.0
      %1341 = vmatpush1.msra.mxu0 %v1305
      %1342 = vmatprep.subr.mxu0 0.0
      %1343 = vmatpush1.msra.mxu0 %v1304
      %1344 = vmatprep.subr.mxu0 0.0
      %1345 = vmatpush1.msra.mxu0 %v1303
      %1346 = vmatprep.subr.mxu0 0.0
      %1347 = vmatpush1.msra.mxu0 %v1302
      %1348 = vmatprep.subr.mxu0 0.0
      %1349 = vmatpush2.msra.mxu0 0.0
      %1350 = vmatprep.subr.mxu0 0.0
      %1351 = vmatpush2.msra.mxu0 0.0
      %1352 = vmatprep.subr.mxu0 0.0
      %1353 = vmatpush2.msra.mxu0 0.0
      %1354 = vmatprep.subr.mxu0 0.0
      %1355 = vmatpush2.msra.mxu0 0.0
      %1356 = vmatprep.subr.mxu0 0.0
      %1357 = vmatpush2.msra.mxu0 0.0
      %1358 = vmatprep.subr.mxu0 0.0
      %1359 = vmatpush2.msra.mxu0 0.0
      %1360 = vmatprep.subr.mxu0 0.0
      %1361 = vmatpush2.msra.mxu0 0.0
      %1362 = vmatprep.subr.mxu0 0.0
      %1363 = vmatpush2.msra.mxu0 0.0
      %1364 = vmatprep.subr.mxu0 0.0
      %1365 = vmatpush2.msra.mxu0 0.0
      %1366 = vmatprep.subr.mxu0 0.0
      %1367 = vmatpush2.msra.mxu0 0.0
      %1368 = vmatprep.subr.mxu0 0.0
      %1369 = vmatpush2.msra.mxu0 0.0
      %1370 = vmatprep.subr.mxu0 0.0
      %1371 = vmatpush2.msra.mxu0 0.0
      %1372 = vmatprep.subr.mxu0 0.0
      %1373 = vmatpush2.msra.mxu0 0.0
      %1374 = vmatprep.subr.mxu0 0.0
      %1375 = vmatpush2.msra.mxu0 0.0
      %1376 = vmatprep.subr.mxu0 0.0
      %1377 = vmatpush2.msra.mxu0 0.0
      %1378 = vmatprep.subr.mxu0 0.0
      %1379 = vmatpush2.msra.mxu0 0.0
      %1380 = vmatprep.mubr.f32.mxu0 0.0
      %1381 = vmatmul.mubr.f32.gmra.mxu0 %v1314
      %v1382 = vpop.f32.mrf.mxu0
      %v1383 = vadd.f32 %v1311, %v1382
      %v1384 = vpop.f32.mrf.mxu0
      %1385 = vdwg.mxu0
      %v1386 = vmul.f32 %v1383, 0.35355338
      %v1387 = vlaneseq
      %v1388 = vshrl.u32 %v1387, 7
      %v1389 = vsub.s32 0, %v1388
      %v1390 = vrot.slane %v1301, %v1389
      %v1391 = vmul.f32 %v1386, %v1390
      %1393 = vrot.lane.b32.xlu0 %v1383, 96
      %v1394 = vpop.permute.xlu0 %1393
      %v1396 = vsel %vm660, %v1391, 0
      %v1398 = vsel %vm660, %v1394, 0
      %1400 = vmatprep.subr.mxu0 0.0
      %1401 = vmatpush1.xpose.msra.mxu0 0.0
      %1402 = vmatprep.subr.mxu0 0.0
      %1403 = vmatpush1.xpose.msra.mxu0 0.0
      %1404 = vmatprep.subr.mxu0 0.0
      %1405 = vmatpush1.xpose.msra.mxu0 0.0
      %1406 = vmatprep.subr.mxu0 0.0
      %1407 = vmatpush1.xpose.msra.mxu0 0.0
      %1408 = vmatprep.subr.mxu0 0.0
      %1409 = vmatpush1.xpose.msra.mxu0 0.0
      %1410 = vmatprep.subr.mxu0 0.0
      %1411 = vmatpush1.xpose.msra.mxu0 0.0
      %1412 = vmatprep.subr.mxu0 0.0
      %1413 = vmatpush1.xpose.msra.mxu0 0.0
      %1414 = vmatprep.subr.mxu0 0.0
      %1415 = vmatpush1.xpose.msra.mxu0 0.0
      %1416 = vmatprep.subr.mxu0 0.0
      %1417 = vmatpush1.xpose.msra.mxu0 0.0
      %1418 = vmatprep.subr.mxu0 0.0
      %1419 = vmatpush1.xpose.msra.mxu0 0.0
      %1420 = vmatprep.subr.mxu0 0.0
      %1421 = vmatpush1.xpose.msra.mxu0 0.0
      %1422 = vmatprep.subr.mxu0 0.0
      %1423 = vmatpush1.xpose.msra.mxu0 0.0
      %1424 = vmatprep.subr.mxu0 0.0
      %1425 = vmatpush1.xpose.msra.mxu0 0.0
      %1426 = vmatprep.subr.mxu0 0.0
      %1427 = vmatpush1.xpose.msra.mxu0 0.0
      %1428 = vmatprep.subr.mxu0 0.0
      %1429 = vmatpush1.xpose.msra.mxu0 0.0
      %1430 = vmatprep.subr.mxu0 0.0
      %1431 = vmatpush1.xpose.msra.mxu0 %v1398
      %1432 = vmatprep.subr.mxu0 0.0
      %1433 = vmatpush2.xpose.msra.mxu0 0.0
      %1434 = vmatprep.subr.mxu0 0.0
      %1435 = vmatpush2.xpose.msra.mxu0 0.0
      %1436 = vmatprep.subr.mxu0 0.0
      %1437 = vmatpush2.xpose.msra.mxu0 0.0
      %1438 = vmatprep.subr.mxu0 0.0
      %1439 = vmatpush2.xpose.msra.mxu0 0.0
      %1440 = vmatprep.subr.mxu0 0.0
      %1441 = vmatpush2.xpose.msra.mxu0 0.0
      %1442 = vmatprep.subr.mxu0 0.0
      %1443 = vmatpush2.xpose.msra.mxu0 0.0
      %1444 = vmatprep.subr.mxu0 0.0
      %1445 = vmatpush2.xpose.msra.mxu0 0.0
      %1446 = vmatprep.subr.mxu0 0.0
      %1447 = vmatpush2.xpose.msra.mxu0 0.0
      %1448 = vmatprep.subr.mxu0 0.0
      %1449 = vmatpush2.xpose.msra.mxu0 0.0
      %1450 = vmatprep.subr.mxu0 0.0
      %1451 = vmatpush2.xpose.msra.mxu0 0.0
      %1452 = vmatprep.subr.mxu0 0.0
      %1453 = vmatpush2.xpose.msra.mxu0 0.0
      %1454 = vmatprep.subr.mxu0 0.0
      %1455 = vmatpush2.xpose.msra.mxu0 0.0
      %1456 = vmatprep.subr.mxu0 0.0
      %1457 = vmatpush2.xpose.msra.mxu0 0.0
      %1458 = vmatprep.subr.mxu0 0.0
      %1459 = vmatpush2.xpose.msra.mxu0 0.0
      %1460 = vmatprep.subr.mxu0 0.0
      %1461 = vmatpush2.xpose.msra.mxu0 0.0
      %1462 = vmatprep.subr.mxu0 0.0
      %1463 = vmatpush2.xpose.msra.mxu0 0.0
      %1464 = vmatprep.mubr.f32.mxu0 0.0
      %1465 = vmatmul.mubr.f32.gmra.mxu0 %v1396
      %v1466 = vpop.f32.mrf.mxu0
      %v1467 = vadd.f32 0.0, %v1466
      %v1468 = vpop.f32.mrf.mxu0
      %1469 = vdwg.mxu0
      %vm1470 = vcmask 46080
      %v1471 = vsel %vm1470, %v1467, -inf
      %1472 = vmax.xlane.f32.xlu0 %v1471
      %v1473 = vpop.xlane.xlu0 %1472
      %v1474 = vsub.f32 %v1467, %v1473
      %v1475 = vmul.f32 %v1474, 1.442695
      %v1476 = vpow.pop %v1475
      %v1477 = vsel %vm1470, %v1476, 0.0
      %1478 = vadd.xlane.f32.xlu0 %v1477
      %v1479 = vpop.xlane.xlu0 %1478
      %v1480 = vrcp.pop %v1479
      %v1481 = vmul.f32 %v1476, %v1480
      %1483 = vrot.lane.b32.xlu0 %v1390, 64
      %v1484 = vpop.permute.xlu0 %1483
      %v1486 = vmul.f32 %v1383, %v1484
      %v1487 = vlaneseq
      %v1488 = vshrl.u32 %v1487, 7
      %v1489 = vsub.s32 1, %v1488
      %v1490 = vrot.slane %v1301, %v1489
      %v1491 = vmul.f32 %v1386, %v1490
      %v1493 = vsel %vm660, %v1491, 0
      %1495 = vmatprep.subr.mxu0 0.0
      %1496 = vmatpush1.xpose.msra.mxu0 0.0
      %1497 = vmatprep.subr.mxu0 0.0
      %1498 = vmatpush1.xpose.msra.mxu0 0.0
      %1499 = vmatprep.subr.mxu0 0.0
      %1500 = vmatpush1.xpose.msra.mxu0 0.0
      %1501 = vmatprep.subr.mxu0 0.0
      %1502 = vmatpush1.xpose.msra.mxu0 0.0
      %1503 = vmatprep.subr.mxu0 0.0
      %1504 = vmatpush1.xpose.msra.mxu0 0.0
      %1505 = vmatprep.subr.mxu0 0.0
      %1506 = vmatpush1.xpose.msra.mxu0 0.0
      %1507 = vmatprep.subr.mxu0 0.0
      %1508 = vmatpush1.xpose.msra.mxu0 0.0
      %1509 = vmatprep.subr.mxu0 0.0
      %1510 = vmatpush1.xpose.msra.mxu0 0.0
      %1511 = vmatprep.subr.mxu0 0.0
      %1512 = vmatpush1.xpose.msra.mxu0 0.0
      %1513 = vmatprep.subr.mxu0 0.0
      %1514 = vmatpush1.xpose.msra.mxu0 0.0
      %1515 = vmatprep.subr.mxu0 0.0
      %1516 = vmatpush1.xpose.msra.mxu0 0.0
      %1517 = vmatprep.subr.mxu0 0.0
      %1518 = vmatpush1.xpose.msra.mxu0 0.0
      %1519 = vmatprep.subr.mxu0 0.0
      %1520 = vmatpush1.xpose.msra.mxu0 0.0
      %1521 = vmatprep.subr.mxu0 0.0
      %1522 = vmatpush1.xpose.msra.mxu0 0.0
      %1523 = vmatprep.subr.mxu0 0.0
      %1524 = vmatpush1.xpose.msra.mxu0 0.0
      %1525 = vmatprep.subr.mxu0 0.0
      %1526 = vmatpush1.xpose.msra.mxu0 %v1398
      %1527 = vmatprep.subr.mxu0 0.0
      %1528 = vmatpush2.xpose.msra.mxu0 0.0
      %1529 = vmatprep.subr.mxu0 0.0
      %1530 = vmatpush2.xpose.msra.mxu0 0.0
      %1531 = vmatprep.subr.mxu0 0.0
      %1532 = vmatpush2.xpose.msra.mxu0 0.0
      %1533 = vmatprep.subr.mxu0 0.0
      %1534 = vmatpush2.xpose.msra.mxu0 0.0
      %1535 = vmatprep.subr.mxu0 0.0
      %1536 = vmatpush2.xpose.msra.mxu0 0.0
      %1537 = vmatprep.subr.mxu0 0.0
      %1538 = vmatpush2.xpose.msra.mxu0 0.0
      %1539 = vmatprep.subr.mxu0 0.0
      %1540 = vmatpush2.xpose.msra.mxu0 0.0
      %1541 = vmatprep.subr.mxu0 0.0
      %1542 = vmatpush2.xpose.msra.mxu0 0.0
      %1543 = vmatprep.subr.mxu0 0.0
      %1544 = vmatpush2.xpose.msra.mxu0 0.0
      %1545 = vmatprep.subr.mxu0 0.0
      %1546 = vmatpush2.xpose.msra.mxu0 0.0
      %1547 = vmatprep.subr.mxu0 0.0
      %1548 = vmatpush2.xpose.msra.mxu0 0.0
      %1549 = vmatprep.subr.mxu0 0.0
      %1550 = vmatpush2.xpose.msra.mxu0 0.0
      %1551 = vmatprep.subr.mxu0 0.0
      %1552 = vmatpush2.xpose.msra.mxu0 0.0
      %1553 = vmatprep.subr.mxu0 0.0
      %1554 = vmatpush2.xpose.msra.mxu0 0.0
      %1555 = vmatprep.subr.mxu0 0.0
      %1556 = vmatpush2.xpose.msra.mxu0 0.0
      %1557 = vmatprep.subr.mxu0 0.0
      %1558 = vmatpush2.xpose.msra.mxu0 0.0
      %1559 = vmatprep.mubr.f32.mxu0 0.0
      %1560 = vmatmul.mubr.f32.gmra.mxu0 %v1493
      %v1561 = vpop.f32.mrf.mxu0
      %v1562 = vadd.f32 0.0, %v1561
      %v1563 = vpop.f32.mrf.mxu0
      %1564 = vdwg.mxu0
      %v1565 = vsel %vm1470, %v1562, -inf
      %1566 = vmax.xlane.f32.xlu0 %v1565
      %v1567 = vpop.xlane.xlu0 %1566
      %v1568 = vsub.f32 %v1562, %v1567
      %v1569 = vmul.f32 %v1568, 1.442695
      %v1570 = vpow.pop %v1569
      %v1571 = vsel %vm1470, %v1570, 0.0
      %1572 = vadd.xlane.f32.xlu0 %v1571
      %v1573 = vpop.xlane.xlu0 %1572
      %v1574 = vrcp.pop %v1573
      %v1575 = vmul.f32 %v1570, %v1574
      %1577 = vrot.lane.b32.xlu0 %v1490, 64
      %v1578 = vpop.permute.xlu0 %1577
      %v1580 = vmul.f32 %v1383, %v1578
      %1582 = vrot.lane.b32.xlu0 %v1580, 64
      %v1583 = vpop.permute.xlu0 %1582
      %vm1584 = vcmask 48128
      %v1586 = vsel %vm1584, %v1575, 0
      %vm1588 = vcmask 1045504
      %v1589 = vsel %vm1588, %v1583, 0
      %1591 = vmatprep.subr.mxu0 0.0
      %1592 = vmatpush1.msra.mxu0 0.0
      %1593 = vmatprep.subr.mxu0 0.0
      %1594 = vmatpush1.msra.mxu0 0.0
      %1595 = vmatprep.subr.mxu0 0.0
      %1596 = vmatpush1.msra.mxu0 0.0
      %1597 = vmatprep.subr.mxu0 0.0
      %1598 = vmatpush1.msra.mxu0 0.0
      %1599 = vmatprep.subr.mxu0 0.0
      %1600 = vmatpush1.msra.mxu0 0.0
      %1601 = vmatprep.subr.mxu0 0.0
      %1602 = vmatpush1.msra.mxu0 0.0
      %1603 = vmatprep.subr.mxu0 0.0
      %1604 = vmatpush1.msra.mxu0 0.0
      %1605 = vmatprep.subr.mxu0 0.0
      %1606 = vmatpush1.msra.mxu0 0.0
      %1607 = vmatprep.subr.mxu0 0.0
      %1608 = vmatpush1.msra.mxu0 0.0
      %1609 = vmatprep.subr.mxu0 0.0
      %1610 = vmatpush1.msra.mxu0 0.0
      %1611 = vmatprep.subr.mxu0 0.0
      %1612 = vmatpush1.msra.mxu0 0.0
      %1613 = vmatprep.subr.mxu0 0.0
      %1614 = vmatpush1.msra.mxu0 0.0
      %1615 = vmatprep.subr.mxu0 0.0
      %1616 = vmatpush1.msra.mxu0 0.0
      %1617 = vmatprep.subr.mxu0 0.0
      %1618 = vmatpush1.msra.mxu0 0.0
      %1619 = vmatprep.subr.mxu0 0.0
      %1620 = vmatpush1.msra.mxu0 0.0
      %1621 = vmatprep.subr.mxu0 0.0
      %1622 = vmatpush1.msra.mxu0 %v1589
      %1623 = vmatprep.subr.mxu0 0.0
      %1624 = vmatpush2.msra.mxu0 0.0
      %1625 = vmatprep.subr.mxu0 0.0
      %1626 = vmatpush2.msra.mxu0 0.0
      %1627 = vmatprep.subr.mxu0 0.0
      %1628 = vmatpush2.msra.mxu0 0.0
      %1629 = vmatprep.subr.mxu0 0.0
      %1630 = vmatpush2.msra.mxu0 0.0
      %1631 = vmatprep.subr.mxu0 0.0
      %1632 = vmatpush2.msra.mxu0 0.0
      %1633 = vmatprep.subr.mxu0 0.0
      %1634 = vmatpush2.msra.mxu0 0.0
      %1635 = vmatprep.subr.mxu0 0.0
      %1636 = vmatpush2.msra.mxu0 0.0
      %1637 = vmatprep.subr.mxu0 0.0
      %1638 = vmatpush2.msra.mxu0 0.0
      %1639 = vmatprep.subr.mxu0 0.0
      %1640 = vmatpush2.msra.mxu0 0.0
      %1641 = vmatprep.subr.mxu0 0.0
      %1642 = vmatpush2.msra.mxu0 0.0
      %1643 = vmatprep.subr.mxu0 0.0
      %1644 = vmatpush2.msra.mxu0 0.0
      %1645 = vmatprep.subr.mxu0 0.0
      %1646 = vmatpush2.msra.mxu0 0.0
      %1647 = vmatprep.subr.mxu0 0.0
      %1648 = vmatpush2.msra.mxu0 0.0
      %1649 = vmatprep.subr.mxu0 0.0
      %1650 = vmatpush2.msra.mxu0 0.0
      %1651 = vmatprep.subr.mxu0 0.0
      %1652 = vmatpush2.msra.mxu0 0.0
      %1653 = vmatprep.subr.mxu0 0.0
      %1654 = vmatpush2.msra.mxu0 0.0
      %1655 = vmatprep.mubr.f32.mxu0 0.0
      %1656 = vmatmul.mubr.f32.gmra.mxu0 %v1586
      %v1657 = vpop.f32.mrf.mxu0
      %v1658 = vadd.f32 0.0, %v1657
      %v1659 = vpop.f32.mrf.mxu0
      %1660 = vdwg.mxu0
      %1662 = vrot.lane.b32.xlu0 %v1486, 64
      %v1663 = vpop.permute.xlu0 %1662
      %v1665 = vsel %vm1584, %v1481, 0
      %v1667 = vsel %vm1588, %v1663, 0
      %1669 = vmatprep.subr.mxu0 0.0
      %1670 = vmatpush1.msra.mxu0 0.0
      %1671 = vmatprep.subr.mxu0 0.0
      %1672 = vmatpush1.msra.mxu0 0.0
      %1673 = vmatprep.subr.mxu0 0.0
      %1674 = vmatpush1.msra.mxu0 0.0
      %1675 = vmatprep.subr.mxu0 0.0
      %1676 = vmatpush1.msra.mxu0 0.0
      %1677 = vmatprep.subr.mxu0 0.0
      %1678 = vmatpush1.msra.mxu0 0.0
      %1679 = vmatprep.subr.mxu0 0.0
      %1680 = vmatpush1.msra.mxu0 0.0
      %1681 = vmatprep.subr.mxu0 0.0
      %1682 = vmatpush1.msra.mxu0 0.0
      %1683 = vmatprep.subr.mxu0 0.0
      %1684 = vmatpush1.msra.mxu0 0.0
      %1685 = vmatprep.subr.mxu0 0.0
      %1686 = vmatpush1.msra.mxu0 0.0
      %1687 = vmatprep.subr.mxu0 0.0
      %1688 = vmatpush1.msra.mxu0 0.0
      %1689 = vmatprep.subr.mxu0 0.0
      %1690 = vmatpush1.msra.mxu0 0.0
      %1691 = vmatprep.subr.mxu0 0.0
      %1692 = vmatpush1.msra.mxu0 0.0
      %1693 = vmatprep.subr.mxu0 0.0
      %1694 = vmatpush1.msra.mxu0 0.0
      %1695 = vmatprep.subr.mxu0 0.0
      %1696 = vmatpush1.msra.mxu0 0.0
      %1697 = vmatprep.subr.mxu0 0.0
      %1698 = vmatpush1.msra.mxu0 0.0
      %1699 = vmatprep.subr.mxu0 0.0
      %1700 = vmatpush1.msra.mxu0 %v1667
      %1701 = vmatprep.subr.mxu0 0.0
      %1702 = vmatpush2.msra.mxu0 0.0
      %1703 = vmatprep.subr.mxu0 0.0
      %1704 = vmatpush2.msra.mxu0 0.0
      %1705 = vmatprep.subr.mxu0 0.0
      %1706 = vmatpush2.msra.mxu0 0.0
      %1707 = vmatprep.subr.mxu0 0.0
      %1708 = vmatpush2.msra.mxu0 0.0
      %1709 = vmatprep.subr.mxu0 0.0
      %1710 = vmatpush2.msra.mxu0 0.0
      %1711 = vmatprep.subr.mxu0 0.0
      %1712 = vmatpush2.msra.mxu0 0.0
      %1713 = vmatprep.subr.mxu0 0.0
      %1714 = vmatpush2.msra.mxu0 0.0
      %1715 = vmatprep.subr.mxu0 0.0
      %1716 = vmatpush2.msra.mxu0 0.0
      %1717 = vmatprep.subr.mxu0 0.0
      %1718 = vmatpush2.msra.mxu0 0.0
      %1719 = vmatprep.subr.mxu0 0.0
      %1720 = vmatpush2.msra.mxu0 0.0
      %1721 = vmatprep.subr.mxu0 0.0
      %1722 = vmatpush2.msra.mxu0 0.0
      %1723 = vmatprep.subr.mxu0 0.0
      %1724 = vmatpush2.msra.mxu0 0.0
      %1725 = vmatprep.subr.mxu0 0.0
      %1726 = vmatpush2.msra.mxu0 0.0
      %1727 = vmatprep.subr.mxu0 0.0
      %1728 = vmatpush2.msra.mxu0 0.0
      %1729 = vmatprep.subr.mxu0 0.0
      %1730 = vmatpush2.msra.mxu0 0.0
      %1731 = vmatprep.subr.mxu0 0.0
      %1732 = vmatpush2.msra.mxu0 0.0
      %1733 = vmatprep.mubr.f32.mxu0 0.0
      %1734 = vmatmul.mubr.f32.gmra.mxu0 %v1665
      %v1735 = vpop.f32.mrf.mxu0
      %v1736 = vadd.f32 %v1658, %v1735
      %v1737 = vpop.f32.mrf.mxu0
      %1738 = vdwg.mxu0
      %v1739 = vlaneseq
      %v1740 = vshrl.u32 %v1739, 7
      %v1741 = vsub.s32 2, %v1740
      %v1742 = vrot.slane %v1301, %v1741
      %v1743 = vmul.f32 %v1386, %v1742
      %v1745 = vsel %vm660, %v1743, 0
      %1747 = vmatprep.subr.mxu0 0.0
      %1748 = vmatpush1.xpose.msra.mxu0 0.0
      %1749 = vmatprep.subr.mxu0 0.0
      %1750 = vmatpush1.xpose.msra.mxu0 0.0
      %1751 = vmatprep.subr.mxu0 0.0
      %1752 = vmatpush1.xpose.msra.mxu0 0.0
      %1753 = vmatprep.subr.mxu0 0.0
      %1754 = vmatpush1.xpose.msra.mxu0 0.0
      %1755 = vmatprep.subr.mxu0 0.0
      %1756 = vmatpush1.xpose.msra.mxu0 0.0
      %1757 = vmatprep.subr.mxu0 0.0
      %1758 = vmatpush1.xpose.msra.mxu0 0.0
      %1759 = vmatprep.subr.mxu0 0.0
      %1760 = vmatpush1.xpose.msra.mxu0 0.0
      %1761 = vmatprep.subr.mxu0 0.0
      %1762 = vmatpush1.xpose.msra.mxu0 0.0
      %1763 = vmatprep.subr.mxu0 0.0
      %1764 = vmatpush1.xpose.msra.mxu0 0.0
      %1765 = vmatprep.subr.mxu0 0.0
      %1766 = vmatpush1.xpose.msra.mxu0 0.0
      %1767 = vmatprep.subr.mxu0 0.0
      %1768 = vmatpush1.xpose.msra.mxu0 0.0
      %1769 = vmatprep.subr.mxu0 0.0
      %1770 = vmatpush1.xpose.msra.mxu0 0.0
      %1771 = vmatprep.subr.mxu0 0.0
      %1772 = vmatpush1.xpose.msra.mxu0 0.0
      %1773 = vmatprep.subr.mxu0 0.0
      %1774 = vmatpush1.xpose.msra.mxu0 0.0
      %1775 = vmatprep.subr.mxu0 0.0
      %1776 = vmatpush1.xpose.msra.mxu0 0.0
      %1777 = vmatprep.subr.mxu0 0.0
      %1778 = vmatpush1.xpose.msra.mxu0 %v1398
      %1779 = vmatprep.subr.mxu0 0.0
      %1780 = vmatpush2.xpose.msra.mxu0 0.0
      %1781 = vmatprep.subr.mxu0 0.0
      %1782 = vmatpush2.xpose.msra.mxu0 0.0
      %1783 = vmatprep.subr.mxu0 0.0
      %1784 = vmatpush2.xpose.msra.mxu0 0.0
      %1785 = vmatprep.subr.mxu0 0.0
      %1786 = vmatpush2.xpose.msra.mxu0 0.0
      %1787 = vmatprep.subr.mxu0 0.0
      %1788 = vmatpush2.xpose.msra.mxu0 0.0
      %1789 = vmatprep.subr.mxu0 0.0
      %1790 = vmatpush2.xpose.msra.mxu0 0.0
      %1791 = vmatprep.subr.mxu0 0.0
      %1792 = vmatpush2.xpose.msra.mxu0 0.0
      %1793 = vmatprep.subr.mxu0 0.0
      %1794 = vmatpush2.xpose.msra.mxu0 0.0
      %1795 = vmatprep.subr.mxu0 0.0
      %1796 = vmatpush2.xpose.msra.mxu0 0.0
      %1797 = vmatprep.subr.mxu0 0.0
      %1798 = vmatpush2.xpose.msra.mxu0 0.0
      %1799 = vmatprep.subr.mxu0 0.0
      %1800 = vmatpush2.xpose.msra.mxu0 0.0
      %1801 = vmatprep.subr.mxu0 0.0
      %1802 = vmatpush2.xpose.msra.mxu0 0.0
      %1803 = vmatprep.subr.mxu0 0.0
      %1804 = vmatpush2.xpose.msra.mxu0 0.0
      %1805 = vmatprep.subr.mxu0 0.0
      %1806 = vmatpush2.xpose.msra.mxu0 0.0
      %1807 = vmatprep.subr.mxu0 0.0
      %1808 = vmatpush2.xpose.msra.mxu0 0.0
      %1809 = vmatprep.subr.mxu0 0.0
      %1810 = vmatpush2.xpose.msra.mxu0 0.0
      %1811 = vmatprep.mubr.f32.mxu0 0.0
      %1812 = vmatmul.mubr.f32.gmra.mxu0 %v1745
      %v1813 = vpop.f32.mrf.mxu0
      %v1814 = vadd.f32 0.0, %v1813
      %v1815 = vpop.f32.mrf.mxu0
      %1816 = vdwg.mxu0
      %v1817 = vsel %vm1470, %v1814, -inf
      %1818 = vmax.xlane.f32.xlu0 %v1817
      %v1819 = vpop.xlane.xlu0 %1818
      %v1820 = vsub.f32 %v1814, %v1819
      %v1821 = vmul.f32 %v1820, 1.442695
      %v1822 = vpow.pop %v1821
      %v1823 = vsel %vm1470, %v1822, 0.0
      %1824 = vadd.xlane.f32.xlu0 %v1823
      %v1825 = vpop.xlane.xlu0 %1824
      %v1826 = vrcp.pop %v1825
      %v1827 = vmul.f32 %v1822, %v1826
      %1829 = vrot.lane.b32.xlu0 %v1742, 64
      %v1830 = vpop.permute.xlu0 %1829
      %v1832 = vmul.f32 %v1383, %v1830
      %1834 = vrot.lane.b32.xlu0 %v1832, 64
      %v1835 = vpop.permute.xlu0 %1834
      %v1837 = vsel %vm1584, %v1827, 0
      %v1839 = vsel %vm1588, %v1835, 0
      %1841 = vmatprep.subr.mxu0 0.0
      %1842 = vmatpush1.msra.mxu0 0.0
      %1843 = vmatprep.subr.mxu0 0.0
      %1844 = vmatpush1.msra.mxu0 0.0
      %1845 = vmatprep.subr.mxu0 0.0
      %1846 = vmatpush1.msra.mxu0 0.0
      %1847 = vmatprep.subr.mxu0 0.0
      %1848 = vmatpush1.msra.mxu0 0.0
      %1849 = vmatprep.subr.mxu0 0.0
      %1850 = vmatpush1.msra.mxu0 0.0
      %1851 = vmatprep.subr.mxu0 0.0
      %1852 = vmatpush1.msra.mxu0 0.0
      %1853 = vmatprep.subr.mxu0 0.0
      %1854 = vmatpush1.msra.mxu0 0.0
      %1855 = vmatprep.subr.mxu0 0.0
      %1856 = vmatpush1.msra.mxu0 0.0
      %1857 = vmatprep.subr.mxu0 0.0
      %1858 = vmatpush1.msra.mxu0 0.0
      %1859 = vmatprep.subr.mxu0 0.0
      %1860 = vmatpush1.msra.mxu0 0.0
      %1861 = vmatprep.subr.mxu0 0.0
      %1862 = vmatpush1.msra.mxu0 0.0
      %1863 = vmatprep.subr.mxu0 0.0
      %1864 = vmatpush1.msra.mxu0 0.0
      %1865 = vmatprep.subr.mxu0 0.0
      %1866 = vmatpush1.msra.mxu0 0.0
      %1867 = vmatprep.subr.mxu0 0.0
      %1868 = vmatpush1.msra.mxu0 0.0
      %1869 = vmatprep.subr.mxu0 0.0
      %1870 = vmatpush1.msra.mxu0 0.0
      %1871 = vmatprep.subr.mxu0 0.0
      %1872 = vmatpush1.msra.mxu0 %v1839
      %1873 = vmatprep.subr.mxu0 0.0
      %1874 = vmatpush2.msra.mxu0 0.0
      %1875 = vmatprep.subr.mxu0 0.0
      %1876 = vmatpush2.msra.mxu0 0.0
      %1877 = vmatprep.subr.mxu0 0.0
      %1878 = vmatpush2.msra.mxu0 0.0
      %1879 = vmatprep.subr.mxu0 0.0
      %1880 = vmatpush2.msra.mxu0 0.0
      %1881 = vmatprep.subr.mxu0 0.0
      %1882 = vmatpush2.msra.mxu0 0.0
      %1883 = vmatprep.subr.mxu0 0.0
      %1884 = vmatpush2.msra.mxu0 0.0
      %1885 = vmatprep.subr.mxu0 0.0
      %1886 = vmatpush2.msra.mxu0 0.0
      %1887 = vmatprep.subr.mxu0 0.0
      %1888 = vmatpush2.msra.mxu0 0.0
      %1889 = vmatprep.subr.mxu0 0.0
      %1890 = vmatpush2.msra.mxu0 0.0
      %1891 = vmatprep.subr.mxu0 0.0
      %1892 = vmatpush2.msra.mxu0 0.0
      %1893 = vmatprep.subr.mxu0 0.0
      %1894 = vmatpush2.msra.mxu0 0.0
      %1895 = vmatprep.subr.mxu0 0.0
      %1896 = vmatpush2.msra.mxu0 0.0
      %1897 = vmatprep.subr.mxu0 0.0
      %1898 = vmatpush2.msra.mxu0 0.0
      %1899 = vmatprep.subr.mxu0 0.0
      %1900 = vmatpush2.msra.mxu0 0.0
      %1901 = vmatprep.subr.mxu0 0.0
      %1902 = vmatpush2.msra.mxu0 0.0
      %1903 = vmatprep.subr.mxu0 0.0
      %1904 = vmatpush2.msra.mxu0 0.0
      %1905 = vmatprep.mubr.f32.mxu0 0.0
      %1906 = vmatmul.mubr.f32.gmra.mxu0 %v1837
      %v1907 = vpop.f32.mrf.mxu0
      %v1908 = vadd.f32 0.0, %v1907
      %v1909 = vpop.f32.mrf.mxu0
      %1910 = vdwg.mxu0
      %v1911 = vadd.f32 %v1736, %v1908
      %v1912 = vlaneseq
      %v1913 = vshrl.u32 %v1912, 7
      %v1914 = vsub.s32 3, %v1913
      %v1915 = vrot.slane %v1301, %v1914
      %v1916 = vmul.f32 %v1386, %v1915
      %v1918 = vsel %vm660, %v1916, 0
      %1920 = vmatprep.subr.mxu0 0.0
      %1921 = vmatpush1.xpose.msra.mxu0 0.0
      %1922 = vmatprep.subr.mxu0 0.0
      %1923 = vmatpush1.xpose.msra.mxu0 0.0
      %1924 = vmatprep.subr.mxu0 0.0
      %1925 = vmatpush1.xpose.msra.mxu0 0.0
      %1926 = vmatprep.subr.mxu0 0.0
      %1927 = vmatpush1.xpose.msra.mxu0 0.0
      %1928 = vmatprep.subr.mxu0 0.0
      %1929 = vmatpush1.xpose.msra.mxu0 0.0
      %1930 = vmatprep.subr.mxu0 0.0
      %1931 = vmatpush1.xpose.msra.mxu0 0.0
      %1932 = vmatprep.subr.mxu0 0.0
      %1933 = vmatpush1.xpose.msra.mxu0 0.0
      %1934 = vmatprep.subr.mxu0 0.0
      %1935 = vmatpush1.xpose.msra.mxu0 0.0
      %1936 = vmatprep.subr.mxu0 0.0
      %1937 = vmatpush1.xpose.msra.mxu0 0.0
      %1938 = vmatprep.subr.mxu0 0.0
      %1939 = vmatpush1.xpose.msra.mxu0 0.0
      %1940 = vmatprep.subr.mxu0 0.0
      %1941 = vmatpush1.xpose.msra.mxu0 0.0
      %1942 = vmatprep.subr.mxu0 0.0
      %1943 = vmatpush1.xpose.msra.mxu0 0.0
      %1944 = vmatprep.subr.mxu0 0.0
      %1945 = vmatpush1.xpose.msra.mxu0 0.0
      %1946 = vmatprep.subr.mxu0 0.0
      %1947 = vmatpush1.xpose.msra.mxu0 0.0
      %1948 = vmatprep.subr.mxu0 0.0
      %1949 = vmatpush1.xpose.msra.mxu0 0.0
      %1950 = vmatprep.subr.mxu0 0.0
      %1951 = vmatpush1.xpose.msra.mxu0 %v1398
      %1952 = vmatprep.subr.mxu0 0.0
      %1953 = vmatpush2.xpose.msra.mxu0 0.0
      %1954 = vmatprep.subr.mxu0 0.0
      %1955 = vmatpush2.xpose.msra.mxu0 0.0
      %1956 = vmatprep.subr.mxu0 0.0
      %1957 = vmatpush2.xpose.msra.mxu0 0.0
      %1958 = vmatprep.subr.mxu0 0.0
      %1959 = vmatpush2.xpose.msra.mxu0 0.0
      %1960 = vmatprep.subr.mxu0 0.0
      %1961 = vmatpush2.xpose.msra.mxu0 0.0
      %1962 = vmatprep.subr.mxu0 0.0
      %1963 = vmatpush2.xpose.msra.mxu0 0.0
      %1964 = vmatprep.subr.mxu0 0.0
      %1965 = vmatpush2.xpose.msra.mxu0 0.0
      %1966 = vmatprep.subr.mxu0 0.0
      %1967 = vmatpush2.xpose.msra.mxu0 0.0
      %1968 = vmatprep.subr.mxu0 0.0
      %1969 = vmatpush2.xpose.msra.mxu0 0.0
      %1970 = vmatprep.subr.mxu0 0.0
      %1971 = vmatpush2.xpose.msra.mxu0 0.0
      %1972 = vmatprep.subr.mxu0 0.0
      %1973 = vmatpush2.xpose.msra.mxu0 0.0
      %1974 = vmatprep.subr.mxu0 0.0
      %1975 = vmatpush2.xpose.msra.mxu0 0.0
      %1976 = vmatprep.subr.mxu0 0.0
      %1977 = vmatpush2.xpose.msra.mxu0 0.0
      %1978 = vmatprep.subr.mxu0 0.0
      %1979 = vmatpush2.xpose.msra.mxu0 0.0
      %1980 = vmatprep.subr.mxu0 0.0
      %1981 = vmatpush2.xpose.msra.mxu0 0.0
      %1982 = vmatprep.subr.mxu0 0.0
      %1983 = vmatpush2.xpose.msra.mxu0 0.0
      %1984 = vmatprep.mubr.f32.mxu0 0.0
      %1985 = vmatmul.mubr.f32.gmra.mxu0 %v1918
      %v1986 = vpop.f32.mrf.mxu0
      %v1987 = vadd.f32 0.0, %v1986
      %v1988 = vpop.f32.mrf.mxu0
      %1989 = vdwg.mxu0
      %v1990 = vsel %vm1470, %v1987, -inf
      %1991 = vmax.xlane.f32.xlu0 %v1990
      %v1992 = vpop.xlane.xlu0 %1991
      %v1993 = vsub.f32 %v1987, %v1992
      %v1994 = vmul.f32 %v1993, 1.442695
      %v1995 = vpow.pop %v1994
      %v1996 = vsel %vm1470, %v1995, 0.0
      %1997 = vadd.xlane.f32.xlu0 %v1996
      %v1998 = vpop.xlane.xlu0 %1997
      %v1999 = vrcp.pop %v1998
      %v2000 = vmul.f32 %v1995, %v1999
      %2002 = vrot.lane.b32.xlu0 %v1915, 64
      %v2003 = vpop.permute.xlu0 %2002
      %v2005 = vmul.f32 %v1383, %v2003
      %2007 = vrot.lane.b32.xlu0 %v2005, 64
      %v2008 = vpop.permute.xlu0 %2007
      %v2010 = vsel %vm1584, %v2000, 0
      %v2012 = vsel %vm1588, %v2008, 0
      %2014 = vmatprep.subr.mxu0 0.0
      %2015 = vmatpush1.msra.mxu0 0.0
      %2016 = vmatprep.subr.mxu0 0.0
      %2017 = vmatpush1.msra.mxu0 0.0
      %2018 = vmatprep.subr.mxu0 0.0
      %2019 = vmatpush1.msra.mxu0 0.0
      %2020 = vmatprep.subr.mxu0 0.0
      %2021 = vmatpush1.msra.mxu0 0.0
      %2022 = vmatprep.subr.mxu0 0.0
      %2023 = vmatpush1.msra.mxu0 0.0
      %2024 = vmatprep.subr.mxu0 0.0
      %2025 = vmatpush1.msra.mxu0 0.0
      %2026 = vmatprep.subr.mxu0 0.0
      %2027 = vmatpush1.msra.mxu0 0.0
      %2028 = vmatprep.subr.mxu0 0.0
      %2029 = vmatpush1.msra.mxu0 0.0
      %2030 = vmatprep.subr.mxu0 0.0
      %2031 = vmatpush1.msra.mxu0 0.0
      %2032 = vmatprep.subr.mxu0 0.0
      %2033 = vmatpush1.msra.mxu0 0.0
      %2034 = vmatprep.subr.mxu0 0.0
      %2035 = vmatpush1.msra.mxu0 0.0
      %2036 = vmatprep.subr.mxu0 0.0
      %2037 = vmatpush1.msra.mxu0 0.0
      %2038 = vmatprep.subr.mxu0 0.0
      %2039 = vmatpush1.msra.mxu0 0.0
      %2040 = vmatprep.subr.mxu0 0.0
      %2041 = vmatpush1.msra.mxu0 0.0
      %2042 = vmatprep.subr.mxu0 0.0
      %2043 = vmatpush1.msra.mxu0 0.0
      %2044 = vmatprep.subr.mxu0 0.0
      %2045 = vmatpush1.msra.mxu0 %v2012
      %2046 = vmatprep.subr.mxu0 0.0
      %2047 = vmatpush2.msra.mxu0 0.0
      %2048 = vmatprep.subr.mxu0 0.0
      %2049 = vmatpush2.msra.mxu0 0.0
      %2050 = vmatprep.subr.mxu0 0.0
      %2051 = vmatpush2.msra.mxu0 0.0
      %2052 = vmatprep.subr.mxu0 0.0
      %2053 = vmatpush2.msra.mxu0 0.0
      %2054 = vmatprep.subr.mxu0 0.0
      %2055 = vmatpush2.msra.mxu0 0.0
      %2056 = vmatprep.subr.mxu0 0.0
      %2057 = vmatpush2.msra.mxu0 0.0
      %2058 = vmatprep.subr.mxu0 0.0
      %2059 = vmatpush2.msra.mxu0 0.0
      %2060 = vmatprep.subr.mxu0 0.0
      %2061 = vmatpush2.msra.mxu0 0.0
      %2062 = vmatprep.subr.mxu0 0.0
      %2063 = vmatpush2.msra.mxu0 0.0
      %2064 = vmatprep.subr.mxu0 0.0
      %2065 = vmatpush2.msra.mxu0 0.0
      %2066 = vmatprep.subr.mxu0 0.0
      %2067 = vmatpush2.msra.mxu0 0.0
      %2068 = vmatprep.subr.mxu0 0.0
      %2069 = vmatpush2.msra.mxu0 0.0
      %2070 = vmatprep.subr.mxu0 0.0
      %2071 = vmatpush2.msra.mxu0 0.0
      %2072 = vmatprep.subr.mxu0 0.0
      %2073 = vmatpush2.msra.mxu0 0.0
      %2074 = vmatprep.subr.mxu0 0.0
      %2075 = vmatpush2.msra.mxu0 0.0
      %2076 = vmatprep.subr.mxu0 0.0
      %2077 = vmatpush2.msra.mxu0 0.0
      %2078 = vmatprep.mubr.f32.mxu0 0.0
      %2079 = vmatmul.mubr.f32.gmra.mxu0 %v2010
      %v2080 = vpop.f32.mrf.mxu0
      %v2081 = vadd.f32 0.0, %v2080
      %v2082 = vpop.f32.mrf.mxu0
      %2083 = vdwg.mxu0
      %v2084 = vadd.f32 %v1911, %v2081
      %v2085 = vld [vmem:[%s6] sm:$0xff]
      %v2086 = vld [vmem:[%s6 + $0x8] sm:$0xff]
      %v2087 = vld [vmem:[%s6 + $0x10] sm:$0xff]
      %v2088 = vld [vmem:[%s6 + $0x18] sm:$0xff]
      %v2089 = vld [vmem:[%s7] sm:$0x1]
      %v2091 = vlaneseq
      %v2092 = vshrl.u32 %v2091, 7
      %v2093 = vsub.s32 0, %v2092
      %v2094 = vrot.slane %v2089, %v2093
      %v2097 = vsel %vm660, %v2084, 0
      %2099 = vmatprep.subr.mxu0 0.0
      %2100 = vmatpush1.msra.mxu0 0.0
      %2101 = vmatprep.subr.mxu0 0.0
      %2102 = vmatpush1.msra.mxu0 0.0
      %2103 = vmatprep.subr.mxu0 0.0
      %2104 = vmatpush1.msra.mxu0 0.0
      %2105 = vmatprep.subr.mxu0 0.0
      %2106 = vmatpush1.msra.mxu0 0.0
      %2107 = vmatprep.subr.mxu0 0.0
      %2108 = vmatpush1.msra.mxu0 0.0
      %2109 = vmatprep.subr.mxu0 0.0
      %2110 = vmatpush1.msra.mxu0 0.0
      %2111 = vmatprep.subr.mxu0 0.0
      %2112 = vmatpush1.msra.mxu0 0.0
      %2113 = vmatprep.subr.mxu0 0.0
      %2114 = vmatpush1.msra.mxu0 0.0
      %2115 = vmatprep.subr.mxu0 0.0
      %2116 = vmatpush1.msra.mxu0 0.0
      %2117 = vmatprep.subr.mxu0 0.0
      %2118 = vmatpush1.msra.mxu0 0.0
      %2119 = vmatprep.subr.mxu0 0.0
      %2120 = vmatpush1.msra.mxu0 0.0
      %2121 = vmatprep.subr.mxu0 0.0
      %2122 = vmatpush1.msra.mxu0 0.0
      %2123 = vmatprep.subr.mxu0 0.0
      %2124 = vmatpush1.msra.mxu0 %v2088
      %2125 = vmatprep.subr.mxu0 0.0
      %2126 = vmatpush1.msra.mxu0 %v2087
      %2127 = vmatprep.subr.mxu0 0.0
      %2128 = vmatpush1.msra.mxu0 %v2086
      %2129 = vmatprep.subr.mxu0 0.0
      %2130 = vmatpush1.msra.mxu0 %v2085
      %2131 = vmatprep.subr.mxu0 0.0
      %2132 = vmatpush2.msra.mxu0 0.0
      %2133 = vmatprep.subr.mxu0 0.0
      %2134 = vmatpush2.msra.mxu0 0.0
      %2135 = vmatprep.subr.mxu0 0.0
      %2136 = vmatpush2.msra.mxu0 0.0
      %2137 = vmatprep.subr.mxu0 0.0
      %2138 = vmatpush2.msra.mxu0 0.0
      %2139 = vmatprep.subr.mxu0 0.0
      %2140 = vmatpush2.msra.mxu0 0.0
      %2141 = vmatprep.subr.mxu0 0.0
      %2142 = vmatpush2.msra.mxu0 0.0
      %2143 = vmatprep.subr.mxu0 0.0
      %2144 = vmatpush2.msra.mxu0 0.0
      %2145 = vmatprep.subr.mxu0 0.0
      %2146 = vmatpush2.msra.mxu0 0.0
      %2147 = vmatprep.subr.mxu0 0.0
      %2148 = vmatpush2.msra.mxu0 0.0
      %2149 = vmatprep.subr.mxu0 0.0
      %2150 = vmatpush2.msra.mxu0 0.0
      %2151 = vmatprep.subr.mxu0 0.0
      %2152 = vmatpush2.msra.mxu0 0.0
      %2153 = vmatprep.subr.mxu0 0.0
      %2154 = vmatpush2.msra.mxu0 0.0
      %2155 = vmatprep.subr.mxu0 0.0
      %2156 = vmatpush2.msra.mxu0 0.0
      %2157 = vmatprep.subr.mxu0 0.0
      %2158 = vmatpush2.msra.mxu0 0.0
      %2159 = vmatprep.subr.mxu0 0.0
      %2160 = vmatpush2.msra.mxu0 0.0
      %2161 = vmatprep.subr.mxu0 0.0
      %2162 = vmatpush2.msra.mxu0 0.0
      %2163 = vmatprep.mubr.f32.mxu0 0.0
      %2164 = vmatmul.mubr.f32.gmra.mxu0 %v2097
      %v2165 = vpop.f32.mrf.mxu0
      %v2166 = vadd.f32 %v2094, %v2165
      %v2167 = vpop.f32.mrf.mxu0
      %2168 = vdwg.mxu0
      %v2169 = vld [vmem:[%s8] sm:$0xff]
      %v2170 = vld [vmem:[%s8 + $0x8] sm:$0xff]
      %v2171 = vld [vmem:[%s8 + $0x10] sm:$0xff]
      %v2172 = vld [vmem:[%s8 + $0x18] sm:$0xff]
      %v2173 = vld [vmem:[%s9] sm:$0x1]
      %v2175 = vlaneseq
      %v2176 = vshrl.u32 %v2175, 7
      %v2177 = vsub.s32 0, %v2176
      %v2178 = vrot.slane %v2173, %v2177
      %v2181 = vsel %vm660, %v2166, 0
      %2183 = vmatprep.subr.mxu0 0.0
      %2184 = vmatpush1.msra.mxu0 0.0
      %2185 = vmatprep.subr.mxu0 0.0
      %2186 = vmatpush1.msra.mxu0 0.0
      %2187 = vmatprep.subr.mxu0 0.0
      %2188 = vmatpush1.msra.mxu0 0.0
      %2189 = vmatprep.subr.mxu0 0.0
      %2190 = vmatpush1.msra.mxu0 0.0
      %2191 = vmatprep.subr.mxu0 0.0
      %2192 = vmatpush1.msra.mxu0 0.0
      %2193 = vmatprep.subr.mxu0 0.0
      %2194 = vmatpush1.msra.mxu0 0.0
      %2195 = vmatprep.subr.mxu0 0.0
      %2196 = vmatpush1.msra.mxu0 0.0
      %2197 = vmatprep.subr.mxu0 0.0
      %2198 = vmatpush1.msra.mxu0 0.0
      %2199 = vmatprep.subr.mxu0 0.0
      %2200 = vmatpush1.msra.mxu0 0.0
      %2201 = vmatprep.subr.mxu0 0.0
      %2202 = vmatpush1.msra.mxu0 0.0
      %2203 = vmatprep.subr.mxu0 0.0
      %2204 = vmatpush1.msra.mxu0 0.0
      %2205 = vmatprep.subr.mxu0 0.0
      %2206 = vmatpush1.msra.mxu0 0.0
      %2207 = vmatprep.subr.mxu0 0.0
      %2208 = vmatpush1.msra.mxu0 %v2172
      %2209 = vmatprep.subr.mxu0 0.0
      %2210 = vmatpush1.msra.mxu0 %v2171
      %2211 = vmatprep.subr.mxu0 0.0
      %2212 = vmatpush1.msra.mxu0 %v2170
      %2213 = vmatprep.subr.mxu0 0.0
      %2214 = vmatpush1.msra.mxu0 %v2169
      %2215 = vmatprep.subr.mxu0 0.0
      %2216 = vmatpush2.msra.mxu0 0.0
      %2217 = vmatprep.subr.mxu0 0.0
      %2218 = vmatpush2.msra.mxu0 0.0
      %2219 = vmatprep.subr.mxu0 0.0
      %2220 = vmatpush2.msra.mxu0 0.0
      %2221 = vmatprep.subr.mxu0 0.0
      %2222 = vmatpush2.msra.mxu0 0.0
      %2223 = vmatprep.subr.mxu0 0.0
      %2224 = vmatpush2.msra.mxu0 0.0
      %2225 = vmatprep.subr.mxu0 0.0
      %2226 = vmatpush2.msra.mxu0 0.0
      %2227 = vmatprep.subr.mxu0 0.0
      %2228 = vmatpush2.msra.mxu0 0.0
      %2229 = vmatprep.subr.mxu0 0.0
      %2230 = vmatpush2.msra.mxu0 0.0
      %2231 = vmatprep.subr.mxu0 0.0
      %2232 = vmatpush2.msra.mxu0 0.0
      %2233 = vmatprep.subr.mxu0 0.0
      %2234 = vmatpush2.msra.mxu0 0.0
      %2235 = vmatprep.subr.mxu0 0.0
      %2236 = vmatpush2.msra.mxu0 0.0
      %2237 = vmatprep.subr.mxu0 0.0
      %2238 = vmatpush2.msra.mxu0 0.0
      %2239 = vmatprep.subr.mxu0 0.0
      %2240 = vmatpush2.msra.mxu0 0.0
      %2241 = vmatprep.subr.mxu0 0.0
      %2242 = vmatpush2.msra.mxu0 0.0
      %2243 = vmatprep.subr.mxu0 0.0
      %2244 = vmatpush2.msra.mxu0 0.0
      %2245 = vmatprep.subr.mxu0 0.0
      %2246 = vmatpush2.msra.mxu0 0.0
      %2247 = vmatprep.mubr.f32.mxu0 0.0
      %2248 = vmatmul.mubr.f32.gmra.mxu0 %v2181
      %v2249 = vpop.f32.mrf.mxu0
      %v2250 = vadd.f32 %v2178, %v2249
      %v2251 = vpop.f32.mrf.mxu0
      %2252 = vdwg.mxu0
      %vm2253 = vcmp.gt.f32.partialorder %v2250, 0.0
      %v2254 = vmin.f32 %v2250, 0.0
      %v2255 = vmul.f32 %v2254, 1.442695
      %v2256 = vpow.pop %v2255
      %v2257 = vsub.f32 %v2256, 1.0
      %v2258 = vsel %vm2253, %v2250, %v2257
      %v2259 = vld [vmem:[%s10] sm:$0xff]
      %v2260 = vld [vmem:[%s10 + $0x8] sm:$0xff]
      %v2261 = vld [vmem:[%s10 + $0x10] sm:$0xff]
      %v2262 = vld [vmem:[%s10 + $0x18] sm:$0xff]
      %v2263 = vld [vmem:[%s11] sm:$0x1]
      %v2265 = vlaneseq
      %v2266 = vshrl.u32 %v2265, 7
      %v2267 = vsub.s32 0, %v2266
      %v2268 = vrot.slane %v2263, %v2267
      %v2271 = vsel %vm660, %v2258, 0
      %2273 = vmatprep.subr.mxu0 0.0
      %2274 = vmatpush1.msra.mxu0 0.0
      %2275 = vmatprep.subr.mxu0 0.0
      %2276 = vmatpush1.msra.mxu0 0.0
      %2277 = vmatprep.subr.mxu0 0.0
      %2278 = vmatpush1.msra.mxu0 0.0
      %2279 = vmatprep.subr.mxu0 0.0
      %2280 = vmatpush1.msra.mxu0 0.0
      %2281 = vmatprep.subr.mxu0 0.0
      %2282 = vmatpush1.msra.mxu0 0.0
      %2283 = vmatprep.subr.mxu0 0.0
      %2284 = vmatpush1.msra.mxu0 0.0
      %2285 = vmatprep.subr.mxu0 0.0
      %2286 = vmatpush1.msra.mxu0 0.0
      %2287 = vmatprep.subr.mxu0 0.0
      %2288 = vmatpush1.msra.mxu0 0.0
      %2289 = vmatprep.subr.mxu0 0.0
      %2290 = vmatpush1.msra.mxu0 0.0
      %2291 = vmatprep.subr.mxu0 0.0
      %2292 = vmatpush1.msra.mxu0 0.0
      %2293 = vmatprep.subr.mxu0 0.0
      %2294 = vmatpush1.msra.mxu0 0.0
      %2295 = vmatprep.subr.mxu0 0.0
      %2296 = vmatpush1.msra.mxu0 0.0
      %2297 = vmatprep.subr.mxu0 0.0
      %2298 = vmatpush1.msra.mxu0 %v2262
      %2299 = vmatprep.subr.mxu0 0.0
      %2300 = vmatpush1.msra.mxu0 %v2261
      %2301 = vmatprep.subr.mxu0 0.0
      %2302 = vmatpush1.msra.mxu0 %v2260
      %2303 = vmatprep.subr.mxu0 0.0
      %2304 = vmatpush1.msra.mxu0 %v2259
      %2305 = vmatprep.subr.mxu0 0.0
      %2306 = vmatpush2.msra.mxu0 0.0
      %2307 = vmatprep.subr.mxu0 0.0
      %2308 = vmatpush2.msra.mxu0 0.0
      %2309 = vmatprep.subr.mxu0 0.0
      %2310 = vmatpush2.msra.mxu0 0.0
      %2311 = vmatprep.subr.mxu0 0.0
      %2312 = vmatpush2.msra.mxu0 0.0
      %2313 = vmatprep.subr.mxu0 0.0
      %2314 = vmatpush2.msra.mxu0 0.0
      %2315 = vmatprep.subr.mxu0 0.0
      %2316 = vmatpush2.msra.mxu0 0.0
      %2317 = vmatprep.subr.mxu0 0.0
      %2318 = vmatpush2.msra.mxu0 0.0
      %2319 = vmatprep.subr.mxu0 0.0
      %2320 = vmatpush2.msra.mxu0 0.0
      %2321 = vmatprep.subr.mxu0 0.0
      %2322 = vmatpush2.msra.mxu0 0.0
      %2323 = vmatprep.subr.mxu0 0.0
      %2324 = vmatpush2.msra.mxu0 0.0
      %2325 = vmatprep.subr.mxu0 0.0
      %2326 = vmatpush2.msra.mxu0 0.0
      %2327 = vmatprep.subr.mxu0 0.0
      %2328 = vmatpush2.msra.mxu0 0.0
      %2329 = vmatprep.subr.mxu0 0.0
      %2330 = vmatpush2.msra.mxu0 0.0
      %2331 = vmatprep.subr.mxu0 0.0
      %2332 = vmatpush2.msra.mxu0 0.0
      %2333 = vmatprep.subr.mxu0 0.0
      %2334 = vmatpush2.msra.mxu0 0.0
      %2335 = vmatprep.subr.mxu0 0.0
      %2336 = vmatpush2.msra.mxu0 0.0
      %2337 = vmatprep.mubr.f32.mxu0 0.0
      %2338 = vmatmul.mubr.f32.gmra.mxu0 %v2271
      %v2339 = vpop.f32.mrf.mxu0
      %v2340 = vadd.f32 %v2268, %v2339
      %v2341 = vpop.f32.mrf.mxu0
      %2342 = vdwg.mxu0
      %v2343 = vadd.f32 %v2340, %v1298
      %vm2344 = vcmask 259072
      %v2345 = vsel %vm2344, %v2343, 0.0
      %2346 = vadd.xlane.f32.xlu0 %v2345
      %v2347 = vpop.xlane.xlu0 %2346
      %v2348 = vrcp.pop 32.0
      %v2349 = vmul.f32 %v2347, %v2348
      %v2350 = vsub.f32 %v2343, %v2349
      %v2351 = vmul.f32 %v2350, %v2350
      %v2352 = vsel %vm2344, %v2351, 0.0
      %2353 = vadd.xlane.f32.xlu0 %v2352
      %v2354 = vpop.xlane.xlu0 %2353
      %v2355 = vmul.f32 %v2354, %v2348
      %v2356 = vadd.f32 %v2355, 1e-05
      %v2357 = vrsqrt.pop %v2356
      %v2358 = vmul.f32 %v2350, %v2357
      %v2359 = vld [vmem:[%s12] sm:$0x1]
      %v2361 = vlaneseq
      %v2362 = vshrl.u32 %v2361, 7
      %v2363 = vsub.s32 0, %v2362
      %v2364 = vrot.slane %v2359, %v2363
      %v2366 = vmul.f32 %v2358, %v2364
      %v2367 = vld [vmem:[%s13] sm:$0x1]
      %v2369 = vlaneseq
      %v2370 = vshrl.u32 %v2369, 7
      %v2371 = vsub.s32 0, %v2370
      %v2372 = vrot.slane %v2367, %v2371
      %v2374 = vadd.f32 %v2366, %v2372
      %s2375 = scalar_lea.vmem %s4, 32
      %v2376 = vld [vmem:[%s2375] sm:$0xff]
      %v2377 = vld [vmem:[%s2375 + $0x8] sm:$0xff]
      %v2378 = vld [vmem:[%s2375 + $0x10] sm:$0xff]
      %v2379 = vld [vmem:[%s2375 + $0x18] sm:$0xff]
      %s2380 = scalar_lea.vmem %s5, 1
      %v2381 = vld [vmem:[%s2380] sm:$0x1]
      %v2383 = vlaneseq
      %v2384 = vshrl.u32 %v2383, 7
      %v2385 = vsub.s32 0, %v2384
      %v2386 = vrot.slane %v2381, %v2385
      %v2389 = vsel %vm660, %v2374, 0
      %2391 = vmatprep.subr.mxu0 0.0
      %2392 = vmatpush1.msra.mxu0 0.0
      %2393 = vmatprep.subr.mxu0 0.0
      %2394 = vmatpush1.msra.mxu0 0.0
      %2395 = vmatprep.subr.mxu0 0.0
      %2396 = vmatpush1.msra.mxu0 0.0
      %2397 = vmatprep.subr.mxu0 0.0
      %2398 = vmatpush1.msra.mxu0 0.0
      %2399 = vmatprep.subr.mxu0 0.0
      %2400 = vmatpush1.msra.mxu0 0.0
      %2401 = vmatprep.subr.mxu0 0.0
      %2402 = vmatpush1.msra.mxu0 0.0
      %2403 = vmatprep.subr.mxu0 0.0
      %2404 = vmatpush1.msra.mxu0 0.0
      %2405 = vmatprep.subr.mxu0 0.0
      %2406 = vmatpush1.msra.mxu0 0.0
      %2407 = vmatprep.subr.mxu0 0.0
      %2408 = vmatpush1.msra.mxu0 0.0
      %2409 = vmatprep.subr.mxu0 0.0
      %2410 = vmatpush1.msra.mxu0 0.0
      %2411 = vmatprep.subr.mxu0 0.0
      %2412 = vmatpush1.msra.mxu0 0.0
      %2413 = vmatprep.subr.mxu0 0.0
      %2414 = vmatpush1.msra.mxu0 0.0
      %2415 = vmatprep.subr.mxu0 0.0
      %2416 = vmatpush1.msra.mxu0 %v2379
      %2417 = vmatprep.subr.mxu0 0.0
      %2418 = vmatpush1.msra.mxu0 %v2378
      %2419 = vmatprep.subr.mxu0 0.0
      %2420 = vmatpush1.msra.mxu0 %v2377
      %2421 = vmatprep.subr.mxu0 0.0
      %2422 = vmatpush1.msra.mxu0 %v2376
      %2423 = vmatprep.subr.mxu0 0.0
      %2424 = vmatpush2.msra.mxu0 0.0
      %2425 = vmatprep.subr.mxu0 0.0
      %2426 = vmatpush2.msra.mxu0 0.0
      %2427 = vmatprep.subr.mxu0 0.0
      %2428 = vmatpush2.msra.mxu0 0.0
      %2429 = vmatprep.subr.mxu0 0.0
      %2430 = vmatpush2.msra.mxu0 0.0
      %2431 = vmatprep.subr.mxu0 0.0
      %2432 = vmatpush2.msra.mxu0 0.0
      %2433 = vmatprep.subr.mxu0 0.0
      %2434 = vmatpush2.msra.mxu0 0.0
      %2435 = vmatprep.subr.mxu0 0.0
      %2436 = vmatpush2.msra.mxu0 0.0
      %2437 = vmatprep.subr.mxu0 0.0
      %2438 = vmatpush2.msra.mxu0 0.0
      %2439 = vmatprep.subr.mxu0 0.0
      %2440 = vmatpush2.msra.mxu0 0.0
      %2441 = vmatprep.subr.mxu0 0.0
      %2442 = vmatpush2.msra.mxu0 0.0
      %2443 = vmatprep.subr.mxu0 0.0
      %2444 = vmatpush2.msra.mxu0 0.0
      %2445 = vmatprep.subr.mxu0 0.0
      %2446 = vmatpush2.msra.mxu0 0.0
      %2447 = vmatprep.subr.mxu0 0.0
      %2448 = vmatpush2.msra.mxu0 0.0
      %2449 = vmatprep.subr.mxu0 0.0
      %2450 = vmatpush2.msra.mxu0 0.0
      %2451 = vmatprep.subr.mxu0 0.0
      %2452 = vmatpush2.msra.mxu0 0.0
      %2453 = vmatprep.subr.mxu0 0.0
      %2454 = vmatpush2.msra.mxu0 0.0
      %2455 = vmatprep.mubr.f32.mxu0 0.0
      %2456 = vmatmul.mubr.f32.gmra.mxu0 %v2389
      %v2457 = vpop.f32.mrf.mxu0
      %v2458 = vadd.f32 %v2386, %v2457
      %v2459 = vpop.f32.mrf.mxu0
      %2460 = vdwg.mxu0
      %v2461 = vmul.f32 %v2458, 0.35355338
      %v2462 = vmul.f32 %v2461, %v1390
      %2464 = vrot.lane.b32.xlu0 %v2458, 96
      %v2465 = vpop.permute.xlu0 %2464
      %v2467 = vsel %vm660, %v2462, 0
      %v2469 = vsel %vm660, %v2465, 0
      %2471 = vmatprep.subr.mxu0 0.0
      %2472 = vmatpush1.xpose.msra.mxu0 0.0
      %2473 = vmatprep.subr.mxu0 0.0
      %2474 = vmatpush1.xpose.msra.mxu0 0.0
      %2475 = vmatprep.subr.mxu0 0.0
      %2476 = vmatpush1.xpose.msra.mxu0 0.0
      %2477 = vmatprep.subr.mxu0 0.0
      %2478 = vmatpush1.xpose.msra.mxu0 0.0
      %2479 = vmatprep.subr.mxu0 0.0
      %2480 = vmatpush1.xpose.msra.mxu0 0.0
      %2481 = vmatprep.subr.mxu0 0.0
      %2482 = vmatpush1.xpose.msra.mxu0 0.0
      %2483 = vmatprep.subr.mxu0 0.0
      %2484 = vmatpush1.xpose.msra.mxu0 0.0
      %2485 = vmatprep.subr.mxu0 0.0
      %2486 = vmatpush1.xpose.msra.mxu0 0.0
      %2487 = vmatprep.subr.mxu0 0.0
      %2488 = vmatpush1.xpose.msra.mxu0 0.0
      %2489 = vmatprep.subr.mxu0 0.0
      %2490 = vmatpush1.xpose.msra.mxu0 0.0
      %2491 = vmatprep.subr.mxu0 0.0
      %2492 = vmatpush1.xpose.msra.mxu0 0.0
      %2493 = vmatprep.subr.mxu0 0.0
      %2494 = vmatpush1.xpose.msra.mxu0 0.0
      %2495 = vmatprep.subr.mxu0 0.0
      %2496 = vmatpush1.xpose.msra.mxu0 0.0
      %2497 = vmatprep.subr.mxu0 0.0
      %2498 = vmatpush1.xpose.msra.mxu0 0.0
      %2499 = vmatprep.subr.mxu0 0.0
      %2500 = vmatpush1.xpose.msra.mxu0 0.0
      %2501 = vmatprep.subr.mxu0 0.0
      %2502 = vmatpush1.xpose.msra.mxu0 %v2469
      %2503 = vmatprep.subr.mxu0 0.0
      %2504 = vmatpush2.xpose.msra.mxu0 0.0
      %2505 = vmatprep.subr.mxu0 0.0
      %2506 = vmatpush2.xpose.msra.mxu0 0.0
      %2507 = vmatprep.subr.mxu0 0.0
      %2508 = vmatpush2.xpose.msra.mxu0 0.0
      %2509 = vmatprep.subr.mxu0 0.0
      %2510 = vmatpush2.xpose.msra.mxu0 0.0
      %2511 = vmatprep.subr.mxu0 0.0
      %2512 = vmatpush2.xpose.msra.mxu0 0.0
      %2513 = vmatprep.subr.mxu0 0.0
      %2514 = vmatpush2.xpose.msra.mxu0 0.0
      %2515 = vmatprep.subr.mxu0 0.0
      %2516 = vmatpush2.xpose.msra.mxu0 0.0
      %2517 = vmatprep.subr.mxu0 0.0
      %2518 = vmatpush2.xpose.msra.mxu0 0.0
      %2519 = vmatprep.subr.mxu0 0.0
      %2520 = vmatpush2.xpose.msra.mxu0 0.0
      %2521 = vmatprep.subr.mxu0 0.0
      %2522 = vmatpush2.xpose.msra.mxu0 0.0
      %2523 = vmatprep.subr.mxu0 0.0
      %2524 = vmatpush2.xpose.msra.mxu0 0.0
      %2525 = vmatprep.subr.mxu0 0.0
      %2526 = vmatpush2.xpose.msra.mxu0 0.0
      %2527 = vmatprep.subr.mxu0 0.0
      %2528 = vmatpush2.xpose.msra.mxu0 0.0
      %2529 = vmatprep.subr.mxu0 0.0
      %2530 = vmatpush2.xpose.msra.mxu0 0.0
      %2531 = vmatprep.subr.mxu0 0.0
      %2532 = vmatpush2.xpose.msra.mxu0 0.0
      %2533 = vmatprep.subr.mxu0 0.0
      %2534 = vmatpush2.xpose.msra.mxu0 0.0
      %2535 = vmatprep.mubr.f32.mxu0 0.0
      %2536 = vmatmul.mubr.f32.gmra.mxu0 %v2467
      %v2537 = vpop.f32.mrf.mxu0
      %v2538 = vadd.f32 0.0, %v2537
      %v2539 = vpop.f32.mrf.mxu0
      %2540 = vdwg.mxu0
      %v2541 = vsel %vm1470, %v2538, -inf
      %2542 = vmax.xlane.f32.xlu0 %v2541
      %v2543 = vpop.xlane.xlu0 %2542
      %v2544 = vsub.f32 %v2538, %v2543
      %v2545 = vmul.f32 %v2544, 1.442695
      %v2546 = vpow.pop %v2545
      %v2547 = vsel %vm1470, %v2546, 0.0
      %2548 = vadd.xlane.f32.xlu0 %v2547
      %v2549 = vpop.xlane.xlu0 %2548
      %v2550 = vrcp.pop %v2549
      %v2551 = vmul.f32 %v2546, %v2550
      %v2552 = vmul.f32 %v2458, %v1484
      %v2553 = vmul.f32 %v2461, %v1490
      %v2555 = vsel %vm660, %v2553, 0
      %2557 = vmatprep.subr.mxu0 0.0
      %2558 = vmatpush1.xpose.msra.mxu0 0.0
      %2559 = vmatprep.subr.mxu0 0.0
      %2560 = vmatpush1.xpose.msra.mxu0 0.0
      %2561 = vmatprep.subr.mxu0 0.0
      %2562 = vmatpush1.xpose.msra.mxu0 0.0
      %2563 = vmatprep.subr.mxu0 0.0
      %2564 = vmatpush1.xpose.msra.mxu0 0.0
      %2565 = vmatprep.subr.mxu0 0.0
      %2566 = vmatpush1.xpose.msra.mxu0 0.0
      %2567 = vmatprep.subr.mxu0 0.0
      %2568 = vmatpush1.xpose.msra.mxu0 0.0
      %2569 = vmatprep.subr.mxu0 0.0
      %2570 = vmatpush1.xpose.msra.mxu0 0.0
      %2571 = vmatprep.subr.mxu0 0.0
      %2572 = vmatpush1.xpose.msra.mxu0 0.0
      %2573 = vmatprep.subr.mxu0 0.0
      %2574 = vmatpush1.xpose.msra.mxu0 0.0
      %2575 = vmatprep.subr.mxu0 0.0
      %2576 = vmatpush1.xpose.msra.mxu0 0.0
      %2577 = vmatprep.subr.mxu0 0.0
      %2578 = vmatpush1.xpose.msra.mxu0 0.0
      %2579 = vmatprep.subr.mxu0 0.0
      %2580 = vmatpush1.xpose.msra.mxu0 0.0
      %2581 = vmatprep.subr.mxu0 0.0
      %2582 = vmatpush1.xpose.msra.mxu0 0.0
      %2583 = vmatprep.subr.mxu0 0.0
      %2584 = vmatpush1.xpose.msra.mxu0 0.0
      %2585 = vmatprep.subr.mxu0 0.0
      %2586 = vmatpush1.xpose.msra.mxu0 0.0
      %2587 = vmatprep.subr.mxu0 0.0
      %2588 = vmatpush1.xpose.msra.mxu0 %v2469
      %2589 = vmatprep.subr.mxu0 0.0
      %2590 = vmatpush2.xpose.msra.mxu0 0.0
      %2591 = vmatprep.subr.mxu0 0.0
      %2592 = vmatpush2.xpose.msra.mxu0 0.0
      %2593 = vmatprep.subr.mxu0 0.0
      %2594 = vmatpush2.xpose.msra.mxu0 0.0
      %2595 = vmatprep.subr.mxu0 0.0
      %2596 = vmatpush2.xpose.msra.mxu0 0.0
      %2597 = vmatprep.subr.mxu0 0.0
      %2598 = vmatpush2.xpose.msra.mxu0 0.0
      %2599 = vmatprep.subr.mxu0 0.0
      %2600 = vmatpush2.xpose.msra.mxu0 0.0
      %2601 = vmatprep.subr.mxu0 0.0
      %2602 = vmatpush2.xpose.msra.mxu0 0.0
      %2603 = vmatprep.subr.mxu0 0.0
      %2604 = vmatpush2.xpose.msra.mxu0 0.0
      %2605 = vmatprep.subr.mxu0 0.0
      %2606 = vmatpush2.xpose.msra.mxu0 0.0
      %2607 = vmatprep.subr.mxu0 0.0
      %2608 = vmatpush2.xpose.msra.mxu0 0.0
      %2609 = vmatprep.subr.mxu0 0.0
      %2610 = vmatpush2.xpose.msra.mxu0 0.0
      %2611 = vmatprep.subr.mxu0 0.0
      %2612 = vmatpush2.xpose.msra.mxu0 0.0
      %2613 = vmatprep.subr.mxu0 0.0
      %2614 = vmatpush2.xpose.msra.mxu0 0.0
      %2615 = vmatprep.subr.mxu0 0.0
      %2616 = vmatpush2.xpose.msra.mxu0 0.0
      %2617 = vmatprep.subr.mxu0 0.0
      %2618 = vmatpush2.xpose.msra.mxu0 0.0
      %2619 = vmatprep.subr.mxu0 0.0
      %2620 = vmatpush2.xpose.msra.mxu0 0.0
      %2621 = vmatprep.mubr.f32.mxu0 0.0
      %2622 = vmatmul.mubr.f32.gmra.mxu0 %v2555
      %v2623 = vpop.f32.mrf.mxu0
      %v2624 = vadd.f32 0.0, %v2623
      %v2625 = vpop.f32.mrf.mxu0
      %2626 = vdwg.mxu0
      %v2627 = vsel %vm1470, %v2624, -inf
      %2628 = vmax.xlane.f32.xlu0 %v2627
      %v2629 = vpop.xlane.xlu0 %2628
      %v2630 = vsub.f32 %v2624, %v2629
      %v2631 = vmul.f32 %v2630, 1.442695
      %v2632 = vpow.pop %v2631
      %v2633 = vsel %vm1470, %v2632, 0.0
      %2634 = vadd.xlane.f32.xlu0 %v2633
      %v2635 = vpop.xlane.xlu0 %2634
      %v2636 = vrcp.pop %v2635
      %v2637 = vmul.f32 %v2632, %v2636
      %v2638 = vmul.f32 %v2458, %v1578
      %2640 = vrot.lane.b32.xlu0 %v2638, 64
      %v2641 = vpop.permute.xlu0 %2640
      %v2643 = vsel %vm1584, %v2637, 0
      %v2645 = vsel %vm1588, %v2641, 0
      %2647 = vmatprep.subr.mxu0 0.0
      %2648 = vmatpush1.msra.mxu0 0.0
      %2649 = vmatprep.subr.mxu0 0.0
      %2650 = vmatpush1.msra.mxu0 0.0
      %2651 = vmatprep.subr.mxu0 0.0
      %2652 = vmatpush1.msra.mxu0 0.0
      %2653 = vmatprep.subr.mxu0 0.0
      %2654 = vmatpush1.msra.mxu0 0.0
      %2655 = vmatprep.subr.mxu0 0.0
      %2656 = vmatpush1.msra.mxu0 0.0
      %2657 = vmatprep.subr.mxu0 0.0
      %2658 = vmatpush1.msra.mxu0 0.0
      %2659 = vmatprep.subr.mxu0 0.0
      %2660 = vmatpush1.msra.mxu0 0.0
      %2661 = vmatprep.subr.mxu0 0.0
      %2662 = vmatpush1.msra.mxu0 0.0
      %2663 = vmatprep.subr.mxu0 0.0
      %2664 = vmatpush1.msra.mxu0 0.0
      %2665 = vmatprep.subr.mxu0 0.0
      %2666 = vmatpush1.msra.mxu0 0.0
      %2667 = vmatprep.subr.mxu0 0.0
      %2668 = vmatpush1.msra.mxu0 0.0
      %2669 = vmatprep.subr.mxu0 0.0
      %2670 = vmatpush1.msra.mxu0 0.0
      %2671 = vmatprep.subr.mxu0 0.0
      %2672 = vmatpush1.msra.mxu0 0.0
      %2673 = vmatprep.subr.mxu0 0.0
      %2674 = vmatpush1.msra.mxu0 0.0
      %2675 = vmatprep.subr.mxu0 0.0
      %2676 = vmatpush1.msra.mxu0 0.0
      %2677 = vmatprep.subr.mxu0 0.0
      %2678 = vmatpush1.msra.mxu0 %v2645
      %2679 = vmatprep.subr.mxu0 0.0
      %2680 = vmatpush2.msra.mxu0 0.0
      %2681 = vmatprep.subr.mxu0 0.0
      %2682 = vmatpush2.msra.mxu0 0.0
      %2683 = vmatprep.subr.mxu0 0.0
      %2684 = vmatpush2.msra.mxu0 0.0
      %2685 = vmatprep.subr.mxu0 0.0
      %2686 = vmatpush2.msra.mxu0 0.0
      %2687 = vmatprep.subr.mxu0 0.0
      %2688 = vmatpush2.msra.mxu0 0.0
      %2689 = vmatprep.subr.mxu0 0.0
      %2690 = vmatpush2.msra.mxu0 0.0
      %2691 = vmatprep.subr.mxu0 0.0
      %2692 = vmatpush2.msra.mxu0 0.0
      %2693 = vmatprep.subr.mxu0 0.0
      %2694 = vmatpush2.msra.mxu0 0.0
      %2695 = vmatprep.subr.mxu0 0.0
      %2696 = vmatpush2.msra.mxu0 0.0
      %2697 = vmatprep.subr.mxu0 0.0
      %2698 = vmatpush2.msra.mxu0 0.0
      %2699 = vmatprep.subr.mxu0 0.0
      %2700 = vmatpush2.msra.mxu0 0.0
      %2701 = vmatprep.subr.mxu0 0.0
      %2702 = vmatpush2.msra.mxu0 0.0
      %2703 = vmatprep.subr.mxu0 0.0
      %2704 = vmatpush2.msra.mxu0 0.0
      %2705 = vmatprep.subr.mxu0 0.0
      %2706 = vmatpush2.msra.mxu0 0.0
      %2707 = vmatprep.subr.mxu0 0.0
      %2708 = vmatpush2.msra.mxu0 0.0
      %2709 = vmatprep.subr.mxu0 0.0
      %2710 = vmatpush2.msra.mxu0 0.0
      %2711 = vmatprep.mubr.f32.mxu0 0.0
      %2712 = vmatmul.mubr.f32.gmra.mxu0 %v2643
      %v2713 = vpop.f32.mrf.mxu0
      %v2714 = vadd.f32 0.0, %v2713
      %v2715 = vpop.f32.mrf.mxu0
      %2716 = vdwg.mxu0
      %2718 = vrot.lane.b32.xlu0 %v2552, 64
      %v2719 = vpop.permute.xlu0 %2718
      %v2721 = vsel %vm1584, %v2551, 0
      %v2723 = vsel %vm1588, %v2719, 0
      %2725 = vmatprep.subr.mxu0 0.0
      %2726 = vmatpush1.msra.mxu0 0.0
      %2727 = vmatprep.subr.mxu0 0.0
      %2728 = vmatpush1.msra.mxu0 0.0
      %2729 = vmatprep.subr.mxu0 0.0
      %2730 = vmatpush1.msra.mxu0 0.0
      %2731 = vmatprep.subr.mxu0 0.0
      %2732 = vmatpush1.msra.mxu0 0.0
      %2733 = vmatprep.subr.mxu0 0.0
      %2734 = vmatpush1.msra.mxu0 0.0
      %2735 = vmatprep.subr.mxu0 0.0
      %2736 = vmatpush1.msra.mxu0 0.0
      %2737 = vmatprep.subr.mxu0 0.0
      %2738 = vmatpush1.msra.mxu0 0.0
      %2739 = vmatprep.subr.mxu0 0.0
      %2740 = vmatpush1.msra.mxu0 0.0
      %2741 = vmatprep.subr.mxu0 0.0
      %2742 = vmatpush1.msra.mxu0 0.0
      %2743 = vmatprep.subr.mxu0 0.0
      %2744 = vmatpush1.msra.mxu0 0.0
      %2745 = vmatprep.subr.mxu0 0.0
      %2746 = vmatpush1.msra.mxu0 0.0
      %2747 = vmatprep.subr.mxu0 0.0
      %2748 = vmatpush1.msra.mxu0 0.0
      %2749 = vmatprep.subr.mxu0 0.0
      %2750 = vmatpush1.msra.mxu0 0.0
      %2751 = vmatprep.subr.mxu0 0.0
      %2752 = vmatpush1.msra.mxu0 0.0
      %2753 = vmatprep.subr.mxu0 0.0
      %2754 = vmatpush1.msra.mxu0 0.0
      %2755 = vmatprep.subr.mxu0 0.0
      %2756 = vmatpush1.msra.mxu0 %v2723
      %2757 = vmatprep.subr.mxu0 0.0
      %2758 = vmatpush2.msra.mxu0 0.0
      %2759 = vmatprep.subr.mxu0 0.0
      %2760 = vmatpush2.msra.mxu0 0.0
      %2761 = vmatprep.subr.mxu0 0.0
      %2762 = vmatpush2.msra.mxu0 0.0
      %2763 = vmatprep.subr.mxu0 0.0
      %2764 = vmatpush2.msra.mxu0 0.0
      %2765 = vmatprep.subr.mxu0 0.0
      %2766 = vmatpush2.msra.mxu0 0.0
      %2767 = vmatprep.subr.mxu0 0.0
      %2768 = vmatpush2.msra.mxu0 0.0
      %2769 = vmatprep.subr.mxu0 0.0
      %2770 = vmatpush2.msra.mxu0 0.0
      %2771 = vmatprep.subr.mxu0 0.0
      %2772 = vmatpush2.msra.mxu0 0.0
      %2773 = vmatprep.subr.mxu0 0.0
      %2774 = vmatpush2.msra.mxu0 0.0
      %2775 = vmatprep.subr.mxu0 0.0
      %2776 = vmatpush2.msra.mxu0 0.0
      %2777 = vmatprep.subr.mxu0 0.0
      %2778 = vmatpush2.msra.mxu0 0.0
      %2779 = vmatprep.subr.mxu0 0.0
      %2780 = vmatpush2.msra.mxu0 0.0
      %2781 = vmatprep.subr.mxu0 0.0
      %2782 = vmatpush2.msra.mxu0 0.0
      %2783 = vmatprep.subr.mxu0 0.0
      %2784 = vmatpush2.msra.mxu0 0.0
      %2785 = vmatprep.subr.mxu0 0.0
      %2786 = vmatpush2.msra.mxu0 0.0
      %2787 = vmatprep.subr.mxu0 0.0
      %2788 = vmatpush2.msra.mxu0 0.0
      %2789 = vmatprep.mubr.f32.mxu0 0.0
      %2790 = vmatmul.mubr.f32.gmra.mxu0 %v2721
      %v2791 = vpop.f32.mrf.mxu0
      %v2792 = vadd.f32 %v2714, %v2791
      %v2793 = vpop.f32.mrf.mxu0
      %2794 = vdwg.mxu0
      %v2795 = vmul.f32 %v2461, %v1742
      %v2797 = vsel %vm660, %v2795, 0
      %2799 = vmatprep.subr.mxu0 0.0
      %2800 = vmatpush1.xpose.msra.mxu0 0.0
      %2801 = vmatprep.subr.mxu0 0.0
      %2802 = vmatpush1.xpose.msra.mxu0 0.0
      %2803 = vmatprep.subr.mxu0 0.0
      %2804 = vmatpush1.xpose.msra.mxu0 0.0
      %2805 = vmatprep.subr.mxu0 0.0
      %2806 = vmatpush1.xpose.msra.mxu0 0.0
      %2807 = vmatprep.subr.mxu0 0.0
      %2808 = vmatpush1.xpose.msra.mxu0 0.0
      %2809 = vmatprep.subr.mxu0 0.0
      %2810 = vmatpush1.xpose.msra.mxu0 0.0
      %2811 = vmatprep.subr.mxu0 0.0
      %2812 = vmatpush1.xpose.msra.mxu0 0.0
      %2813 = vmatprep.subr.mxu0 0.0
      %2814 = vmatpush1.xpose.msra.mxu0 0.0
      %2815 = vmatprep.subr.mxu0 0.0
      %2816 = vmatpush1.xpose.msra.mxu0 0.0
      %2817 = vmatprep.subr.mxu0 0.0
      %2818 = vmatpush1.xpose.msra.mxu0 0.0
      %2819 = vmatprep.subr.mxu0 0.0
      %2820 = vmatpush1.xpose.msra.mxu0 0.0
      %2821 = vmatprep.subr.mxu0 0.0
      %2822 = vmatpush1.xpose.msra.mxu0 0.0
      %2823 = vmatprep.subr.mxu0 0.0
      %2824 = vmatpush1.xpose.msra.mxu0 0.0
      %2825 = vmatprep.subr.mxu0 0.0
      %2826 = vmatpush1.xpose.msra.mxu0 0.0
      %2827 = vmatprep.subr.mxu0 0.0
      %2828 = vmatpush1.xpose.msra.mxu0 0.0
      %2829 = vmatprep.subr.mxu0 0.0
      %2830 = vmatpush1.xpose.msra.mxu0 %v2469
      %2831 = vmatprep.subr.mxu0 0.0
      %2832 = vmatpush2.xpose.msra.mxu0 0.0
      %2833 = vmatprep.subr.mxu0 0.0
      %2834 = vmatpush2.xpose.msra.mxu0 0.0
      %2835 = vmatprep.subr.mxu0 0.0
      %2836 = vmatpush2.xpose.msra.mxu0 0.0
      %2837 = vmatprep.subr.mxu0 0.0
      %2838 = vmatpush2.xpose.msra.mxu0 0.0
      %2839 = vmatprep.subr.mxu0 0.0
      %2840 = vmatpush2.xpose.msra.mxu0 0.0
      %2841 = vmatprep.subr.mxu0 0.0
      %2842 = vmatpush2.xpose.msra.mxu0 0.0
      %2843 = vmatprep.subr.mxu0 0.0
      %2844 = vmatpush2.xpose.msra.mxu0 0.0
      %2845 = vmatprep.subr.mxu0 0.0
      %2846 = vmatpush2.xpose.msra.mxu0 0.0
      %2847 = vmatprep.subr.mxu0 0.0
      %2848 = vmatpush2.xpose.msra.mxu0 0.0
      %2849 = vmatprep.subr.mxu0 0.0
      %2850 = vmatpush2.xpose.msra.mxu0 0.0
      %2851 = vmatprep.subr.mxu0 0.0
      %2852 = vmatpush2.xpose.msra.mxu0 0.0
      %2853 = vmatprep.subr.mxu0 0.0
      %2854 = vmatpush2.xpose.msra.mxu0 0.0
      %2855 = vmatprep.subr.mxu0 0.0
      %2856 = vmatpush2.xpose.msra.mxu0 0.0
      %2857 = vmatprep.subr.mxu0 0.0
      %2858 = vmatpush2.xpose.msra.mxu0 0.0
      %2859 = vmatprep.subr.mxu0 0.0
      %2860 = vmatpush2.xpose.msra.mxu0 0.0
      %2861 = vmatprep.subr.mxu0 0.0
      %2862 = vmatpush2.xpose.msra.mxu0 0.0
      %2863 = vmatprep.mubr.f32.mxu0 0.0
      %2864 = vmatmul.mubr.f32.gmra.mxu0 %v2797
      %v2865 = vpop.f32.mrf.mxu0
      %v2866 = vadd.f32 0.0, %v2865
      %v2867 = vpop.f32.mrf.mxu0
      %2868 = vdwg.mxu0
      %v2869 = vsel %vm1470, %v2866, -inf
      %2870 = vmax.xlane.f32.xlu0 %v2869
      %v2871 = vpop.xlane.xlu0 %2870
      %v2872 = vsub.f32 %v2866, %v2871
      %v2873 = vmul.f32 %v2872, 1.442695
      %v2874 = vpow.pop %v2873
      %v2875 = vsel %vm1470, %v2874, 0.0
      %2876 = vadd.xlane.f32.xlu0 %v2875
      %v2877 = vpop.xlane.xlu0 %2876
      %v2878 = vrcp.pop %v2877
      %v2879 = vmul.f32 %v2874, %v2878
      %v2880 = vmul.f32 %v2458, %v1830
      %2882 = vrot.lane.b32.xlu0 %v2880, 64
      %v2883 = vpop.permute.xlu0 %2882
      %v2885 = vsel %vm1584, %v2879, 0
      %v2887 = vsel %vm1588, %v2883, 0
      %2889 = vmatprep.subr.mxu0 0.0
      %2890 = vmatpush1.msra.mxu0 0.0
      %2891 = vmatprep.subr.mxu0 0.0
      %2892 = vmatpush1.msra.mxu0 0.0
      %2893 = vmatprep.subr.mxu0 0.0
      %2894 = vmatpush1.msra.mxu0 0.0
      %2895 = vmatprep.subr.mxu0 0.0
      %2896 = vmatpush1.msra.mxu0 0.0
      %2897 = vmatprep.subr.mxu0 0.0
      %2898 = vmatpush1.msra.mxu0 0.0
      %2899 = vmatprep.subr.mxu0 0.0
      %2900 = vmatpush1.msra.mxu0 0.0
      %2901 = vmatprep.subr.mxu0 0.0
      %2902 = vmatpush1.msra.mxu0 0.0
      %2903 = vmatprep.subr.mxu0 0.0
      %2904 = vmatpush1.msra.mxu0 0.0
      %2905 = vmatprep.subr.mxu0 0.0
      %2906 = vmatpush1.msra.mxu0 0.0
      %2907 = vmatprep.subr.mxu0 0.0
      %2908 = vmatpush1.msra.mxu0 0.0
      %2909 = vmatprep.subr.mxu0 0.0
      %2910 = vmatpush1.msra.mxu0 0.0
      %2911 = vmatprep.subr.mxu0 0.0
      %2912 = vmatpush1.msra.mxu0 0.0
      %2913 = vmatprep.subr.mxu0 0.0
      %2914 = vmatpush1.msra.mxu0 0.0
      %2915 = vmatprep.subr.mxu0 0.0
      %2916 = vmatpush1.msra.mxu0 0.0
      %2917 = vmatprep.subr.mxu0 0.0
      %2918 = vmatpush1.msra.mxu0 0.0
      %2919 = vmatprep.subr.mxu0 0.0
      %2920 = vmatpush1.msra.mxu0 %v2887
      %2921 = vmatprep.subr.mxu0 0.0
      %2922 = vmatpush2.msra.mxu0 0.0
      %2923 = vmatprep.subr.mxu0 0.0
      %2924 = vmatpush2.msra.mxu0 0.0
      %2925 = vmatprep.subr.mxu0 0.0
      %2926 = vmatpush2.msra.mxu0 0.0
      %2927 = vmatprep.subr.mxu0 0.0
      %2928 = vmatpush2.msra.mxu0 0.0
      %2929 = vmatprep.subr.mxu0 0.0
      %2930 = vmatpush2.msra.mxu0 0.0
      %2931 = vmatprep.subr.mxu0 0.0
      %2932 = vmatpush2.msra.mxu0 0.0
      %2933 = vmatprep.subr.mxu0 0.0
      %2934 = vmatpush2.msra.mxu0 0.0
      %2935 = vmatprep.subr.mxu0 0.0
      %2936 = vmatpush2.msra.mxu0 0.0
      %2937 = vmatprep.subr.mxu0 0.0
      %2938 = vmatpush2.msra.mxu0 0.0
      %2939 = vmatprep.subr.mxu0 0.0
      %2940 = vmatpush2.msra.mxu0 0.0
      %2941 = vmatprep.subr.mxu0 0.0
      %2942 = vmatpush2.msra.mxu0 0.0
      %2943 = vmatprep.subr.mxu0 0.0
      %2944 = vmatpush2.msra.mxu0 0.0
      %2945 = vmatprep.subr.mxu0 0.0
      %2946 = vmatpush2.msra.mxu0 0.0
      %2947 = vmatprep.subr.mxu0 0.0
      %2948 = vmatpush2.msra.mxu0 0.0
      %2949 = vmatprep.subr.mxu0 0.0
      %2950 = vmatpush2.msra.mxu0 0.0
      %2951 = vmatprep.subr.mxu0 0.0
      %2952 = vmatpush2.msra.mxu0 0.0
      %2953 = vmatprep.mubr.f32.mxu0 0.0
      %2954 = vmatmul.mubr.f32.gmra.mxu0 %v2885
      %v2955 = vpop.f32.mrf.mxu0
      %v2956 = vadd.f32 0.0, %v2955
      %v2957 = vpop.f32.mrf.mxu0
      %2958 = vdwg.mxu0
      %v2959 = vadd.f32 %v2792, %v2956
      %v2960 = vmul.f32 %v2461, %v1915
      %v2962 = vsel %vm660, %v2960, 0
      %2964 = vmatprep.subr.mxu0 0.0
      %2965 = vmatpush1.xpose.msra.mxu0 0.0
      %2966 = vmatprep.subr.mxu0 0.0
      %2967 = vmatpush1.xpose.msra.mxu0 0.0
      %2968 = vmatprep.subr.mxu0 0.0
      %2969 = vmatpush1.xpose.msra.mxu0 0.0
      %2970 = vmatprep.subr.mxu0 0.0
      %2971 = vmatpush1.xpose.msra.mxu0 0.0
      %2972 = vmatprep.subr.mxu0 0.0
      %2973 = vmatpush1.xpose.msra.mxu0 0.0
      %2974 = vmatprep.subr.mxu0 0.0
      %2975 = vmatpush1.xpose.msra.mxu0 0.0
      %2976 = vmatprep.subr.mxu0 0.0
      %2977 = vmatpush1.xpose.msra.mxu0 0.0
      %2978 = vmatprep.subr.mxu0 0.0
      %2979 = vmatpush1.xpose.msra.mxu0 0.0
      %2980 = vmatprep.subr.mxu0 0.0
      %2981 = vmatpush1.xpose.msra.mxu0 0.0
      %2982 = vmatprep.subr.mxu0 0.0
      %2983 = vmatpush1.xpose.msra.mxu0 0.0
      %2984 = vmatprep.subr.mxu0 0.0
      %2985 = vmatpush1.xpose.msra.mxu0 0.0
      %2986 = vmatprep.subr.mxu0 0.0
      %2987 = vmatpush1.xpose.msra.mxu0 0.0
      %2988 = vmatprep.subr.mxu0 0.0
      %2989 = vmatpush1.xpose.msra.mxu0 0.0
      %2990 = vmatprep.subr.mxu0 0.0
      %2991 = vmatpush1.xpose.msra.mxu0 0.0
      %2992 = vmatprep.subr.mxu0 0.0
      %2993 = vmatpush1.xpose.msra.mxu0 0.0
      %2994 = vmatprep.subr.mxu0 0.0
      %2995 = vmatpush1.xpose.msra.mxu0 %v2469
      %2996 = vmatprep.subr.mxu0 0.0
      %2997 = vmatpush2.xpose.msra.mxu0 0.0
      %2998 = vmatprep.subr.mxu0 0.0
      %2999 = vmatpush2.xpose.msra.mxu0 0.0
      %3000 = vmatprep.subr.mxu0 0.0
      %3001 = vmatpush2.xpose.msra.mxu0 0.0
      %3002 = vmatprep.subr.mxu0 0.0
      %3003 = vmatpush2.xpose.msra.mxu0 0.0
      %3004 = vmatprep.subr.mxu0 0.0
      %3005 = vmatpush2.xpose.msra.mxu0 0.0
      %3006 = vmatprep.subr.mxu0 0.0
      %3007 = vmatpush2.xpose.msra.mxu0 0.0
      %3008 = vmatprep.subr.mxu0 0.0
      %3009 = vmatpush2.xpose.msra.mxu0 0.0
      %3010 = vmatprep.subr.mxu0 0.0
      %3011 = vmatpush2.xpose.msra.mxu0 0.0
      %3012 = vmatprep.subr.mxu0 0.0
      %3013 = vmatpush2.xpose.msra.mxu0 0.0
      %3014 = vmatprep.subr.mxu0 0.0
      %3015 = vmatpush2.xpose.msra.mxu0 0.0
      %3016 = vmatprep.subr.mxu0 0.0
      %3017 = vmatpush2.xpose.msra.mxu0 0.0
      %3018 = vmatprep.subr.mxu0 0.0
      %3019 = vmatpush2.xpose.msra.mxu0 0.0
      %3020 = vmatprep.subr.mxu0 0.0
      %3021 = vmatpush2.xpose.msra.mxu0 0.0
      %3022 = vmatprep.subr.mxu0 0.0
      %3023 = vmatpush2.xpose.msra.mxu0 0.0
      %3024 = vmatprep.subr.mxu0 0.0
      %3025 = vmatpush2.xpose.msra.mxu0 0.0
      %3026 = vmatprep.subr.mxu0 0.0
      %3027 = vmatpush2.xpose.msra.mxu0 0.0
      %3028 = vmatprep.mubr.f32.mxu0 0.0
      %3029 = vmatmul.mubr.f32.gmra.mxu0 %v2962
      %v3030 = vpop.f32.mrf.mxu0
      %v3031 = vadd.f32 0.0, %v3030
      %v3032 = vpop.f32.mrf.mxu0
      %3033 = vdwg.mxu0
      %v3034 = vsel %vm1470, %v3031, -inf
      %3035 = vmax.xlane.f32.xlu0 %v3034
      %v3036 = vpop.xlane.xlu0 %3035
      %v3037 = vsub.f32 %v3031, %v3036
      %v3038 = vmul.f32 %v3037, 1.442695
      %v3039 = vpow.pop %v3038
      %v3040 = vsel %vm1470, %v3039, 0.0
      %3041 = vadd.xlane.f32.xlu0 %v3040
      %v3042 = vpop.xlane.xlu0 %3041
      %v3043 = vrcp.pop %v3042
      %v3044 = vmul.f32 %v3039, %v3043
      %v3045 = vmul.f32 %v2458, %v2003
      %3047 = vrot.lane.b32.xlu0 %v3045, 64
      %v3048 = vpop.permute.xlu0 %3047
      %v3050 = vsel %vm1584, %v3044, 0
      %v3052 = vsel %vm1588, %v3048, 0
      %3054 = vmatprep.subr.mxu0 0.0
      %3055 = vmatpush1.msra.mxu0 0.0
      %3056 = vmatprep.subr.mxu0 0.0
      %3057 = vmatpush1.msra.mxu0 0.0
      %3058 = vmatprep.subr.mxu0 0.0
      %3059 = vmatpush1.msra.mxu0 0.0
      %3060 = vmatprep.subr.mxu0 0.0
      %3061 = vmatpush1.msra.mxu0 0.0
      %3062 = vmatprep.subr.mxu0 0.0
      %3063 = vmatpush1.msra.mxu0 0.0
      %3064 = vmatprep.subr.mxu0 0.0
      %3065 = vmatpush1.msra.mxu0 0.0
      %3066 = vmatprep.subr.mxu0 0.0
      %3067 = vmatpush1.msra.mxu0 0.0
      %3068 = vmatprep.subr.mxu0 0.0
      %3069 = vmatpush1.msra.mxu0 0.0
      %3070 = vmatprep.subr.mxu0 0.0
      %3071 = vmatpush1.msra.mxu0 0.0
      %3072 = vmatprep.subr.mxu0 0.0
      %3073 = vmatpush1.msra.mxu0 0.0
      %3074 = vmatprep.subr.mxu0 0.0
      %3075 = vmatpush1.msra.mxu0 0.0
      %3076 = vmatprep.subr.mxu0 0.0
      %3077 = vmatpush1.msra.mxu0 0.0
      %3078 = vmatprep.subr.mxu0 0.0
      %3079 = vmatpush1.msra.mxu0 0.0
      %3080 = vmatprep.subr.mxu0 0.0
      %3081 = vmatpush1.msra.mxu0 0.0
      %3082 = vmatprep.subr.mxu0 0.0
      %3083 = vmatpush1.msra.mxu0 0.0
      %3084 = vmatprep.subr.mxu0 0.0
      %3085 = vmatpush1.msra.mxu0 %v3052
      %3086 = vmatprep.subr.mxu0 0.0
      %3087 = vmatpush2.msra.mxu0 0.0
      %3088 = vmatprep.subr.mxu0 0.0
      %3089 = vmatpush2.msra.mxu0 0.0
      %3090 = vmatprep.subr.mxu0 0.0
      %3091 = vmatpush2.msra.mxu0 0.0
      %3092 = vmatprep.subr.mxu0 0.0
      %3093 = vmatpush2.msra.mxu0 0.0
      %3094 = vmatprep.subr.mxu0 0.0
      %3095 = vmatpush2.msra.mxu0 0.0
      %3096 = vmatprep.subr.mxu0 0.0
      %3097 = vmatpush2.msra.mxu0 0.0
      %3098 = vmatprep.subr.mxu0 0.0
      %3099 = vmatpush2.msra.mxu0 0.0
      %3100 = vmatprep.subr.mxu0 0.0
      %3101 = vmatpush2.msra.mxu0 0.0
      %3102 = vmatprep.subr.mxu0 0.0
      %3103 = vmatpush2.msra.mxu0 0.0
      %3104 = vmatprep.subr.mxu0 0.0
      %3105 = vmatpush2.msra.mxu0 0.0
      %3106 = vmatprep.subr.mxu0 0.0
      %3107 = vmatpush2.msra.mxu0 0.0
      %3108 = vmatprep.subr.mxu0 0.0
      %3109 = vmatpush2.msra.mxu0 0.0
      %3110 = vmatprep.subr.mxu0 0.0
      %3111 = vmatpush2.msra.mxu0 0.0
      %3112 = vmatprep.subr.mxu0 0.0
      %3113 = vmatpush2.msra.mxu0 0.0
      %3114 = vmatprep.subr.mxu0 0.0
      %3115 = vmatpush2.msra.mxu0 0.0
      %3116 = vmatprep.subr.mxu0 0.0
      %3117 = vmatpush2.msra.mxu0 0.0
      %3118 = vmatprep.mubr.f32.mxu0 0.0
      %3119 = vmatmul.mubr.f32.gmra.mxu0 %v3050
      %v3120 = vpop.f32.mrf.mxu0
      %v3121 = vadd.f32 0.0, %v3120
      %v3122 = vpop.f32.mrf.mxu0
      %3123 = vdwg.mxu0
      %v3124 = vadd.f32 %v2959, %v3121
      %s3125 = scalar_lea.vmem %s6, 32
      %v3126 = vld [vmem:[%s3125] sm:$0xff]
      %v3127 = vld [vmem:[%s3125 + $0x8] sm:$0xff]
      %v3128 = vld [vmem:[%s3125 + $0x10] sm:$0xff]
      %v3129 = vld [vmem:[%s3125 + $0x18] sm:$0xff]
      %s3130 = scalar_lea.vmem %s7, 1
      %v3131 = vld [vmem:[%s3130] sm:$0x1]
      %v3133 = vlaneseq
      %v3134 = vshrl.u32 %v3133, 7
      %v3135 = vsub.s32 0, %v3134
      %v3136 = vrot.slane %v3131, %v3135
      %v3139 = vsel %vm660, %v3124, 0
      %3141 = vmatprep.subr.mxu0 0.0
      %3142 = vmatpush1.msra.mxu0 0.0
      %3143 = vmatprep.subr.mxu0 0.0
      %3144 = vmatpush1.msra.mxu0 0.0
      %3145 = vmatprep.subr.mxu0 0.0
      %3146 = vmatpush1.msra.mxu0 0.0
      %3147 = vmatprep.subr.mxu0 0.0
      %3148 = vmatpush1.msra.mxu0 0.0
      %3149 = vmatprep.subr.mxu0 0.0
      %3150 = vmatpush1.msra.mxu0 0.0
      %3151 = vmatprep.subr.mxu0 0.0
      %3152 = vmatpush1.msra.mxu0 0.0
      %3153 = vmatprep.subr.mxu0 0.0
      %3154 = vmatpush1.msra.mxu0 0.0
      %3155 = vmatprep.subr.mxu0 0.0
      %3156 = vmatpush1.msra.mxu0 0.0
      %3157 = vmatprep.subr.mxu0 0.0
      %3158 = vmatpush1.msra.mxu0 0.0
      %3159 = vmatprep.subr.mxu0 0.0
      %3160 = vmatpush1.msra.mxu0 0.0
      %3161 = vmatprep.subr.mxu0 0.0
      %3162 = vmatpush1.msra.mxu0 0.0
      %3163 = vmatprep.subr.mxu0 0.0
      %3164 = vmatpush1.msra.mxu0 0.0
      %3165 = vmatprep.subr.mxu0 0.0
      %3166 = vmatpush1.msra.mxu0 %v3129
      %3167 = vmatprep.subr.mxu0 0.0
      %3168 = vmatpush1.msra.mxu0 %v3128
      %3169 = vmatprep.subr.mxu0 0.0
      %3170 = vmatpush1.msra.mxu0 %v3127
      %3171 = vmatprep.subr.mxu0 0.0
      %3172 = vmatpush1.msra.mxu0 %v3126
      %3173 = vmatprep.subr.mxu0 0.0
      %3174 = vmatpush2.msra.mxu0 0.0
      %3175 = vmatprep.subr.mxu0 0.0
      %3176 = vmatpush2.msra.mxu0 0.0
      %3177 = vmatprep.subr.mxu0 0.0
      %3178 = vmatpush2.msra.mxu0 0.0
      %3179 = vmatprep.subr.mxu0 0.0
      %3180 = vmatpush2.msra.mxu0 0.0
      %3181 = vmatprep.subr.mxu0 0.0
      %3182 = vmatpush2.msra.mxu0 0.0
      %3183 = vmatprep.subr.mxu0 0.0
      %3184 = vmatpush2.msra.mxu0 0.0
      %3185 = vmatprep.subr.mxu0 0.0
      %3186 = vmatpush2.msra.mxu0 0.0
      %3187 = vmatprep.subr.mxu0 0.0
      %3188 = vmatpush2.msra.mxu0 0.0
      %3189 = vmatprep.subr.mxu0 0.0
      %3190 = vmatpush2.msra.mxu0 0.0
      %3191 = vmatprep.subr.mxu0 0.0
      %3192 = vmatpush2.msra.mxu0 0.0
      %3193 = vmatprep.subr.mxu0 0.0
      %3194 = vmatpush2.msra.mxu0 0.0
      %3195 = vmatprep.subr.mxu0 0.0
      %3196 = vmatpush2.msra.mxu0 0.0
      %3197 = vmatprep.subr.mxu0 0.0
      %3198 = vmatpush2.msra.mxu0 0.0
      %3199 = vmatprep.subr.mxu0 0.0
      %3200 = vmatpush2.msra.mxu0 0.0
      %3201 = vmatprep.subr.mxu0 0.0
      %3202 = vmatpush2.msra.mxu0 0.0
      %3203 = vmatprep.subr.mxu0 0.0
      %3204 = vmatpush2.msra.mxu0 0.0
      %3205 = vmatprep.mubr.f32.mxu0 0.0
      %3206 = vmatmul.mubr.f32.gmra.mxu0 %v3139
      %v3207 = vpop.f32.mrf.mxu0
      %v3208 = vadd.f32 %v3136, %v3207
      %v3209 = vpop.f32.mrf.mxu0
      %3210 = vdwg.mxu0
      %s3211 = scalar_lea.vmem %s8, 32
      %v3212 = vld [vmem:[%s3211] sm:$0xff]
      %v3213 = vld [vmem:[%s3211 + $0x8] sm:$0xff]
      %v3214 = vld [vmem:[%s3211 + $0x10] sm:$0xff]
      %v3215 = vld [vmem:[%s3211 + $0x18] sm:$0xff]
      %s3216 = scalar_lea.vmem %s9, 1
      %v3217 = vld [vmem:[%s3216] sm:$0x1]
      %v3219 = vlaneseq
      %v3220 = vshrl.u32 %v3219, 7
      %v3221 = vsub.s32 0, %v3220
      %v3222 = vrot.slane %v3217, %v3221
      %v3225 = vsel %vm660, %v3208, 0
      %3227 = vmatprep.subr.mxu0 0.0
      %3228 = vmatpush1.msra.mxu0 0.0
      %3229 = vmatprep.subr.mxu0 0.0
      %3230 = vmatpush1.msra.mxu0 0.0
      %3231 = vmatprep.subr.mxu0 0.0
      %3232 = vmatpush1.msra.mxu0 0.0
      %3233 = vmatprep.subr.mxu0 0.0
      %3234 = vmatpush1.msra.mxu0 0.0
      %3235 = vmatprep.subr.mxu0 0.0
      %3236 = vmatpush1.msra.mxu0 0.0
      %3237 = vmatprep.subr.mxu0 0.0
      %3238 = vmatpush1.msra.mxu0 0.0
      %3239 = vmatprep.subr.mxu0 0.0
      %3240 = vmatpush1.msra.mxu0 0.0
      %3241 = vmatprep.subr.mxu0 0.0
      %3242 = vmatpush1.msra.mxu0 0.0
      %3243 = vmatprep.subr.mxu0 0.0
      %3244 = vmatpush1.msra.mxu0 0.0
      %3245 = vmatprep.subr.mxu0 0.0
      %3246 = vmatpush1.msra.mxu0 0.0
      %3247 = vmatprep.subr.mxu0 0.0
      %3248 = vmatpush1.msra.mxu0 0.0
      %3249 = vmatprep.subr.mxu0 0.0
      %3250 = vmatpush1.msra.mxu0 0.0
      %3251 = vmatprep.subr.mxu0 0.0
      %3252 = vmatpush1.msra.mxu0 %v3215
      %3253 = vmatprep.subr.mxu0 0.0
      %3254 = vmatpush1.msra.mxu0 %v3214
      %3255 = vmatprep.subr.mxu0 0.0
      %3256 = vmatpush1.msra.mxu0 %v3213
      %3257 = vmatprep.subr.mxu0 0.0
      %3258 = vmatpush1.msra.mxu0 %v3212
      %3259 = vmatprep.subr.mxu0 0.0
      %3260 = vmatpush2.msra.mxu0 0.0
      %3261 = vmatprep.subr.mxu0 0.0
      %3262 = vmatpush2.msra.mxu0 0.0
      %3263 = vmatprep.subr.mxu0 0.0
      %3264 = vmatpush2.msra.mxu0 0.0
      %3265 = vmatprep.subr.mxu0 0.0
      %3266 = vmatpush2.msra.mxu0 0.0
      %3267 = vmatprep.subr.mxu0 0.0
      %3268 = vmatpush2.msra.mxu0 0.0
      %3269 = vmatprep.subr.mxu0 0.0
      %3270 = vmatpush2.msra.mxu0 0.0
      %3271 = vmatprep.subr.mxu0 0.0
      %3272 = vmatpush2.msra.mxu0 0.0
      %3273 = vmatprep.subr.mxu0 0.0
      %3274 = vmatpush2.msra.mxu0 0.0
      %3275 = vmatprep.subr.mxu0 0.0
      %3276 = vmatpush2.msra.mxu0 0.0
      %3277 = vmatprep.subr.mxu0 0.0
      %3278 = vmatpush2.msra.mxu0 0.0
      %3279 = vmatprep.subr.mxu0 0.0
      %3280 = vmatpush2.msra.mxu0 0.0
      %3281 = vmatprep.subr.mxu0 0.0
      %3282 = vmatpush2.msra.mxu0 0.0
      %3283 = vmatprep.subr.mxu0 0.0
      %3284 = vmatpush2.msra.mxu0 0.0
      %3285 = vmatprep.subr.mxu0 0.0
      %3286 = vmatpush2.msra.mxu0 0.0
      %3287 = vmatprep.subr.mxu0 0.0
      %3288 = vmatpush2.msra.mxu0 0.0
      %3289 = vmatprep.subr.mxu0 0.0
      %3290 = vmatpush2.msra.mxu0 0.0
      %3291 = vmatprep.mubr.f32.mxu0 0.0
      %3292 = vmatmul.mubr.f32.gmra.mxu0 %v3225
      %v3293 = vpop.f32.mrf.mxu0
      %v3294 = vadd.f32 %v3222, %v3293
      %v3295 = vpop.f32.mrf.mxu0
      %3296 = vdwg.mxu0
      %vm3297 = vcmp.gt.f32.partialorder %v3294, 0.0
      %v3298 = vmin.f32 %v3294, 0.0
      %v3299 = vmul.f32 %v3298, 1.442695
      %v3300 = vpow.pop %v3299
      %v3301 = vsub.f32 %v3300, 1.0
      %v3302 = vsel %vm3297, %v3294, %v3301
      %s3303 = scalar_lea.vmem %s10, 32
      %v3304 = vld [vmem:[%s3303] sm:$0xff]
      %v3305 = vld [vmem:[%s3303 + $0x8] sm:$0xff]
      %v3306 = vld [vmem:[%s3303 + $0x10] sm:$0xff]
      %v3307 = vld [vmem:[%s3303 + $0x18] sm:$0xff]
      %s3308 = scalar_lea.vmem %s11, 1
      %v3309 = vld [vmem:[%s3308] sm:$0x1]
      %v3311 = vlaneseq
      %v3312 = vshrl.u32 %v3311, 7
      %v3313 = vsub.s32 0, %v3312
      %v3314 = vrot.slane %v3309, %v3313
      %v3317 = vsel %vm660, %v3302, 0
      %3319 = vmatprep.subr.mxu0 0.0
      %3320 = vmatpush1.msra.mxu0 0.0
      %3321 = vmatprep.subr.mxu0 0.0
      %3322 = vmatpush1.msra.mxu0 0.0
      %3323 = vmatprep.subr.mxu0 0.0
      %3324 = vmatpush1.msra.mxu0 0.0
      %3325 = vmatprep.subr.mxu0 0.0
      %3326 = vmatpush1.msra.mxu0 0.0
      %3327 = vmatprep.subr.mxu0 0.0
      %3328 = vmatpush1.msra.mxu0 0.0
      %3329 = vmatprep.subr.mxu0 0.0
      %3330 = vmatpush1.msra.mxu0 0.0
      %3331 = vmatprep.subr.mxu0 0.0
      %3332 = vmatpush1.msra.mxu0 0.0
      %3333 = vmatprep.subr.mxu0 0.0
      %3334 = vmatpush1.msra.mxu0 0.0
      %3335 = vmatprep.subr.mxu0 0.0
      %3336 = vmatpush1.msra.mxu0 0.0
      %3337 = vmatprep.subr.mxu0 0.0
      %3338 = vmatpush1.msra.mxu0 0.0
      %3339 = vmatprep.subr.mxu0 0.0
      %3340 = vmatpush1.msra.mxu0 0.0
      %3341 = vmatprep.subr.mxu0 0.0
      %3342 = vmatpush1.msra.mxu0 0.0
      %3343 = vmatprep.subr.mxu0 0.0
      %3344 = vmatpush1.msra.mxu0 %v3307
      %3345 = vmatprep.subr.mxu0 0.0
      %3346 = vmatpush1.msra.mxu0 %v3306
      %3347 = vmatprep.subr.mxu0 0.0
      %3348 = vmatpush1.msra.mxu0 %v3305
      %3349 = vmatprep.subr.mxu0 0.0
      %3350 = vmatpush1.msra.mxu0 %v3304
      %3351 = vmatprep.subr.mxu0 0.0
      %3352 = vmatpush2.msra.mxu0 0.0
      %3353 = vmatprep.subr.mxu0 0.0
      %3354 = vmatpush2.msra.mxu0 0.0
      %3355 = vmatprep.subr.mxu0 0.0
      %3356 = vmatpush2.msra.mxu0 0.0
      %3357 = vmatprep.subr.mxu0 0.0
      %3358 = vmatpush2.msra.mxu0 0.0
      %3359 = vmatprep.subr.mxu0 0.0
      %3360 = vmatpush2.msra.mxu0 0.0
      %3361 = vmatprep.subr.mxu0 0.0
      %3362 = vmatpush2.msra.mxu0 0.0
      %3363 = vmatprep.subr.mxu0 0.0
      %3364 = vmatpush2.msra.mxu0 0.0
      %3365 = vmatprep.subr.mxu0 0.0
      %3366 = vmatpush2.msra.mxu0 0.0
      %3367 = vmatprep.subr.mxu0 0.0
      %3368 = vmatpush2.msra.mxu0 0.0
      %3369 = vmatprep.subr.mxu0 0.0
      %3370 = vmatpush2.msra.mxu0 0.0
      %3371 = vmatprep.subr.mxu0 0.0
      %3372 = vmatpush2.msra.mxu0 0.0
      %3373 = vmatprep.subr.mxu0 0.0
      %3374 = vmatpush2.msra.mxu0 0.0
      %3375 = vmatprep.subr.mxu0 0.0
      %3376 = vmatpush2.msra.mxu0 0.0
      %3377 = vmatprep.subr.mxu0 0.0
      %3378 = vmatpush2.msra.mxu0 0.0
      %3379 = vmatprep.subr.mxu0 0.0
      %3380 = vmatpush2.msra.mxu0 0.0
      %3381 = vmatprep.subr.mxu0 0.0
      %3382 = vmatpush2.msra.mxu0 0.0
      %3383 = vmatprep.mubr.f32.mxu0 0.0
      %3384 = vmatmul.mubr.f32.gmra.mxu0 %v3317
      %v3385 = vpop.f32.mrf.mxu0
      %v3386 = vadd.f32 %v3314, %v3385
      %v3387 = vpop.f32.mrf.mxu0
      %3388 = vdwg.mxu0
      %v3389 = vadd.f32 %v3386, %v2374
      %v3390 = vsel %vm2344, %v3389, 0.0
      %3391 = vadd.xlane.f32.xlu0 %v3390
      %v3392 = vpop.xlane.xlu0 %3391
      %v3393 = vmul.f32 %v3392, %v2348
      %v3394 = vsub.f32 %v3389, %v3393
      %v3395 = vmul.f32 %v3394, %v3394
      %v3396 = vsel %vm2344, %v3395, 0.0
      %3397 = vadd.xlane.f32.xlu0 %v3396
      %v3398 = vpop.xlane.xlu0 %3397
      %v3399 = vmul.f32 %v3398, %v2348
      %v3400 = vadd.f32 %v3399, 1e-05
      %v3401 = vrsqrt.pop %v3400
      %v3402 = vmul.f32 %v3394, %v3401
      %s3403 = scalar_lea.vmem %s12, 1
      %v3404 = vld [vmem:[%s3403] sm:$0x1]
      %v3406 = vlaneseq
      %v3407 = vshrl.u32 %v3406, 7
      %v3408 = vsub.s32 0, %v3407
      %v3409 = vrot.slane %v3404, %v3408
      %v3411 = vmul.f32 %v3402, %v3409
      %s3412 = scalar_lea.vmem %s13, 1
      %v3413 = vld [vmem:[%s3412] sm:$0x1]
      %v3415 = vlaneseq
      %v3416 = vshrl.u32 %v3415, 7
      %v3417 = vsub.s32 0, %v3416
      %v3418 = vrot.slane %v3413, %v3417
      %v3420 = vadd.f32 %v3411, %v3418
      %v3421 = vld [vmem:[%s14] sm:$0xff]
      %v3422 = vld [vmem:[%s14 + $0x8] sm:$0xff]
      %v3423 = vld [vmem:[%s14 + $0x10] sm:$0xff]
      %v3424 = vld [vmem:[%s14 + $0x18] sm:$0xff]
      %v3425 = vld [vmem:[%s15] sm:$0x1]
      %v3427 = vlaneseq
      %v3428 = vshrl.u32 %v3427, 7
      %v3429 = vsub.s32 0, %v3428
      %v3430 = vrot.slane %v3425, %v3429
      %v3433 = vsel %vm660, %v3420, 0
      %3435 = vmatprep.subr.mxu0 0.0
      %3436 = vmatpush1.msra.mxu0 0.0
      %3437 = vmatprep.subr.mxu0 0.0
      %3438 = vmatpush1.msra.mxu0 0.0
      %3439 = vmatprep.subr.mxu0 0.0
      %3440 = vmatpush1.msra.mxu0 0.0
      %3441 = vmatprep.subr.mxu0 0.0
      %3442 = vmatpush1.msra.mxu0 0.0
      %3443 = vmatprep.subr.mxu0 0.0
      %3444 = vmatpush1.msra.mxu0 0.0
      %3445 = vmatprep.subr.mxu0 0.0
      %3446 = vmatpush1.msra.mxu0 0.0
      %3447 = vmatprep.subr.mxu0 0.0
      %3448 = vmatpush1.msra.mxu0 0.0
      %3449 = vmatprep.subr.mxu0 0.0
      %3450 = vmatpush1.msra.mxu0 0.0
      %3451 = vmatprep.subr.mxu0 0.0
      %3452 = vmatpush1.msra.mxu0 0.0
      %3453 = vmatprep.subr.mxu0 0.0
      %3454 = vmatpush1.msra.mxu0 0.0
      %3455 = vmatprep.subr.mxu0 0.0
      %3456 = vmatpush1.msra.mxu0 0.0
      %3457 = vmatprep.subr.mxu0 0.0
      %3458 = vmatpush1.msra.mxu0 0.0
      %3459 = vmatprep.subr.mxu0 0.0
      %3460 = vmatpush1.msra.mxu0 %v3424
      %3461 = vmatprep.subr.mxu0 0.0
      %3462 = vmatpush1.msra.mxu0 %v3423
      %3463 = vmatprep.subr.mxu0 0.0
      %3464 = vmatpush1.msra.mxu0 %v3422
      %3465 = vmatprep.subr.mxu0 0.0
      %3466 = vmatpush1.msra.mxu0 %v3421
      %3467 = vmatprep.subr.mxu0 0.0
      %3468 = vmatpush2.msra.mxu0 0.0
      %3469 = vmatprep.subr.mxu0 0.0
      %3470 = vmatpush2.msra.mxu0 0.0
      %3471 = vmatprep.subr.mxu0 0.0
      %3472 = vmatpush2.msra.mxu0 0.0
      %3473 = vmatprep.subr.mxu0 0.0
      %3474 = vmatpush2.msra.mxu0 0.0
      %3475 = vmatprep.subr.mxu0 0.0
      %3476 = vmatpush2.msra.mxu0 0.0
      %3477 = vmatprep.subr.mxu0 0.0
      %3478 = vmatpush2.msra.mxu0 0.0
      %3479 = vmatprep.subr.mxu0 0.0
      %3480 = vmatpush2.msra.mxu0 0.0
      %3481 = vmatprep.subr.mxu0 0.0
      %3482 = vmatpush2.msra.mxu0 0.0
      %3483 = vmatprep.subr.mxu0 0.0
      %3484 = vmatpush2.msra.mxu0 0.0
      %3485 = vmatprep.subr.mxu0 0.0
      %3486 = vmatpush2.msra.mxu0 0.0
      %3487 = vmatprep.subr.mxu0 0.0
      %3488 = vmatpush2.msra.mxu0 0.0
      %3489 = vmatprep.subr.mxu0 0.0
      %3490 = vmatpush2.msra.mxu0 0.0
      %3491 = vmatprep.subr.mxu0 0.0
      %3492 = vmatpush2.msra.mxu0 0.0
      %3493 = vmatprep.subr.mxu0 0.0
      %3494 = vmatpush2.msra.mxu0 0.0
      %3495 = vmatprep.subr.mxu0 0.0
      %3496 = vmatpush2.msra.mxu0 0.0
      %3497 = vmatprep.subr.mxu0 0.0
      %3498 = vmatpush2.msra.mxu0 0.0
      %3499 = vmatprep.mubr.f32.mxu0 0.0
      %3500 = vmatmul.mubr.f32.gmra.mxu0 %v3433
      %v3501 = vpop.f32.mrf.mxu0
      %v3502 = vadd.f32 %v3430, %v3501
      %v3503 = vpop.f32.mrf.mxu0
      %3504 = vdwg.mxu0
      %v3505 = vld [vmem:[%s16] sm:$0x3f]
      %v3507 = vsel %vm1584, %v3505, 0
      %v3510 = vsel %vm1588, %v3502, 0
      %3512 = vmatprep.subr.mxu0 0.0
      %3513 = vmatpush1.msra.mxu0 0.0
      %3514 = vmatprep.subr.mxu0 0.0
      %3515 = vmatpush1.msra.mxu0 0.0
      %3516 = vmatprep.subr.mxu0 0.0
      %3517 = vmatpush1.msra.mxu0 0.0
      %3518 = vmatprep.subr.mxu0 0.0
      %3519 = vmatpush1.msra.mxu0 0.0
      %3520 = vmatprep.subr.mxu0 0.0
      %3521 = vmatpush1.msra.mxu0 0.0
      %3522 = vmatprep.subr.mxu0 0.0
      %3523 = vmatpush1.msra.mxu0 0.0
      %3524 = vmatprep.subr.mxu0 0.0
      %3525 = vmatpush1.msra.mxu0 0.0
      %3526 = vmatprep.subr.mxu0 0.0
      %3527 = vmatpush1.msra.mxu0 0.0
      %3528 = vmatprep.subr.mxu0 0.0
      %3529 = vmatpush1.msra.mxu0 0.0
      %3530 = vmatprep.subr.mxu0 0.0
      %3531 = vmatpush1.msra.mxu0 0.0
      %3532 = vmatprep.subr.mxu0 0.0
      %3533 = vmatpush1.msra.mxu0 0.0
      %3534 = vmatprep.subr.mxu0 0.0
      %3535 = vmatpush1.msra.mxu0 0.0
      %3536 = vmatprep.subr.mxu0 0.0
      %3537 = vmatpush1.msra.mxu0 0.0
      %3538 = vmatprep.subr.mxu0 0.0
      %3539 = vmatpush1.msra.mxu0 0.0
      %3540 = vmatprep.subr.mxu0 0.0
      %3541 = vmatpush1.msra.mxu0 0.0
      %3542 = vmatprep.subr.mxu0 0.0
      %3543 = vmatpush1.msra.mxu0 %v3510
      %3544 = vmatprep.subr.mxu0 0.0
      %3545 = vmatpush2.msra.mxu0 0.0
      %3546 = vmatprep.subr.mxu0 0.0
      %3547 = vmatpush2.msra.mxu0 0.0
      %3548 = vmatprep.subr.mxu0 0.0
      %3549 = vmatpush2.msra.mxu0 0.0
      %3550 = vmatprep.subr.mxu0 0.0
      %3551 = vmatpush2.msra.mxu0 0.0
      %3552 = vmatprep.subr.mxu0 0.0
      %3553 = vmatpush2.msra.mxu0 0.0
      %3554 = vmatprep.subr.mxu0 0.0
      %3555 = vmatpush2.msra.mxu0 0.0
      %3556 = vmatprep.subr.mxu0 0.0
      %3557 = vmatpush2.msra.mxu0 0.0
      %3558 = vmatprep.subr.mxu0 0.0
      %3559 = vmatpush2.msra.mxu0 0.0
      %3560 = vmatprep.subr.mxu0 0.0
      %3561 = vmatpush2.msra.mxu0 0.0
      %3562 = vmatprep.subr.mxu0 0.0
      %3563 = vmatpush2.msra.mxu0 0.0
      %3564 = vmatprep.subr.mxu0 0.0
      %3565 = vmatpush2.msra.mxu0 0.0
      %3566 = vmatprep.subr.mxu0 0.0
      %3567 = vmatpush2.msra.mxu0 0.0
      %3568 = vmatprep.subr.mxu0 0.0
      %3569 = vmatpush2.msra.mxu0 0.0
      %3570 = vmatprep.subr.mxu0 0.0
      %3571 = vmatpush2.msra.mxu0 0.0
      %3572 = vmatprep.subr.mxu0 0.0
      %3573 = vmatpush2.msra.mxu0 0.0
      %3574 = vmatprep.subr.mxu0 0.0
      %3575 = vmatpush2.msra.mxu0 0.0
      %3576 = vmatprep.mubr.f32.mxu0 0.0
      %3577 = vmatmul.mubr.f32.gmra.mxu0 %v3507
      %v3578 = vpop.f32.mrf.mxu0
      %v3579 = vadd.f32 0.0, %v3578
      %v3580 = vpop.f32.mrf.mxu0
      %3581 = vdwg.mxu0
      %v3583 = vrot.slane %v3579, 3
      %v3584 = vsel %vm660, %v3579, 0
      %v3586 = vsel %vm660, %v3583, 0
      %3588 = vmatprep.subr.mxu0 0.0
      %3589 = vmatpush1.xpose.msra.mxu0 0.0
      %3590 = vmatprep.subr.mxu0 0.0
      %3591 = vmatpush1.xpose.msra.mxu0 0.0
      %3592 = vmatprep.subr.mxu0 0.0
      %3593 = vmatpush1.xpose.msra.mxu0 0.0
      %3594 = vmatprep.subr.mxu0 0.0
      %3595 = vmatpush1.xpose.msra.mxu0 0.0
      %3596 = vmatprep.subr.mxu0 0.0
      %3597 = vmatpush1.xpose.msra.mxu0 0.0
      %3598 = vmatprep.subr.mxu0 0.0
      %3599 = vmatpush1.xpose.msra.mxu0 0.0
      %3600 = vmatprep.subr.mxu0 0.0
      %3601 = vmatpush1.xpose.msra.mxu0 0.0
      %3602 = vmatprep.subr.mxu0 0.0
      %3603 = vmatpush1.xpose.msra.mxu0 0.0
      %3604 = vmatprep.subr.mxu0 0.0
      %3605 = vmatpush1.xpose.msra.mxu0 0.0
      %3606 = vmatprep.subr.mxu0 0.0
      %3607 = vmatpush1.xpose.msra.mxu0 0.0
      %3608 = vmatprep.subr.mxu0 0.0
      %3609 = vmatpush1.xpose.msra.mxu0 0.0
      %3610 = vmatprep.subr.mxu0 0.0
      %3611 = vmatpush1.xpose.msra.mxu0 0.0
      %3612 = vmatprep.subr.mxu0 0.0
      %3613 = vmatpush1.xpose.msra.mxu0 0.0
      %3614 = vmatprep.subr.mxu0 0.0
      %3615 = vmatpush1.xpose.msra.mxu0 0.0
      %3616 = vmatprep.subr.mxu0 0.0
      %3617 = vmatpush1.xpose.msra.mxu0 0.0
      %3618 = vmatprep.subr.mxu0 0.0
      %3619 = vmatpush1.xpose.msra.mxu0 %v3586
      %3620 = vmatprep.subr.mxu0 0.0
      %3621 = vmatpush2.xpose.msra.mxu0 0.0
      %3622 = vmatprep.subr.mxu0 0.0
      %3623 = vmatpush2.xpose.msra.mxu0 0.0
      %3624 = vmatprep.subr.mxu0 0.0
      %3625 = vmatpush2.xpose.msra.mxu0 0.0
      %3626 = vmatprep.subr.mxu0 0.0
      %3627 = vmatpush2.xpose.msra.mxu0 0.0
      %3628 = vmatprep.subr.mxu0 0.0
      %3629 = vmatpush2.xpose.msra.mxu0 0.0
      %3630 = vmatprep.subr.mxu0 0.0
      %3631 = vmatpush2.xpose.msra.mxu0 0.0
      %3632 = vmatprep.subr.mxu0 0.0
      %3633 = vmatpush2.xpose.msra.mxu0 0.0
      %3634 = vmatprep.subr.mxu0 0.0
      %3635 = vmatpush2.xpose.msra.mxu0 0.0
      %3636 = vmatprep.subr.mxu0 0.0
      %3637 = vmatpush2.xpose.msra.mxu0 0.0
      %3638 = vmatprep.subr.mxu0 0.0
      %3639 = vmatpush2.xpose.msra.mxu0 0.0
      %3640 = vmatprep.subr.mxu0 0.0
      %3641 = vmatpush2.xpose.msra.mxu0 0.0
      %3642 = vmatprep.subr.mxu0 0.0
      %3643 = vmatpush2.xpose.msra.mxu0 0.0
      %3644 = vmatprep.subr.mxu0 0.0
      %3645 = vmatpush2.xpose.msra.mxu0 0.0
      %3646 = vmatprep.subr.mxu0 0.0
      %3647 = vmatpush2.xpose.msra.mxu0 0.0
      %3648 = vmatprep.subr.mxu0 0.0
      %3649 = vmatpush2.xpose.msra.mxu0 0.0
      %3650 = vmatprep.subr.mxu0 0.0
      %3651 = vmatpush2.xpose.msra.mxu0 0.0
      %3652 = vmatprep.mubr.f32.mxu0 0.0
      %3653 = vmatmul.mubr.f32.gmra.mxu0 %v3584
      %v3654 = vpop.f32.mrf.mxu0
      %v3655 = vadd.f32 0.0, %v3654
      %v3656 = vpop.f32.mrf.mxu0
      %3657 = vdwg.mxu0
      %v3658 = vld [vmem:[%s18] sm:$0x7]
      %vm3659 = vcmask 23552
      %v3661 = vsel %vm3659, %v3655, 0
      %vm3663 = vcmask 1042432
      %v3665 = vsel %vm3663, %v3658, 0
      %3667 = vmatprep.subr.mxu0 0.0
      %3668 = vmatpush1.msra.mxu0 0.0
      %3669 = vmatprep.subr.mxu0 0.0
      %3670 = vmatpush1.msra.mxu0 0.0
      %3671 = vmatprep.subr.mxu0 0.0
      %3672 = vmatpush1.msra.mxu0 0.0
      %3673 = vmatprep.subr.mxu0 0.0
      %3674 = vmatpush1.msra.mxu0 0.0
      %3675 = vmatprep.subr.mxu0 0.0
      %3676 = vmatpush1.msra.mxu0 0.0
      %3677 = vmatprep.subr.mxu0 0.0
      %3678 = vmatpush1.msra.mxu0 0.0
      %3679 = vmatprep.subr.mxu0 0.0
      %3680 = vmatpush1.msra.mxu0 0.0
      %3681 = vmatprep.subr.mxu0 0.0
      %3682 = vmatpush1.msra.mxu0 0.0
      %3683 = vmatprep.subr.mxu0 0.0
      %3684 = vmatpush1.msra.mxu0 0.0
      %3685 = vmatprep.subr.mxu0 0.0
      %3686 = vmatpush1.msra.mxu0 0.0
      %3687 = vmatprep.subr.mxu0 0.0
      %3688 = vmatpush1.msra.mxu0 0.0
      %3689 = vmatprep.subr.mxu0 0.0
      %3690 = vmatpush1.msra.mxu0 0.0
      %3691 = vmatprep.subr.mxu0 0.0
      %3692 = vmatpush1.msra.mxu0 0.0
      %3693 = vmatprep.subr.mxu0 0.0
      %3694 = vmatpush1.msra.mxu0 0.0
      %3695 = vmatprep.subr.mxu0 0.0
      %3696 = vmatpush1.msra.mxu0 0.0
      %3697 = vmatprep.subr.mxu0 0.0
      %3698 = vmatpush1.msra.mxu0 %v3665
      %3699 = vmatprep.subr.mxu0 0.0
      %3700 = vmatpush2.msra.mxu0 0.0
      %3701 = vmatprep.subr.mxu0 0.0
      %3702 = vmatpush2.msra.mxu0 0.0
      %3703 = vmatprep.subr.mxu0 0.0
      %3704 = vmatpush2.msra.mxu0 0.0
      %3705 = vmatprep.subr.mxu0 0.0
      %3706 = vmatpush2.msra.mxu0 0.0
      %3707 = vmatprep.subr.mxu0 0.0
      %3708 = vmatpush2.msra.mxu0 0.0
      %3709 = vmatprep.subr.mxu0 0.0
      %3710 = vmatpush2.msra.mxu0 0.0
      %3711 = vmatprep.subr.mxu0 0.0
      %3712 = vmatpush2.msra.mxu0 0.0
      %3713 = vmatprep.subr.mxu0 0.0
      %3714 = vmatpush2.msra.mxu0 0.0
      %3715 = vmatprep.subr.mxu0 0.0
      %3716 = vmatpush2.msra.mxu0 0.0
      %3717 = vmatprep.subr.mxu0 0.0
      %3718 = vmatpush2.msra.mxu0 0.0
      %3719 = vmatprep.subr.mxu0 0.0
      %3720 = vmatpush2.msra.mxu0 0.0
      %3721 = vmatprep.subr.mxu0 0.0
      %3722 = vmatpush2.msra.mxu0 0.0
      %3723 = vmatprep.subr.mxu0 0.0
      %3724 = vmatpush2.msra.mxu0 0.0
      %3725 = vmatprep.subr.mxu0 0.0
      %3726 = vmatpush2.msra.mxu0 0.0
      %3727 = vmatprep.subr.mxu0 0.0
      %3728 = vmatpush2.msra.mxu0 0.0
      %3729 = vmatprep.subr.mxu0 0.0
      %3730 = vmatpush2.msra.mxu0 0.0
      %3731 = vmatprep.mubr.f32.mxu0 0.0
      %3732 = vmatmul.mubr.f32.gmra.mxu0 %v3661
      %v3733 = vpop.f32.mrf.mxu0
      %v3734 = vadd.f32 0.0, %v3733
      %v3735 = vpop.f32.mrf.mxu0
      %3736 = vdwg.mxu0
      %v3737 = vmul.f32 %v3734, 0.33333334
      %vm3738 = vcmask 18432
      %3739 = vst.msk [vmem:[%s600] sm:$0x7] %vm3738, %v3737
      %p3740 = scmp.lt.s32.totalorder %s30, 1
      %s3741 = scalar_select %p3740, %s30, 1
      %s3742 = smul.addr %s3741, 4
      %s3743 = scalar_lea.vmem %s19, %s3742
      // Predicated region
      $region97: #{tpu_custom_call.1} parent=95 // pred_check
        %p3744 = pneg %p452
      $region98: #{tpu_custom_call.1} parent=95 // pred_check_branch
        %3746 = sbr.rel (%p3744) target = $region100
      $region99: #{tpu_custom_call.1} parent=95 // pred_region
        _
      $region100: #{tpu_custom_call.1} parent=95 // pred_fallthru
        _
    $region96: #{tpu_custom_call.1} parent=5 // pred_fallthru
      _
    %p3747 = scmp.le.s32.totalorder 2, %s25
    // Predicated region
    $region101: #{tpu_custom_call.1} parent=5 // pred_check
      %p3748 = pneg %p3747
    $region102: #{tpu_custom_call.1} parent=5 // pred_check_branch
      %3750 = sbr.rel (%p3748) target = $region104
    $region103: #{tpu_custom_call.1} parent=5 // pred_region
      %s3751 = ssub.s32 %s25, 2
      // Predicated region
      $region105: #{tpu_custom_call.1} parent=103 // pred_check
        %p3752 = pneg %p458
      $region106: #{tpu_custom_call.1} parent=103 // pred_check_branch
        %3754 = sbr.rel (%p3752) target = $region108
      $region107: #{tpu_custom_call.1} parent=103 // pred_region
        %p3755 = scmp.lt.s32.totalorder %s31, 1
        %s3756 = scalar_select %p3755, %s31, 1
        %s3757 = smul.addr %s3756, 4
        %s3758 = scalar_lea.vmem %s19, %s3757
      $region108: #{tpu_custom_call.1} parent=103 // pred_fallthru
        _
    $region104: #{tpu_custom_call.1} parent=5 // pred_fallthru
      _
  $region6: #{tpu_custom_call.1} parent=0 // loop_footer
    %s29 = sadd.s32 1, %s25
  $region7: #{tpu_custom_call.1} parent=0 // loop_footer_branch
    %24 = sbr.rel target = $region3
  $region8: #{tpu_custom_call.1} parent=0 // loop_exit
    _

</llo_original>
